<compile_context>
chip_gen: v7x
topology: tpu7x:2x2x1
jax: 0.10.0
libtpu: 0.0.40
codegen_flags: <defaults>
</compile_context>

<pallas_src>
import functools

import jax
import jax.numpy as jnp
from jax.experimental import pallas as pl
from jax.experimental.pallas import tpu as pltpu


_SRC_CHUNK = 128    # source-node (j) tile: bounds the live pairwise slab
OUT_PAD = 128       # lane-dense padding of the 3-wide head output
MLP_HID_PAD = 128   # lane-dense padding of the 64-wide MLP hidden layer


def _gate_dtype():
    """bf16 gate math only on chips with a bf16 VPU/EUP (v6e/v7x); f32 otherwise."""
    try:
        kind = jax.devices()[0].device_kind.lower()
    except Exception:
        kind = ""
    return jnp.bfloat16 if ("v6" in kind or "v7" in kind) else jnp.float32


# ----------------------------------------------------------------------------
# Fused Pallas kernel
# ----------------------------------------------------------------------------
def _gcn_layer(x_mm, adj_t, w_ref, b_ref, bias_ref, gate_dtype):
    """One ResGatedGraphConv + ReLU.

    x_mm:     (N, C_in)       bf16 (MXU operand)
    adj_t:    (N, N)          gate_dtype, TRANSPOSED adjacency: adj_t[j, i] = #edges j->i
    w_ref:    (C_in, 4*C_out) bf16, [key | query | value | skip]
    b_ref:    (1, 4*C_out)    f32,  [b_key | b_query | b_value | 0]
    bias_ref: (1, C_out)      f32,  PyG post-aggregation bias
    returns   (N, C_out)      f32
    """
    n = x_mm.shape[0]
    c = w_ref.shape[1] // 4

    # Single fused MXU pass for key|query|value|skip (f32 accumulate), one bias add.
    kqvs = jnp.dot(x_mm, w_ref[...], preferred_element_type=jnp.float32) + b_ref[...]
    k = kqvs[:, 0 * c:1 * c].astype(gate_dtype)   # per-destination i
    q = kqvs[:, 1 * c:2 * c].astype(gate_dtype)   # per-source j
    v = kqvs[:, 2 * c:3 * c].astype(gate_dtype)   # per-source j
    s = kqvs[:, 3 * c:4 * c]                      # skip path stays f32

    # Pairwise gate, chunked over source nodes j so only a (tj, N, C) slab is live at
    # once. The reduction over j is over the LEADING axis -> plain VALU accumulates into
    # the (N, C) f32 accumulator (no cross-sublane XLU reduce, no full-slab f32 upcast).
    # TODO(synk): for large graphs, also tile destination rows via the grid and convert
    # this static chunk loop to lax.fori_loop (v7x 64 MiB VMEM); at toy N it's one chunk.
    tj = min(n, _SRC_CHUNK)
    agg = jnp.zeros((n, c), jnp.float32)
    for j0 in range(0, n, tj):
        tj_cur = min(tj, n - j0)
        qj = q[j0:j0 + tj_cur]                    # (tj, C)
        vj = v[j0:j0 + tj_cur]                    # (tj, C)
        ajt = adj_t[j0:j0 + tj_cur]               # (tj, N)
        z = k[None, :, :] + qj[:, None, :]        # (tj, N, C) gate_dtype
        # sigmoid via a single EUP transcendental (tanh) instead of exp + reciprocal.
        gate = 0.5 * (jnp.tanh(0.5 * z) + 1.0)    # (tj, N, C) gate_dtype
        msgs = gate * vj[:, None, :] * ajt[:, :, None]   # (tj, N, C) gate_dtype
        for jj in range(tj_cur):                  # leading-axis reduce, f32 accumulation
            agg = agg + msgs[jj].astype(jnp.float32)
    return jnp.maximum(s + agg + bias_ref[...], 0.0)


def _pos_decoder_kernel(x_ref, at_ref,
                        w_g1_ref, b_g1_ref, bias_g1_ref,
                        w_g2_ref, b_g2_ref, bias_g2_ref,
                        w_m1_ref, b_m1_ref, w_m2_ref, b_m2_ref,
                        out_ref, *, gate_dtype):
    x = x_ref[...]     # (N, F_IN) bf16
    at = at_ref[...]   # (N, N)    gate_dtype, transposed adjacency

    # gcn1 + ReLU, gcn2 + ReLU (intermediates stay on-chip).
    h = _gcn_layer(x, at, w_g1_ref, b_g1_ref, bias_g1_ref, gate_dtype)              # (N, 256) f32
    h = _gcn_layer(h.astype(jnp.bfloat16), at, w_g2_ref, b_g2_ref, bias_g2_ref,
                   gate_dtype)                                                       # (N, 128) f32

    # MLP head: hidden and output both padded to 128 lanes (lane-dense matmuls/stores).
    h = jnp.dot(h.astype(jnp.bfloat16), w_m1_ref[...],
                preferred_element_type=jnp.float32) + b_m1_ref[...]
    h = jnp.maximum(h, 0.0)                                                          # (N, 128)
    o = jnp.dot(h.astype(jnp.bfloat16), w_m2_ref[...],
                preferred_element_type=jnp.float32) + b_m2_ref[...]
    out_ref[...] = jnp.maximum(o, 0.0)                                               # (N, 128); cols 3.. are 0


# ----------------------------------------------------------------------------
# Wrapper: grid over graphs, weights VMEM-resident
# ----------------------------------------------------------------------------
def _resident_spec(arr):
    nd = arr.ndim
    return pl.BlockSpec(arr.shape, lambda g, _nd=nd: (0,) * _nd)   # constant block index


def pos_decoder_forward_padded(x_b, adj_b, pp):
    """x_b: (G, N, F_IN); adj_b: (G, N, N) with adj_b[g, dst, src] = #edges src->dst."""
    g, n, f_in = x_b.shape
    gate_dtype = _gate_dtype()

    x_b = x_b.astype(jnp.bfloat16)
    adj_t = jnp.swapaxes(adj_b, -1, -2).astype(gate_dtype)   # adj_t[g, src, dst]

    weights = (pp["w_g1"], pp["b_g1"], pp["bias_g1"],
               pp["w_g2"], pp["b_g2"], pp["bias_g2"],
               pp["w_m1"], pp["b_m1"], pp["w_m2"], pp["b_m2"])

    in_specs = ([pl.BlockSpec((None, n, f_in), lambda i: (i, 0, 0)),
                 pl.BlockSpec((None, n, n), lambda i: (i, 0, 0))]
                + [_resident_spec(w) for w in weights])

    return pl.pallas_call(
        functools.partial(_pos_decoder_kernel, gate_dtype=gate_dtype),
        out_shape=jax.ShapeDtypeStruct((g, n, OUT_PAD), jnp.float32),
        grid=(g,),
        in_specs=in_specs,
        out_specs=pl.BlockSpec((None, n, OUT_PAD), lambda i: (i, 0, 0)),
        compiler_params=pltpu.CompilerParams(dimension_semantics=("parallel",)),
    )(x_b, adj_t, *weights)


@jax.jit
def pos_decoder_forward(x_b, adj_b, packed_params):
    # Lane-dense (G, N, 128) kernel output; the true head width is 3.
    return pos_decoder_forward_padded(x_b, adj_b, packed_params)[..., :3]


def build_adjacency(edge_index, num_nodes):
    # edge_index[0] = source j, edge_index[1] = target i (PyG convention);
    # duplicate edges accumulate, matching per-edge scatter-add semantics.
    src, dst = edge_index[0], edge_index[1]
    adj = jnp.zeros((num_nodes, num_nodes), jnp.float32)
    return adj.at[dst, src].add(1.0)


# ----------------------------------------------------------------------------
# Deterministic parameter init (mimics torch Linear uniform(-1/sqrt(fan_in), .))
# ----------------------------------------------------------------------------
def _linear_init(key, fan_in, fan_out, bias=True):
    kw, kb = jax.random.split(key)
    bound = 1.0 / (fan_in ** 0.5)
    w = jax.random.uniform(kw, (fan_in, fan_out), jnp.float32, -bound, bound)
    if not bias:
        return w, None
    b = jax.random.uniform(kb, (1, fan_out), jnp.float32, -bound, bound)
    return w, b


def make_gcn_params(key, c_in, c_out):
    ks = jax.random.split(key, 4)
    wk, bk = _linear_init(ks[0], c_in, c_out)
    wq, bq = _linear_init(ks[1], c_in, c_out)
    wv, bv = _linear_init(ks[2], c_in, c_out)
    ws, _ = _linear_init(ks[3], c_in, c_out, bias=False)   # PyG lin_skip has bias=False
    bias = jnp.zeros((1, c_out), jnp.float32)              # PyG bias param inits to zeros
    return dict(wk=wk, bk=bk, wq=wq, bq=bq, wv=wv, bv=bv, ws=ws, bias=bias)


def make_params(key, c_in):
    k1, k2, k3, k4 = jax.random.split(key, 4)
    gcn1 = make_gcn_params(k1, c_in, 256)
    gcn2 = make_gcn_params(k2, 256, 128)
    w1, b1 = _linear_init(k3, 128, 64)
    w2, b2 = _linear_init(k4, 64, 3)
    return dict(gcn1=gcn1, gcn2=gcn2, mlp=dict(w1=w1, b1=b1, w2=w2, b2=b2))


def pack_params(params):
    """Concat GCN weights per layer, cast MXU operands to bf16, pad MLP to 128 lanes."""
    def pack_gcn(g):
        c_out = g["wk"].shape[1]
        w = jnp.concatenate([g["wk"], g["wq"], g["wv"], g["ws"]], axis=1)
        b = jnp.concatenate([g["bk"], g["bq"], g["bv"],
                             jnp.zeros((1, c_out), jnp.float32)], axis=1)
        return w.astype(jnp.bfloat16), b, g["bias"]

    w_g1, b_g1, bias_g1 = pack_gcn(params["gcn1"])
    w_g2, b_g2, bias_g2 = pack_gcn(params["gcn2"])
    m = params["mlp"]
    hid, outw = m["w1"].shape[1], m["w2"].shape[1]
    hp, op = MLP_HID_PAD - hid, OUT_PAD - outw
    w1p = jnp.pad(m["w1"], ((0, 0), (0, hp)))       # (128, 128)
    b1p = jnp.pad(m["b1"], ((0, 0), (0, hp)))       # (1, 128)
    w2p = jnp.pad(m["w2"], ((0, hp), (0, op)))      # (128, 128), padded rows/cols are 0
    b2p = jnp.pad(m["b2"], ((0, 0), (0, op)))       # (1, 128)
    return dict(
        w_g1=w_g1, b_g1=b_g1, bias_g1=bias_g1,
        w_g2=w_g2, b_g2=b_g2, bias_g2=bias_g2,
        w_m1=w1p.astype(jnp.bfloat16), b_m1=b1p,
        w_m2=w2p.astype(jnp.bfloat16), b_m2=b2p,
    )


# ----------------------------------------------------------------------------
if __name__ == "__main__":
    N_GRAPHS = 4     # batch of meshes decoded in one pallas_call (grid axis, "parallel")
    N_NODES = 16     # mesh vertices per graph
    F_IN = 32        # lazy in_channels (-1) resolved to 32
    N_EDGES = 48

    key = jax.random.PRNGKey(0)
    k_x, k_e, k_p = jax.random.split(key, 3)

    x = jax.random.normal(k_x, (N_GRAPHS, N_NODES, F_IN), jnp.float32)          # mesh_data.x
    edge_index = jax.random.randint(k_e, (N_GRAPHS, 2, N_EDGES), 0, N_NODES)    # mesh_data.edge_index
    adj = jax.vmap(lambda e: build_adjacency(e, N_NODES))(edge_index)           # (G, N, N)

    packed = pack_params(make_params(k_p, F_IN))

    out = pos_decoder_forward(x, adj, packed)
    jax.block_until_ready(out)

    assert out.shape == (N_GRAPHS, N_NODES, 3)
    assert bool(jnp.all(out >= 0.0))  # final ReLU
    print("KERNEL_OK")
</pallas_src>

<mosaic_0001>
module attributes {stable_mosaic.version = 11 : i64} {
  func.func @_pos_decoder_kernel(%arg0: i32, %arg1: memref<1x16x32xbf16, #tpu.memory_space<vmem>>, %arg2: memref<1x16x16xf32, #tpu.memory_space<vmem>>, %arg3: memref<32x1024xbf16, #tpu.memory_space<vmem>>, %arg4: memref<1x1024xf32, #tpu.memory_space<vmem>>, %arg5: memref<1x256xf32, #tpu.memory_space<vmem>>, %arg6: memref<256x512xbf16, #tpu.memory_space<vmem>>, %arg7: memref<1x512xf32, #tpu.memory_space<vmem>>, %arg8: memref<1x128xf32, #tpu.memory_space<vmem>>, %arg9: memref<128x128xbf16, #tpu.memory_space<vmem>>, %arg10: memref<1x128xf32, #tpu.memory_space<vmem>>, %arg11: memref<128x128xbf16, #tpu.memory_space<vmem>>, %arg12: memref<1x128xf32, #tpu.memory_space<vmem>>, %arg13: memref<1x16x128xf32, #tpu.memory_space<vmem>>) attributes {dimension_semantics = [#tpu.dimension_semantics<parallel>], iteration_bounds = array<i64: 4>, scalar_prefetch = 0 : i64, scratch_operands = 0 : i64, tpu.core_type = #tpu.core_type<tc>, window_params = [{transform_indices = @transform_0, window_bounds = array<i64: 1, 16, 32>}, {transform_indices = @transform_1, window_bounds = array<i64: 1, 16, 16>}, {pipeline_mode = #tpu.pipeline_mode<synchronous>, transform_indices = @transform_2, window_bounds = array<i64: 32, 1024>}, {pipeline_mode = #tpu.pipeline_mode<synchronous>, transform_indices = @transform_3, window_bounds = array<i64: 1, 1024>}, {pipeline_mode = #tpu.pipeline_mode<synchronous>, transform_indices = @transform_4, window_bounds = array<i64: 1, 256>}, {pipeline_mode = #tpu.pipeline_mode<synchronous>, transform_indices = @transform_5, window_bounds = array<i64: 256, 512>}, {pipeline_mode = #tpu.pipeline_mode<synchronous>, transform_indices = @transform_6, window_bounds = array<i64: 1, 512>}, {pipeline_mode = #tpu.pipeline_mode<synchronous>, transform_indices = @transform_7, window_bounds = array<i64: 1, 128>}, {pipeline_mode = #tpu.pipeline_mode<synchronous>, transform_indices = @transform_8, window_bounds = array<i64: 128, 128>}, {pipeline_mode = #tpu.pipeline_mode<synchronous>, transform_indices = @transform_9, window_bounds = array<i64: 1, 128>}, {pipeline_mode = #tpu.pipeline_mode<synchronous>, transform_indices = @transform_10, window_bounds = array<i64: 128, 128>}, {pipeline_mode = #tpu.pipeline_mode<synchronous>, transform_indices = @transform_11, window_bounds = array<i64: 1, 128>}, {transform_indices = @transform_12, window_bounds = array<i64: 1, 16, 128>}]} {
    %c0 = arith.constant 0 : index
    %c0_0 = arith.constant 0 : index
    %c0_1 = arith.constant 0 : index
    %0 = vector.load %arg1[%c0, %c0_0, %c0_1] : memref<1x16x32xbf16, #tpu.memory_space<vmem>>, vector<1x16x32xbf16>
    %1 = vector.shape_cast %0 : vector<1x16x32xbf16> to vector<16x32xbf16>
    %c0_2 = arith.constant 0 : index
    %c0_3 = arith.constant 0 : index
    %c0_4 = arith.constant 0 : index
    %2 = vector.load %arg2[%c0_2, %c0_3, %c0_4] : memref<1x16x16xf32, #tpu.memory_space<vmem>>, vector<1x16x16xf32>
    %3 = vector.shape_cast %2 : vector<1x16x16xf32> to vector<16x16xf32>
    %c0_5 = arith.constant 0 : index
    %c0_6 = arith.constant 0 : index
    %4 = vector.load %arg3[%c0_5, %c0_6] : memref<32x1024xbf16, #tpu.memory_space<vmem>>, vector<32x1024xbf16>
    %cst = arith.constant dense<0.000000e+00> : vector<16x1024xf32>
    %5 = tpu.matmul %1, %4, %cst {dimension_numbers = #tpu.dot_dimension_numbers<[1], [0], [0], [1], [0, 0, 1, 1], [], []>} : vector<16x32xbf16>, vector<32x1024xbf16>, vector<16x1024xf32> -> vector<16x1024xf32>
    %c0_7 = arith.constant 0 : index
    %c0_8 = arith.constant 0 : index
    %6 = vector.load %arg4[%c0_7, %c0_8] : memref<1x1024xf32, #tpu.memory_space<vmem>>, vector<1x1024xf32>
    %7 = vector.broadcast %6 : vector<1x1024xf32> to vector<16x1024xf32>
    %8 = arith.addf %5, %7 : vector<16x1024xf32>
    %9 = vector.extract_strided_slice %8 {offsets = [0, 0], sizes = [16, 256], strides = [1, 1]} : vector<16x1024xf32> to vector<16x256xf32>
    %10 = vector.extract_strided_slice %8 {offsets = [0, 256], sizes = [16, 256], strides = [1, 1]} : vector<16x1024xf32> to vector<16x256xf32>
    %11 = vector.extract_strided_slice %8 {offsets = [0, 512], sizes = [16, 256], strides = [1, 1]} : vector<16x1024xf32> to vector<16x256xf32>
    %12 = vector.extract_strided_slice %8 {offsets = [0, 768], sizes = [16, 256], strides = [1, 1]} : vector<16x1024xf32> to vector<16x256xf32>
    %cst_9 = arith.constant 0.000000e+00 : f32
    %13 = vector.broadcast %cst_9 : f32 to vector<16x256xf32>
    %14 = vector.shape_cast %9 : vector<16x256xf32> to vector<1x16x256xf32>
    %15 = vector.shape_cast %10 : vector<16x256xf32> to vector<16x1x256xf32>
    %16 = vector.broadcast %14 : vector<1x16x256xf32> to vector<16x16x256xf32>
    %17 = vector.broadcast %15 : vector<16x1x256xf32> to vector<16x16x256xf32>
    %18 = arith.addf %16, %17 : vector<16x16x256xf32>
    %cst_10 = arith.constant 5.000000e-01 : f32
    %19 = vector.broadcast %cst_10 : f32 to vector<16x16x256xf32>
    %20 = arith.mulf %19, %18 : vector<16x16x256xf32>
    %21 = math.tanh %20 : vector<16x16x256xf32>
    %cst_11 = arith.constant 1.000000e+00 : f32
    %22 = vector.broadcast %cst_11 : f32 to vector<16x16x256xf32>
    %23 = arith.addf %21, %22 : vector<16x16x256xf32>
    %cst_12 = arith.constant 5.000000e-01 : f32
    %24 = vector.broadcast %cst_12 : f32 to vector<16x16x256xf32>
    %25 = arith.mulf %24, %23 : vector<16x16x256xf32>
    %26 = vector.shape_cast %11 : vector<16x256xf32> to vector<16x1x256xf32>
    %27 = vector.broadcast %26 : vector<16x1x256xf32> to vector<16x16x256xf32>
    %28 = arith.mulf %25, %27 : vector<16x16x256xf32>
    %29 = vector.shape_cast %3 : vector<16x16xf32> to vector<16x16x1xf32>
    %30 = vector.broadcast %29 : vector<16x16x1xf32> to vector<16x16x256xf32>
    %31 = arith.mulf %28, %30 : vector<16x16x256xf32>
    %32 = vector.extract_strided_slice %31 {offsets = [0, 0, 0], sizes = [1, 16, 256], strides = [1, 1, 1]} : vector<16x16x256xf32> to vector<1x16x256xf32>
    %33 = vector.shape_cast %32 : vector<1x16x256xf32> to vector<16x256xf32>
    %34 = arith.addf %13, %33 : vector<16x256xf32>
    %35 = vector.extract_strided_slice %31 {offsets = [1, 0, 0], sizes = [1, 16, 256], strides = [1, 1, 1]} : vector<16x16x256xf32> to vector<1x16x256xf32>
    %36 = vector.shape_cast %35 : vector<1x16x256xf32> to vector<16x256xf32>
    %37 = arith.addf %34, %36 : vector<16x256xf32>
    %38 = vector.extract_strided_slice %31 {offsets = [2, 0, 0], sizes = [1, 16, 256], strides = [1, 1, 1]} : vector<16x16x256xf32> to vector<1x16x256xf32>
    %39 = vector.shape_cast %38 : vector<1x16x256xf32> to vector<16x256xf32>
    %40 = arith.addf %37, %39 : vector<16x256xf32>
    %41 = vector.extract_strided_slice %31 {offsets = [3, 0, 0], sizes = [1, 16, 256], strides = [1, 1, 1]} : vector<16x16x256xf32> to vector<1x16x256xf32>
    %42 = vector.shape_cast %41 : vector<1x16x256xf32> to vector<16x256xf32>
    %43 = arith.addf %40, %42 : vector<16x256xf32>
    %44 = vector.extract_strided_slice %31 {offsets = [4, 0, 0], sizes = [1, 16, 256], strides = [1, 1, 1]} : vector<16x16x256xf32> to vector<1x16x256xf32>
    %45 = vector.shape_cast %44 : vector<1x16x256xf32> to vector<16x256xf32>
    %46 = arith.addf %43, %45 : vector<16x256xf32>
    %47 = vector.extract_strided_slice %31 {offsets = [5, 0, 0], sizes = [1, 16, 256], strides = [1, 1, 1]} : vector<16x16x256xf32> to vector<1x16x256xf32>
    %48 = vector.shape_cast %47 : vector<1x16x256xf32> to vector<16x256xf32>
    %49 = arith.addf %46, %48 : vector<16x256xf32>
    %50 = vector.extract_strided_slice %31 {offsets = [6, 0, 0], sizes = [1, 16, 256], strides = [1, 1, 1]} : vector<16x16x256xf32> to vector<1x16x256xf32>
    %51 = vector.shape_cast %50 : vector<1x16x256xf32> to vector<16x256xf32>
    %52 = arith.addf %49, %51 : vector<16x256xf32>
    %53 = vector.extract_strided_slice %31 {offsets = [7, 0, 0], sizes = [1, 16, 256], strides = [1, 1, 1]} : vector<16x16x256xf32> to vector<1x16x256xf32>
    %54 = vector.shape_cast %53 : vector<1x16x256xf32> to vector<16x256xf32>
    %55 = arith.addf %52, %54 : vector<16x256xf32>
    %56 = vector.extract_strided_slice %31 {offsets = [8, 0, 0], sizes = [1, 16, 256], strides = [1, 1, 1]} : vector<16x16x256xf32> to vector<1x16x256xf32>
    %57 = vector.shape_cast %56 : vector<1x16x256xf32> to vector<16x256xf32>
    %58 = arith.addf %55, %57 : vector<16x256xf32>
    %59 = vector.extract_strided_slice %31 {offsets = [9, 0, 0], sizes = [1, 16, 256], strides = [1, 1, 1]} : vector<16x16x256xf32> to vector<1x16x256xf32>
    %60 = vector.shape_cast %59 : vector<1x16x256xf32> to vector<16x256xf32>
    %61 = arith.addf %58, %60 : vector<16x256xf32>
    %62 = vector.extract_strided_slice %31 {offsets = [10, 0, 0], sizes = [1, 16, 256], strides = [1, 1, 1]} : vector<16x16x256xf32> to vector<1x16x256xf32>
    %63 = vector.shape_cast %62 : vector<1x16x256xf32> to vector<16x256xf32>
    %64 = arith.addf %61, %63 : vector<16x256xf32>
    %65 = vector.extract_strided_slice %31 {offsets = [11, 0, 0], sizes = [1, 16, 256], strides = [1, 1, 1]} : vector<16x16x256xf32> to vector<1x16x256xf32>
    %66 = vector.shape_cast %65 : vector<1x16x256xf32> to vector<16x256xf32>
    %67 = arith.addf %64, %66 : vector<16x256xf32>
    %68 = vector.extract_strided_slice %31 {offsets = [12, 0, 0], sizes = [1, 16, 256], strides = [1, 1, 1]} : vector<16x16x256xf32> to vector<1x16x256xf32>
    %69 = vector.shape_cast %68 : vector<1x16x256xf32> to vector<16x256xf32>
    %70 = arith.addf %67, %69 : vector<16x256xf32>
    %71 = vector.extract_strided_slice %31 {offsets = [13, 0, 0], sizes = [1, 16, 256], strides = [1, 1, 1]} : vector<16x16x256xf32> to vector<1x16x256xf32>
    %72 = vector.shape_cast %71 : vector<1x16x256xf32> to vector<16x256xf32>
    %73 = arith.addf %70, %72 : vector<16x256xf32>
    %74 = vector.extract_strided_slice %31 {offsets = [14, 0, 0], sizes = [1, 16, 256], strides = [1, 1, 1]} : vector<16x16x256xf32> to vector<1x16x256xf32>
    %75 = vector.shape_cast %74 : vector<1x16x256xf32> to vector<16x256xf32>
    %76 = arith.addf %73, %75 : vector<16x256xf32>
    %77 = vector.extract_strided_slice %31 {offsets = [15, 0, 0], sizes = [1, 16, 256], strides = [1, 1, 1]} : vector<16x16x256xf32> to vector<1x16x256xf32>
    %78 = vector.shape_cast %77 : vector<1x16x256xf32> to vector<16x256xf32>
    %79 = arith.addf %76, %78 : vector<16x256xf32>
    %80 = arith.addf %12, %79 : vector<16x256xf32>
    %c0_13 = arith.constant 0 : index
    %c0_14 = arith.constant 0 : index
    %81 = vector.load %arg5[%c0_13, %c0_14] : memref<1x256xf32, #tpu.memory_space<vmem>>, vector<1x256xf32>
    %82 = vector.broadcast %81 : vector<1x256xf32> to vector<16x256xf32>
    %83 = arith.addf %80, %82 : vector<16x256xf32>
    %cst_15 = arith.constant 0.000000e+00 : f32
    %84 = vector.broadcast %cst_15 : f32 to vector<16x256xf32>
    %85 = arith.maximumf %83, %84 : vector<16x256xf32>
    %86 = arith.truncf %85 : vector<16x256xf32> to vector<16x256xbf16>
    %c0_16 = arith.constant 0 : index
    %c0_17 = arith.constant 0 : index
    %87 = vector.load %arg6[%c0_16, %c0_17] : memref<256x512xbf16, #tpu.memory_space<vmem>>, vector<256x512xbf16>
    %cst_18 = arith.constant dense<0.000000e+00> : vector<16x512xf32>
    %88 = tpu.matmul %86, %87, %cst_18 {dimension_numbers = #tpu.dot_dimension_numbers<[1], [0], [0], [1], [0, 0, 1, 1], [], []>} : vector<16x256xbf16>, vector<256x512xbf16>, vector<16x512xf32> -> vector<16x512xf32>
    %c0_19 = arith.constant 0 : index
    %c0_20 = arith.constant 0 : index
    %89 = vector.load %arg7[%c0_19, %c0_20] : memref<1x512xf32, #tpu.memory_space<vmem>>, vector<1x512xf32>
    %90 = vector.broadcast %89 : vector<1x512xf32> to vector<16x512xf32>
    %91 = arith.addf %88, %90 : vector<16x512xf32>
    %92 = vector.extract_strided_slice %91 {offsets = [0, 0], sizes = [16, 128], strides = [1, 1]} : vector<16x512xf32> to vector<16x128xf32>
    %93 = vector.extract_strided_slice %91 {offsets = [0, 128], sizes = [16, 128], strides = [1, 1]} : vector<16x512xf32> to vector<16x128xf32>
    %94 = vector.extract_strided_slice %91 {offsets = [0, 256], sizes = [16, 128], strides = [1, 1]} : vector<16x512xf32> to vector<16x128xf32>
    %95 = vector.extract_strided_slice %91 {offsets = [0, 384], sizes = [16, 128], strides = [1, 1]} : vector<16x512xf32> to vector<16x128xf32>
    %cst_21 = arith.constant 0.000000e+00 : f32
    %96 = vector.broadcast %cst_21 : f32 to vector<16x128xf32>
    %97 = vector.shape_cast %92 : vector<16x128xf32> to vector<1x16x128xf32>
    %98 = vector.shape_cast %93 : vector<16x128xf32> to vector<16x1x128xf32>
    %99 = vector.broadcast %97 : vector<1x16x128xf32> to vector<16x16x128xf32>
    %100 = vector.broadcast %98 : vector<16x1x128xf32> to vector<16x16x128xf32>
    %101 = arith.addf %99, %100 : vector<16x16x128xf32>
    %cst_22 = arith.constant 5.000000e-01 : f32
    %102 = vector.broadcast %cst_22 : f32 to vector<16x16x128xf32>
    %103 = arith.mulf %102, %101 : vector<16x16x128xf32>
    %104 = math.tanh %103 : vector<16x16x128xf32>
    %cst_23 = arith.constant 1.000000e+00 : f32
    %105 = vector.broadcast %cst_23 : f32 to vector<16x16x128xf32>
    %106 = arith.addf %104, %105 : vector<16x16x128xf32>
    %cst_24 = arith.constant 5.000000e-01 : f32
    %107 = vector.broadcast %cst_24 : f32 to vector<16x16x128xf32>
    %108 = arith.mulf %107, %106 : vector<16x16x128xf32>
    %109 = vector.shape_cast %94 : vector<16x128xf32> to vector<16x1x128xf32>
    %110 = vector.broadcast %109 : vector<16x1x128xf32> to vector<16x16x128xf32>
    %111 = arith.mulf %108, %110 : vector<16x16x128xf32>
    %112 = vector.shape_cast %3 : vector<16x16xf32> to vector<16x16x1xf32>
    %113 = vector.broadcast %112 : vector<16x16x1xf32> to vector<16x16x128xf32>
    %114 = arith.mulf %111, %113 : vector<16x16x128xf32>
    %115 = vector.extract_strided_slice %114 {offsets = [0, 0, 0], sizes = [1, 16, 128], strides = [1, 1, 1]} : vector<16x16x128xf32> to vector<1x16x128xf32>
    %116 = vector.shape_cast %115 : vector<1x16x128xf32> to vector<16x128xf32>
    %117 = arith.addf %96, %116 : vector<16x128xf32>
    %118 = vector.extract_strided_slice %114 {offsets = [1, 0, 0], sizes = [1, 16, 128], strides = [1, 1, 1]} : vector<16x16x128xf32> to vector<1x16x128xf32>
    %119 = vector.shape_cast %118 : vector<1x16x128xf32> to vector<16x128xf32>
    %120 = arith.addf %117, %119 : vector<16x128xf32>
    %121 = vector.extract_strided_slice %114 {offsets = [2, 0, 0], sizes = [1, 16, 128], strides = [1, 1, 1]} : vector<16x16x128xf32> to vector<1x16x128xf32>
    %122 = vector.shape_cast %121 : vector<1x16x128xf32> to vector<16x128xf32>
    %123 = arith.addf %120, %122 : vector<16x128xf32>
    %124 = vector.extract_strided_slice %114 {offsets = [3, 0, 0], sizes = [1, 16, 128], strides = [1, 1, 1]} : vector<16x16x128xf32> to vector<1x16x128xf32>
    %125 = vector.shape_cast %124 : vector<1x16x128xf32> to vector<16x128xf32>
    %126 = arith.addf %123, %125 : vector<16x128xf32>
    %127 = vector.extract_strided_slice %114 {offsets = [4, 0, 0], sizes = [1, 16, 128], strides = [1, 1, 1]} : vector<16x16x128xf32> to vector<1x16x128xf32>
    %128 = vector.shape_cast %127 : vector<1x16x128xf32> to vector<16x128xf32>
    %129 = arith.addf %126, %128 : vector<16x128xf32>
    %130 = vector.extract_strided_slice %114 {offsets = [5, 0, 0], sizes = [1, 16, 128], strides = [1, 1, 1]} : vector<16x16x128xf32> to vector<1x16x128xf32>
    %131 = vector.shape_cast %130 : vector<1x16x128xf32> to vector<16x128xf32>
    %132 = arith.addf %129, %131 : vector<16x128xf32>
    %133 = vector.extract_strided_slice %114 {offsets = [6, 0, 0], sizes = [1, 16, 128], strides = [1, 1, 1]} : vector<16x16x128xf32> to vector<1x16x128xf32>
    %134 = vector.shape_cast %133 : vector<1x16x128xf32> to vector<16x128xf32>
    %135 = arith.addf %132, %134 : vector<16x128xf32>
    %136 = vector.extract_strided_slice %114 {offsets = [7, 0, 0], sizes = [1, 16, 128], strides = [1, 1, 1]} : vector<16x16x128xf32> to vector<1x16x128xf32>
    %137 = vector.shape_cast %136 : vector<1x16x128xf32> to vector<16x128xf32>
    %138 = arith.addf %135, %137 : vector<16x128xf32>
    %139 = vector.extract_strided_slice %114 {offsets = [8, 0, 0], sizes = [1, 16, 128], strides = [1, 1, 1]} : vector<16x16x128xf32> to vector<1x16x128xf32>
    %140 = vector.shape_cast %139 : vector<1x16x128xf32> to vector<16x128xf32>
    %141 = arith.addf %138, %140 : vector<16x128xf32>
    %142 = vector.extract_strided_slice %114 {offsets = [9, 0, 0], sizes = [1, 16, 128], strides = [1, 1, 1]} : vector<16x16x128xf32> to vector<1x16x128xf32>
    %143 = vector.shape_cast %142 : vector<1x16x128xf32> to vector<16x128xf32>
    %144 = arith.addf %141, %143 : vector<16x128xf32>
    %145 = vector.extract_strided_slice %114 {offsets = [10, 0, 0], sizes = [1, 16, 128], strides = [1, 1, 1]} : vector<16x16x128xf32> to vector<1x16x128xf32>
    %146 = vector.shape_cast %145 : vector<1x16x128xf32> to vector<16x128xf32>
    %147 = arith.addf %144, %146 : vector<16x128xf32>
    %148 = vector.extract_strided_slice %114 {offsets = [11, 0, 0], sizes = [1, 16, 128], strides = [1, 1, 1]} : vector<16x16x128xf32> to vector<1x16x128xf32>
    %149 = vector.shape_cast %148 : vector<1x16x128xf32> to vector<16x128xf32>
    %150 = arith.addf %147, %149 : vector<16x128xf32>
    %151 = vector.extract_strided_slice %114 {offsets = [12, 0, 0], sizes = [1, 16, 128], strides = [1, 1, 1]} : vector<16x16x128xf32> to vector<1x16x128xf32>
    %152 = vector.shape_cast %151 : vector<1x16x128xf32> to vector<16x128xf32>
    %153 = arith.addf %150, %152 : vector<16x128xf32>
    %154 = vector.extract_strided_slice %114 {offsets = [13, 0, 0], sizes = [1, 16, 128], strides = [1, 1, 1]} : vector<16x16x128xf32> to vector<1x16x128xf32>
    %155 = vector.shape_cast %154 : vector<1x16x128xf32> to vector<16x128xf32>
    %156 = arith.addf %153, %155 : vector<16x128xf32>
    %157 = vector.extract_strided_slice %114 {offsets = [14, 0, 0], sizes = [1, 16, 128], strides = [1, 1, 1]} : vector<16x16x128xf32> to vector<1x16x128xf32>
    %158 = vector.shape_cast %157 : vector<1x16x128xf32> to vector<16x128xf32>
    %159 = arith.addf %156, %158 : vector<16x128xf32>
    %160 = vector.extract_strided_slice %114 {offsets = [15, 0, 0], sizes = [1, 16, 128], strides = [1, 1, 1]} : vector<16x16x128xf32> to vector<1x16x128xf32>
    %161 = vector.shape_cast %160 : vector<1x16x128xf32> to vector<16x128xf32>
    %162 = arith.addf %159, %161 : vector<16x128xf32>
    %163 = arith.addf %95, %162 : vector<16x128xf32>
    %c0_25 = arith.constant 0 : index
    %c0_26 = arith.constant 0 : index
    %164 = vector.load %arg8[%c0_25, %c0_26] : memref<1x128xf32, #tpu.memory_space<vmem>>, vector<1x128xf32>
    %165 = vector.broadcast %164 : vector<1x128xf32> to vector<16x128xf32>
    %166 = arith.addf %163, %165 : vector<16x128xf32>
    %cst_27 = arith.constant 0.000000e+00 : f32
    %167 = vector.broadcast %cst_27 : f32 to vector<16x128xf32>
    %168 = arith.maximumf %166, %167 : vector<16x128xf32>
    %169 = arith.truncf %168 : vector<16x128xf32> to vector<16x128xbf16>
    %c0_28 = arith.constant 0 : index
    %c0_29 = arith.constant 0 : index
    %170 = vector.load %arg9[%c0_28, %c0_29] : memref<128x128xbf16, #tpu.memory_space<vmem>>, vector<128x128xbf16>
    %cst_30 = arith.constant dense<0.000000e+00> : vector<16x128xf32>
    %171 = tpu.matmul %169, %170, %cst_30 {dimension_numbers = #tpu.dot_dimension_numbers<[1], [0], [0], [1], [0, 0, 1, 1], [], []>} : vector<16x128xbf16>, vector<128x128xbf16>, vector<16x128xf32> -> vector<16x128xf32>
    %c0_31 = arith.constant 0 : index
    %c0_32 = arith.constant 0 : index
    %172 = vector.load %arg10[%c0_31, %c0_32] : memref<1x128xf32, #tpu.memory_space<vmem>>, vector<1x128xf32>
    %173 = vector.broadcast %172 : vector<1x128xf32> to vector<16x128xf32>
    %174 = arith.addf %171, %173 : vector<16x128xf32>
    %cst_33 = arith.constant 0.000000e+00 : f32
    %175 = vector.broadcast %cst_33 : f32 to vector<16x128xf32>
    %176 = arith.maximumf %174, %175 : vector<16x128xf32>
    %177 = arith.truncf %176 : vector<16x128xf32> to vector<16x128xbf16>
    %c0_34 = arith.constant 0 : index
    %c0_35 = arith.constant 0 : index
    %178 = vector.load %arg11[%c0_34, %c0_35] : memref<128x128xbf16, #tpu.memory_space<vmem>>, vector<128x128xbf16>
    %cst_36 = arith.constant dense<0.000000e+00> : vector<16x128xf32>
    %179 = tpu.matmul %177, %178, %cst_36 {dimension_numbers = #tpu.dot_dimension_numbers<[1], [0], [0], [1], [0, 0, 1, 1], [], []>} : vector<16x128xbf16>, vector<128x128xbf16>, vector<16x128xf32> -> vector<16x128xf32>
    %c0_37 = arith.constant 0 : index
    %c0_38 = arith.constant 0 : index
    %180 = vector.load %arg12[%c0_37, %c0_38] : memref<1x128xf32, #tpu.memory_space<vmem>>, vector<1x128xf32>
    %181 = vector.broadcast %180 : vector<1x128xf32> to vector<16x128xf32>
    %182 = arith.addf %179, %181 : vector<16x128xf32>
    %cst_39 = arith.constant 0.000000e+00 : f32
    %183 = vector.broadcast %cst_39 : f32 to vector<16x128xf32>
    %184 = arith.maximumf %182, %183 : vector<16x128xf32>
    %c0_40 = arith.constant 0 : index
    %c0_41 = arith.constant 0 : index
    %c0_42 = arith.constant 0 : index
    %185 = vector.load %arg13[%c0_40, %c0_41, %c0_42] : memref<1x16x128xf32, #tpu.memory_space<vmem>>, vector<1x16x128xf32>
    %186 = vector.shape_cast %185 : vector<1x16x128xf32> to vector<16x128xf32>
    %187 = vector.shape_cast %184 : vector<16x128xf32> to vector<1x16x128xf32>
    tpu.vector_store %arg13[%c0_40, %c0_41, %c0_42], %187 {strides = array<i32>} : memref<1x16x128xf32, #tpu.memory_space<vmem>>, vector<1x16x128xf32>,
    return
  }
  func.func @transform_0(%arg0: i32) -> (i32, i32, i32) {
    %c0_i32 = arith.constant 0 : i32
    %c0_i32_0 = arith.constant 0 : i32
    %c0_i32_1 = arith.constant 0 : i32
    return %arg0, %c0_i32, %c0_i32_0 : i32, i32, i32
  }
  func.func @transform_1(%arg0: i32) -> (i32, i32, i32) {
    %c0_i32 = arith.constant 0 : i32
    %c0_i32_0 = arith.constant 0 : i32
    %c0_i32_1 = arith.constant 0 : i32
    return %arg0, %c0_i32, %c0_i32_0 : i32, i32, i32
  }
  func.func @transform_2(%arg0: i32) -> (i32, i32) {
    %c0_i32 = arith.constant 0 : i32
    %c0_i32_0 = arith.constant 0 : i32
    %c0_i32_1 = arith.constant 0 : i32
    return %c0_i32, %c0_i32_0 : i32, i32
  }
  func.func @transform_3(%arg0: i32) -> (i32, i32) {
    %c0_i32 = arith.constant 0 : i32
    %c0_i32_0 = arith.constant 0 : i32
    %c0_i32_1 = arith.constant 0 : i32
    return %c0_i32, %c0_i32_0 : i32, i32
  }
  func.func @transform_4(%arg0: i32) -> (i32, i32) {
    %c0_i32 = arith.constant 0 : i32
    %c0_i32_0 = arith.constant 0 : i32
    %c0_i32_1 = arith.constant 0 : i32
    return %c0_i32, %c0_i32_0 : i32, i32
  }
  func.func @transform_5(%arg0: i32) -> (i32, i32) {
    %c0_i32 = arith.constant 0 : i32
    %c0_i32_0 = arith.constant 0 : i32
    %c0_i32_1 = arith.constant 0 : i32
    return %c0_i32, %c0_i32_0 : i32, i32
  }
  func.func @transform_6(%arg0: i32) -> (i32, i32) {
    %c0_i32 = arith.constant 0 : i32
    %c0_i32_0 = arith.constant 0 : i32
    %c0_i32_1 = arith.constant 0 : i32
    return %c0_i32, %c0_i32_0 : i32, i32
  }
  func.func @transform_7(%arg0: i32) -> (i32, i32) {
    %c0_i32 = arith.constant 0 : i32
    %c0_i32_0 = arith.constant 0 : i32
    %c0_i32_1 = arith.constant 0 : i32
    return %c0_i32, %c0_i32_0 : i32, i32
  }
  func.func @transform_8(%arg0: i32) -> (i32, i32) {
    %c0_i32 = arith.constant 0 : i32
    %c0_i32_0 = arith.constant 0 : i32
    %c0_i32_1 = arith.constant 0 : i32
    return %c0_i32, %c0_i32_0 : i32, i32
  }
  func.func @transform_9(%arg0: i32) -> (i32, i32) {
    %c0_i32 = arith.constant 0 : i32
    %c0_i32_0 = arith.constant 0 : i32
    %c0_i32_1 = arith.constant 0 : i32
    return %c0_i32, %c0_i32_0 : i32, i32
  }
  func.func @transform_10(%arg0: i32) -> (i32, i32) {
    %c0_i32 = arith.constant 0 : i32
    %c0_i32_0 = arith.constant 0 : i32
    %c0_i32_1 = arith.constant 0 : i32
    return %c0_i32, %c0_i32_0 : i32, i32
  }
  func.func @transform_11(%arg0: i32) -> (i32, i32) {
    %c0_i32 = arith.constant 0 : i32
    %c0_i32_0 = arith.constant 0 : i32
    %c0_i32_1 = arith.constant 0 : i32
    return %c0_i32, %c0_i32_0 : i32, i32
  }
  func.func @transform_12(%arg0: i32) -> (i32, i32, i32) {
    %c0_i32 = arith.constant 0 : i32
    %c0_i32_0 = arith.constant 0 : i32
    %c0_i32_1 = arith.constant 0 : i32
    return %arg0, %c0_i32, %c0_i32_0 : i32, i32, i32
  }
}

</mosaic_0001>

<llo_original>
// kernel: pos_decoder_forward.1
$region0: #{pos_decoder_forward.1}
  #allocation0 [shape = 'u32[]', space=smem, size = 0x4, offset = 0x4, fixed_abs, tag = 'smem constant byte address 0x4 - core index']
  #allocation1 [shape = 'u32[144,128]{1,0:T(1,128)}', space=vmem, size = 0x12000, scoped, tag = 'internal scratch']
  %s0 = inlined_call_operand.vmem [shape: bf16[4,16,32], index: 0, kind: input, shape index: {}]
  %s1 = inlined_call_operand.vmem [shape: f32[4,16,16], index: 1, kind: input, shape index: {}]
  %s2 = inlined_call_operand.vmem [shape: bf16[32,1024], index: 2, kind: input, shape index: {}]
  %s3 = inlined_call_operand.hbm [shape: f32[1,1024], index: 3, kind: input, shape index: {}]
  %s4 = inlined_call_operand.vmem [shape: f32[1,256], index: 4, kind: input, shape index: {}]
  %s5 = inlined_call_operand.hbm [shape: bf16[256,512], index: 5, kind: input, shape index: {}]
  %s6 = inlined_call_operand.hbm [shape: f32[1,512], index: 6, kind: input, shape index: {}]
  %s7 = inlined_call_operand.hbm [shape: f32[1,128], index: 7, kind: input, shape index: {}]
  %s8 = inlined_call_operand.vmem [shape: bf16[128,128], index: 8, kind: input, shape index: {}]
  %s9 = inlined_call_operand.hbm [shape: f32[1,128], index: 9, kind: input, shape index: {}]
  %s10 = inlined_call_operand.vmem [shape: bf16[128,128], index: 10, kind: input, shape index: {}]
  %s11 = inlined_call_operand.hbm [shape: f32[1,128], index: 11, kind: input, shape index: {}]
  %s12 = inlined_call_operand.vmem [shape: f32[4,16,128], index: 12, kind: output, shape index: {}]
  %s13 = sld [smem:[#allocation0]]
  $region105: #{pos_decoder_forward.1} parent=0
    _
  %s15 = ssub.s32 1, %s13
  %s16 = scalar_select 0, %s15, %s13
  $region1: #{pos_decoder_forward.1} parent=0
    #allocation2 [shape = 'u8[4096]{0}', space=vmem, size = 0x1000, scoped, tag = 'input window, operand 3, single buffered']
    #allocation3 [shape = 's32[2]{0}', space=sflag, size = 0x8, scoped, tag = 'scoped memory for pos_decoder_forward.1']
    #allocation4 [shape = 'u8[262144]{0}', space=vmem, size = 0x40000, scoped, tag = 'input window, operand 5, single buffered']
    #allocation5 [shape = 's32[1]{0}', space=sflag, size = 0x4, scoped, tag = 'scoped memory for pos_decoder_forward.1']
    #allocation6 [shape = 'u8[2048]{0}', space=vmem, size = 0x800, scoped, tag = 'input window, operand 6, single buffered']
    #allocation7 [shape = 'u8[512]{0}', space=vmem, size = 0x400, scoped, tag = 'input window, operand 7, single buffered']
    #allocation8 [shape = 's32[1]{0}', space=sflag, size = 0x4, scoped, tag = 'scoped memory for pos_decoder_forward.1']
    #allocation9 [shape = 'u8[512]{0}', space=vmem, size = 0x400, scoped, tag = 'input window, operand 9, single buffered']
    #allocation10 [shape = 'u8[512]{0}', space=vmem, size = 0x400, scoped, tag = 'input window, operand 11, single buffered']
    #allocation11 [shape = 's32[1]{0}', space=sflag, size = 0x4, scoped, tag = 'scoped memory for pos_decoder_forward.1']
    %17 = vsyncpa [#allocation3], 0
    %18 = vsyncpa [#allocation5], 0
    %19 = vsyncpa [#allocation8], 0
    %20 = vsyncpa [#allocation11], 0
    loop: start=0, step=1, limit=6
    $region2: #{pos_decoder_forward.1} parent=1 // loop_pre_header
      _
    $region3: #{pos_decoder_forward.1} parent=1 // loop_header
      %s22 = sphi 0, %s26
      %p23 = scmp.ge.s32.totalorder %s22, 6
      %s32 = sphi 0, %s34
      %s35 = sphi 0, %s32
      %s36 = sphi 0, %s35
      %s52 = sphi 0, %s36
      %s58 = sphi 0, %s60
      %s61 = sphi 0, %s58
      %s62 = sphi 0, %s61
      %s78 = sphi 0, %s62
      %s82 = sphi 0, %s82
      %s84 = sphi 0, %s82
      %s85 = sphi 0, %s84
      %s99 = sphi 0, %s85
      %s103 = sphi 0, %s103
      %s105 = sphi 0, %s103
      %s106 = sphi 0, %s105
      %s120 = sphi 0, %s106
      %s124 = sphi 0, %s124
      %s126 = sphi 0, %s124
      %s127 = sphi 0, %s126
      %s141 = sphi 0, %s127
      %s145 = sphi 0, %s145
      %s147 = sphi 0, %s145
      %s148 = sphi 0, %s147
      %s162 = sphi 0, %s148
      %s166 = sphi 0, %s166
      %s168 = sphi 0, %s166
      %s169 = sphi 0, %s168
      %s183 = sphi 0, %s169
      %s187 = sphi 0, %s187
      %s189 = sphi 0, %s187
      %s190 = sphi 0, %s189
      %s204 = sphi 0, %s190
      %s208 = sphi 0, %s208
      %s210 = sphi 0, %s208
      %s211 = sphi 0, %s210
      %s225 = sphi 0, %s211
      %s229 = sphi 0, %s229
      %s231 = sphi 0, %s229
      %s232 = sphi 0, %s231
      %s246 = sphi 0, %s232
      %s250 = sphi 0, %s250
      %s252 = sphi 0, %s250
      %s253 = sphi 0, %s252
      %s267 = sphi 0, %s253
      %s271 = sphi 0, %s271
      %s273 = sphi 0, %s271
      %s274 = sphi 0, %s273
      %s288 = sphi 0, %s274
      %s294 = sphi 0, %s296
      %s297 = sphi 0, %s294
      %s298 = sphi 0, %s297
      %s314 = sphi 0, %s298
    $region4: #{pos_decoder_forward.1} parent=1 // loop_header_branch
      %25 = sbr.rel (%p23) target = $region8
    $region5: #{pos_decoder_forward.1} parent=1 // loop_body
      %s27 = ssub.s32 %s22, 1
      %s28 = ssub.s32 %s22, 2
      %s29 = sadd.s32 %s22, 1
      %s30 = ssub.s32 %s22, %s29
      %p31 = scmp.eq.s32.totalorder %s30, 0
      %s33 = sadd.s32 %s32, 1
      %s34 = scalar_select %p31, %s32, %s33
      %p37 = pneg %p31
      %p38 = scmp.eq.s32.totalorder %s22, 3
      %p39 = por %p37, %p38
      %p40 = scmp.ne.s32.totalorder %s32, %s35
      %p41 = scmp.eq.s32.totalorder %s22, 0
      %p42 = por %p40, %p41
      %p43 = scmp.ne.s32.totalorder %s32, %s35
      %p44 = scmp.eq.s32.totalorder %s27, 3
      %p45 = por %p43, %p44
      %p46 = scmp.ne.s32.totalorder %s35, %s36
      %p47 = scmp.eq.s32.totalorder %s27, 0
      %p48 = por %p46, %p47
      %p49 = scmp.ne.s32.totalorder %s35, %s36
      %p50 = scmp.eq.s32.totalorder %s28, 3
      %p51 = por %p49, %p50
      %p53 = scmp.ne.s32.totalorder %s36, %s52
      %p54 = scmp.eq.s32.totalorder %s28, 0
      %p55 = por %p53, %p54
      %s56 = ssub.s32 %s22, %s29
      %p57 = scmp.eq.s32.totalorder %s56, 0
      %s59 = sadd.s32 %s58, 1
      %s60 = scalar_select %p57, %s58, %s59
      %p63 = pneg %p57
      %p64 = scmp.eq.s32.totalorder %s22, 3
      %p65 = por %p63, %p64
      %p66 = scmp.ne.s32.totalorder %s58, %s61
      %p67 = scmp.eq.s32.totalorder %s22, 0
      %p68 = por %p66, %p67
      %p69 = scmp.ne.s32.totalorder %s58, %s61
      %p70 = scmp.eq.s32.totalorder %s27, 3
      %p71 = por %p69, %p70
      %p72 = scmp.ne.s32.totalorder %s61, %s62
      %p73 = scmp.eq.s32.totalorder %s27, 0
      %p74 = por %p72, %p73
      %p75 = scmp.ne.s32.totalorder %s61, %s62
      %p76 = scmp.eq.s32.totalorder %s28, 3
      %p77 = por %p75, %p76
      %p79 = scmp.ne.s32.totalorder %s62, %s78
      %p80 = scmp.eq.s32.totalorder %s28, 0
      %p81 = por %p79, %p80
      %s83 = sadd.s32 %s82, 1
      %p86 = scmp.eq.s32.totalorder %s22, 3
      %p87 = scmp.ne.s32.totalorder %s82, %s84
      %p88 = scmp.eq.s32.totalorder %s22, 0
      %p89 = por %p87, %p88
      %p90 = scmp.ne.s32.totalorder %s82, %s84
      %p91 = scmp.eq.s32.totalorder %s27, 3
      %p92 = por %p90, %p91
      %p93 = scmp.ne.s32.totalorder %s84, %s85
      %p94 = scmp.eq.s32.totalorder %s27, 0
      %p95 = por %p93, %p94
      %p96 = scmp.ne.s32.totalorder %s84, %s85
      %p97 = scmp.eq.s32.totalorder %s28, 3
      %p98 = por %p96, %p97
      %p100 = scmp.ne.s32.totalorder %s85, %s99
      %p101 = scmp.eq.s32.totalorder %s28, 0
      %p102 = por %p100, %p101
      %s104 = sadd.s32 %s103, 1
      %p107 = scmp.eq.s32.totalorder %s22, 3
      %p108 = scmp.ne.s32.totalorder %s103, %s105
      %p109 = scmp.eq.s32.totalorder %s22, 0
      %p110 = por %p108, %p109
      %p111 = scmp.ne.s32.totalorder %s103, %s105
      %p112 = scmp.eq.s32.totalorder %s27, 3
      %p113 = por %p111, %p112
      %p114 = scmp.ne.s32.totalorder %s105, %s106
      %p115 = scmp.eq.s32.totalorder %s27, 0
      %p116 = por %p114, %p115
      %p117 = scmp.ne.s32.totalorder %s105, %s106
      %p118 = scmp.eq.s32.totalorder %s28, 3
      %p119 = por %p117, %p118
      %p121 = scmp.ne.s32.totalorder %s106, %s120
      %p122 = scmp.eq.s32.totalorder %s28, 0
      %p123 = por %p121, %p122
      %s125 = sadd.s32 %s124, 1
      %p128 = scmp.eq.s32.totalorder %s22, 3
      %p129 = scmp.ne.s32.totalorder %s124, %s126
      %p130 = scmp.eq.s32.totalorder %s22, 0
      %p131 = por %p129, %p130
      %p132 = scmp.ne.s32.totalorder %s124, %s126
      %p133 = scmp.eq.s32.totalorder %s27, 3
      %p134 = por %p132, %p133
      %p135 = scmp.ne.s32.totalorder %s126, %s127
      %p136 = scmp.eq.s32.totalorder %s27, 0
      %p137 = por %p135, %p136
      %p138 = scmp.ne.s32.totalorder %s126, %s127
      %p139 = scmp.eq.s32.totalorder %s28, 3
      %p140 = por %p138, %p139
      %p142 = scmp.ne.s32.totalorder %s127, %s141
      %p143 = scmp.eq.s32.totalorder %s28, 0
      %p144 = por %p142, %p143
      %s146 = sadd.s32 %s145, 1
      %p149 = scmp.eq.s32.totalorder %s22, 3
      %p150 = scmp.ne.s32.totalorder %s145, %s147
      %p151 = scmp.eq.s32.totalorder %s22, 0
      %p152 = por %p150, %p151
      %p153 = scmp.ne.s32.totalorder %s145, %s147
      %p154 = scmp.eq.s32.totalorder %s27, 3
      %p155 = por %p153, %p154
      %p156 = scmp.ne.s32.totalorder %s147, %s148
      %p157 = scmp.eq.s32.totalorder %s27, 0
      %p158 = por %p156, %p157
      %p159 = scmp.ne.s32.totalorder %s147, %s148
      %p160 = scmp.eq.s32.totalorder %s28, 3
      %p161 = por %p159, %p160
      %p163 = scmp.ne.s32.totalorder %s148, %s162
      %p164 = scmp.eq.s32.totalorder %s28, 0
      %p165 = por %p163, %p164
      %s167 = sadd.s32 %s166, 1
      %p170 = scmp.eq.s32.totalorder %s22, 3
      %p171 = scmp.ne.s32.totalorder %s166, %s168
      %p172 = scmp.eq.s32.totalorder %s22, 0
      %p173 = por %p171, %p172
      %p174 = scmp.ne.s32.totalorder %s166, %s168
      %p175 = scmp.eq.s32.totalorder %s27, 3
      %p176 = por %p174, %p175
      %p177 = scmp.ne.s32.totalorder %s168, %s169
      %p178 = scmp.eq.s32.totalorder %s27, 0
      %p179 = por %p177, %p178
      %p180 = scmp.ne.s32.totalorder %s168, %s169
      %p181 = scmp.eq.s32.totalorder %s28, 3
      %p182 = por %p180, %p181
      %p184 = scmp.ne.s32.totalorder %s169, %s183
      %p185 = scmp.eq.s32.totalorder %s28, 0
      %p186 = por %p184, %p185
      %s188 = sadd.s32 %s187, 1
      %p191 = scmp.eq.s32.totalorder %s22, 3
      %p192 = scmp.ne.s32.totalorder %s187, %s189
      %p193 = scmp.eq.s32.totalorder %s22, 0
      %p194 = por %p192, %p193
      %p195 = scmp.ne.s32.totalorder %s187, %s189
      %p196 = scmp.eq.s32.totalorder %s27, 3
      %p197 = por %p195, %p196
      %p198 = scmp.ne.s32.totalorder %s189, %s190
      %p199 = scmp.eq.s32.totalorder %s27, 0
      %p200 = por %p198, %p199
      %p201 = scmp.ne.s32.totalorder %s189, %s190
      %p202 = scmp.eq.s32.totalorder %s28, 3
      %p203 = por %p201, %p202
      %p205 = scmp.ne.s32.totalorder %s190, %s204
      %p206 = scmp.eq.s32.totalorder %s28, 0
      %p207 = por %p205, %p206
      %s209 = sadd.s32 %s208, 1
      %p212 = scmp.eq.s32.totalorder %s22, 3
      %p213 = scmp.ne.s32.totalorder %s208, %s210
      %p214 = scmp.eq.s32.totalorder %s22, 0
      %p215 = por %p213, %p214
      %p216 = scmp.ne.s32.totalorder %s208, %s210
      %p217 = scmp.eq.s32.totalorder %s27, 3
      %p218 = por %p216, %p217
      %p219 = scmp.ne.s32.totalorder %s210, %s211
      %p220 = scmp.eq.s32.totalorder %s27, 0
      %p221 = por %p219, %p220
      %p222 = scmp.ne.s32.totalorder %s210, %s211
      %p223 = scmp.eq.s32.totalorder %s28, 3
      %p224 = por %p222, %p223
      %p226 = scmp.ne.s32.totalorder %s211, %s225
      %p227 = scmp.eq.s32.totalorder %s28, 0
      %p228 = por %p226, %p227
      %s230 = sadd.s32 %s229, 1
      %p233 = scmp.eq.s32.totalorder %s22, 3
      %p234 = scmp.ne.s32.totalorder %s229, %s231
      %p235 = scmp.eq.s32.totalorder %s22, 0
      %p236 = por %p234, %p235
      %p237 = scmp.ne.s32.totalorder %s229, %s231
      %p238 = scmp.eq.s32.totalorder %s27, 3
      %p239 = por %p237, %p238
      %p240 = scmp.ne.s32.totalorder %s231, %s232
      %p241 = scmp.eq.s32.totalorder %s27, 0
      %p242 = por %p240, %p241
      %p243 = scmp.ne.s32.totalorder %s231, %s232
      %p244 = scmp.eq.s32.totalorder %s28, 3
      %p245 = por %p243, %p244
      %p247 = scmp.ne.s32.totalorder %s232, %s246
      %p248 = scmp.eq.s32.totalorder %s28, 0
      %p249 = por %p247, %p248
      %s251 = sadd.s32 %s250, 1
      %p254 = scmp.eq.s32.totalorder %s22, 3
      %p255 = scmp.ne.s32.totalorder %s250, %s252
      %p256 = scmp.eq.s32.totalorder %s22, 0
      %p257 = por %p255, %p256
      %p258 = scmp.ne.s32.totalorder %s250, %s252
      %p259 = scmp.eq.s32.totalorder %s27, 3
      %p260 = por %p258, %p259
      %p261 = scmp.ne.s32.totalorder %s252, %s253
      %p262 = scmp.eq.s32.totalorder %s27, 0
      %p263 = por %p261, %p262
      %p264 = scmp.ne.s32.totalorder %s252, %s253
      %p265 = scmp.eq.s32.totalorder %s28, 3
      %p266 = por %p264, %p265
      %p268 = scmp.ne.s32.totalorder %s253, %s267
      %p269 = scmp.eq.s32.totalorder %s28, 0
      %p270 = por %p268, %p269
      %s272 = sadd.s32 %s271, 1
      %p275 = scmp.eq.s32.totalorder %s22, 3
      %p276 = scmp.ne.s32.totalorder %s271, %s273
      %p277 = scmp.eq.s32.totalorder %s22, 0
      %p278 = por %p276, %p277
      %p279 = scmp.ne.s32.totalorder %s271, %s273
      %p280 = scmp.eq.s32.totalorder %s27, 3
      %p281 = por %p279, %p280
      %p282 = scmp.ne.s32.totalorder %s273, %s274
      %p283 = scmp.eq.s32.totalorder %s27, 0
      %p284 = por %p282, %p283
      %p285 = scmp.ne.s32.totalorder %s273, %s274
      %p286 = scmp.eq.s32.totalorder %s28, 3
      %p287 = por %p285, %p286
      %p289 = scmp.ne.s32.totalorder %s274, %s288
      %p290 = scmp.eq.s32.totalorder %s28, 0
      %p291 = por %p289, %p290
      %s292 = ssub.s32 %s22, %s29
      %p293 = scmp.eq.s32.totalorder %s292, 0
      %s295 = sadd.s32 %s294, 1
      %s296 = scalar_select %p293, %s294, %s295
      %p299 = pneg %p293
      %p300 = scmp.eq.s32.totalorder %s22, 3
      %p301 = por %p299, %p300
      %p302 = scmp.ne.s32.totalorder %s294, %s297
      %p303 = scmp.eq.s32.totalorder %s22, 0
      %p304 = por %p302, %p303
      %p305 = scmp.ne.s32.totalorder %s294, %s297
      %p306 = scmp.eq.s32.totalorder %s27, 3
      %p307 = por %p305, %p306
      %p308 = scmp.ne.s32.totalorder %s297, %s298
      %p309 = scmp.eq.s32.totalorder %s27, 0
      %p310 = por %p308, %p309
      %p311 = scmp.ne.s32.totalorder %s297, %s298
      %p312 = scmp.eq.s32.totalorder %s28, 3
      %p313 = por %p311, %p312
      %p315 = scmp.ne.s32.totalorder %s298, %s314
      %p316 = scmp.eq.s32.totalorder %s28, 0
      %p317 = por %p315, %p316
      %p318 = scmp.le.s32.totalorder 1, %s22
      %p319 = scmp.lt.s32.totalorder %s22, 5
      %p320 = pnand %p318, %p319
      %p321 = pneg %p320
      // Predicated region
      $region9: #{pos_decoder_forward.1} parent=5 // pred_check
        _
      $region10: #{pos_decoder_forward.1} parent=5 // pred_check_branch
        %323 = sbr.rel (%p320) target = $region12
      $region11: #{pos_decoder_forward.1} parent=5 // pred_region
        %s324 = ssub.s32 %s22, 1
        // Predicated region
        $region13: #{pos_decoder_forward.1} parent=11 // pred_check
          %p325 = pneg %p95
        $region14: #{pos_decoder_forward.1} parent=11 // pred_check_branch
          %327 = sbr.rel (%p325) target = $region16
        $region15: #{pos_decoder_forward.1} parent=11 // pred_region
          _
        $region16: #{pos_decoder_forward.1} parent=11 // pred_fallthru
          _
        // Predicated region
        $region17: #{pos_decoder_forward.1} parent=11 // pred_check
          %p328 = pneg %p116
        $region18: #{pos_decoder_forward.1} parent=11 // pred_check_branch
          %330 = sbr.rel (%p328) target = $region20
        $region19: #{pos_decoder_forward.1} parent=11 // pred_region
          %s332 = ssub.s32 128, 128
          %333 = vsyncadd [#allocation3], %s332
          %s335 = sshll.u32 [#allocation2], 4
          %s336 = int_to_ptr.vmem [resolvable:$true] %s335
          %338 = dma.hbm_to_vmem [thread:$0]  %s3, 128, %s336, [#allocation3]
        $region20: #{pos_decoder_forward.1} parent=11 // pred_fallthru
          _
        // Predicated region
        $region21: #{pos_decoder_forward.1} parent=11 // pred_check
          %p339 = pneg %p137
        $region22: #{pos_decoder_forward.1} parent=11 // pred_check_branch
          %341 = sbr.rel (%p339) target = $region24
        $region23: #{pos_decoder_forward.1} parent=11 // pred_region
          _
        $region24: #{pos_decoder_forward.1} parent=11 // pred_fallthru
          _
        // Predicated region
        $region25: #{pos_decoder_forward.1} parent=11 // pred_check
          %p342 = pneg %p158
        $region26: #{pos_decoder_forward.1} parent=11 // pred_check_branch
          %344 = sbr.rel (%p342) target = $region28
        $region27: #{pos_decoder_forward.1} parent=11 // pred_region
          %s346 = ssub.s32 8192, 8192
          %347 = vsyncadd [#allocation5], %s346
          %s348 = sshll.u32 [#allocation4], 4
          %s349 = int_to_ptr.vmem [resolvable:$true] %s348
          %354 = dma.hbm_to_vmem [thread:$0]  %s5, 8192, %s349, [#allocation5], 256, 256, 16
        $region28: #{pos_decoder_forward.1} parent=11 // pred_fallthru
          _
        // Predicated region
        $region29: #{pos_decoder_forward.1} parent=11 // pred_check
          %p355 = pneg %p179
        $region30: #{pos_decoder_forward.1} parent=11 // pred_check_branch
          %357 = sbr.rel (%p355) target = $region32
        $region31: #{pos_decoder_forward.1} parent=11 // pred_region
          %s359 = ssub.s32 64, 64
          %360 = vsyncadd [#allocation5], %s359
          %s362 = sshll.u32 [#allocation6], 4
          %s363 = int_to_ptr.vmem [resolvable:$true] %s362
          %365 = dma.hbm_to_vmem [thread:$0]  %s6, 64, %s363, [#allocation5]
        $region32: #{pos_decoder_forward.1} parent=11 // pred_fallthru
          _
        // Predicated region
        $region33: #{pos_decoder_forward.1} parent=11 // pred_check
          %p366 = pneg %p200
        $region34: #{pos_decoder_forward.1} parent=11 // pred_check_branch
          %368 = sbr.rel (%p366) target = $region36
        $region35: #{pos_decoder_forward.1} parent=11 // pred_region
          %s370 = ssub.s32 16, 16
          %371 = vsyncadd [#allocation8], %s370
          %s373 = sshll.u32 [#allocation7], 4
          %s374 = int_to_ptr.vmem [resolvable:$true] %s373
          %376 = dma.hbm_to_vmem [thread:$0]  %s7, 16, %s374, [#allocation8]
        $region36: #{pos_decoder_forward.1} parent=11 // pred_fallthru
          _
        // Predicated region
        $region37: #{pos_decoder_forward.1} parent=11 // pred_check
          %p377 = pneg %p221
        $region38: #{pos_decoder_forward.1} parent=11 // pred_check_branch
          %379 = sbr.rel (%p377) target = $region40
        $region39: #{pos_decoder_forward.1} parent=11 // pred_region
          _
        $region40: #{pos_decoder_forward.1} parent=11 // pred_fallthru
          _
        // Predicated region
        $region41: #{pos_decoder_forward.1} parent=11 // pred_check
          %p380 = pneg %p242
        $region42: #{pos_decoder_forward.1} parent=11 // pred_check_branch
          %382 = sbr.rel (%p380) target = $region44
        $region43: #{pos_decoder_forward.1} parent=11 // pred_region
          %s384 = ssub.s32 16, 16
          %385 = vsyncadd [#allocation8], %s384
          %s387 = sshll.u32 [#allocation9], 4
          %s388 = int_to_ptr.vmem [resolvable:$true] %s387
          %390 = dma.hbm_to_vmem [thread:$0]  %s9, 16, %s388, [#allocation8]
        $region44: #{pos_decoder_forward.1} parent=11 // pred_fallthru
          _
        // Predicated region
        $region45: #{pos_decoder_forward.1} parent=11 // pred_check
          %p391 = pneg %p263
        $region46: #{pos_decoder_forward.1} parent=11 // pred_check_branch
          %393 = sbr.rel (%p391) target = $region48
        $region47: #{pos_decoder_forward.1} parent=11 // pred_region
          _
        $region48: #{pos_decoder_forward.1} parent=11 // pred_fallthru
          _
        // Predicated region
        $region49: #{pos_decoder_forward.1} parent=11 // pred_check
          %p394 = pneg %p284
        $region50: #{pos_decoder_forward.1} parent=11 // pred_check_branch
          %396 = sbr.rel (%p394) target = $region52
        $region51: #{pos_decoder_forward.1} parent=11 // pred_region
          %s398 = ssub.s32 16, 16
          %399 = vsyncadd [#allocation11], %s398
          %s401 = sshll.u32 [#allocation10], 4
          %s402 = int_to_ptr.vmem [resolvable:$true] %s401
          %404 = dma.hbm_to_vmem [thread:$0]  %s11, 16, %s402, [#allocation11]
        $region52: #{pos_decoder_forward.1} parent=11 // pred_fallthru
          _
      $region12: #{pos_decoder_forward.1} parent=5 // pred_fallthru
        _
      %p405 = scmp.lt.s32.totalorder %s22, 4
      // Predicated region
      $region53: #{pos_decoder_forward.1} parent=5 // pred_check
        %p406 = pneg %p405
      $region54: #{pos_decoder_forward.1} parent=5 // pred_check_branch
        %408 = sbr.rel (%p406) target = $region56
      $region55: #{pos_decoder_forward.1} parent=5 // pred_region
        // Predicated region
        $region57: #{pos_decoder_forward.1} parent=55 // pred_check
          %p409 = pneg %p42
        $region58: #{pos_decoder_forward.1} parent=55 // pred_check_branch
          %411 = sbr.rel (%p409) target = $region60
        $region59: #{pos_decoder_forward.1} parent=55 // pred_region
          %p412 = scmp.lt.s32.totalorder %s22, 3
          %s413 = scalar_select %p412, %s22, 3
          %s414 = smul.addr %s413, 2
          %s415 = smul.addr %s414, 4
          %s416 = scalar_lea.vmem %s0, %s415
        $region60: #{pos_decoder_forward.1} parent=55 // pred_fallthru
          _
        // Predicated region
        $region61: #{pos_decoder_forward.1} parent=55 // pred_check
          %p417 = pneg %p68
        $region62: #{pos_decoder_forward.1} parent=55 // pred_check_branch
          %419 = sbr.rel (%p417) target = $region64
        $region63: #{pos_decoder_forward.1} parent=55 // pred_region
          %p420 = scmp.lt.s32.totalorder %s22, 3
          %s421 = scalar_select %p420, %s22, 3
          %s422 = smul.addr %s421, 2
          %s423 = smul.addr %s422, 8
          %s424 = scalar_lea.vmem %s1, %s423
        $region64: #{pos_decoder_forward.1} parent=55 // pred_fallthru
          _
      $region56: #{pos_decoder_forward.1} parent=5 // pred_fallthru
        _
      %p425 = scmp.le.s32.totalorder 1, %s22
      %p426 = scmp.lt.s32.totalorder %s22, 5
      %p427 = pnand %p425, %p426
      %p428 = pneg %p427
      // Predicated region
      $region65: #{pos_decoder_forward.1} parent=5 // pred_check
        _
      $region66: #{pos_decoder_forward.1} parent=5 // pred_check_branch
        %430 = sbr.rel (%p427) target = $region68
      $region67: #{pos_decoder_forward.1} parent=5 // pred_region
        %s431 = ssub.s32 %s22, 1
        // Predicated region
        $region69: #{pos_decoder_forward.1} parent=67 // pred_check
          %p432 = pneg %p116
        $region70: #{pos_decoder_forward.1} parent=67 // pred_check_branch
          %434 = sbr.rel (%p432) target = $region72
        $region71: #{pos_decoder_forward.1} parent=67 // pred_region
          %435 = dma.done [#allocation3], 128
        $region72: #{pos_decoder_forward.1} parent=67 // pred_fallthru
          _
        // Predicated region
        $region73: #{pos_decoder_forward.1} parent=67 // pred_check
          %p436 = pneg %p158
        $region74: #{pos_decoder_forward.1} parent=67 // pred_check_branch
          %438 = sbr.rel (%p436) target = $region76
        $region75: #{pos_decoder_forward.1} parent=67 // pred_region
          %439 = dma.done [#allocation5], 8192
        $region76: #{pos_decoder_forward.1} parent=67 // pred_fallthru
          _
        // Predicated region
        $region77: #{pos_decoder_forward.1} parent=67 // pred_check
          %p440 = pneg %p179
        $region78: #{pos_decoder_forward.1} parent=67 // pred_check_branch
          %442 = sbr.rel (%p440) target = $region80
        $region79: #{pos_decoder_forward.1} parent=67 // pred_region
          %443 = dma.done [#allocation5], 64
        $region80: #{pos_decoder_forward.1} parent=67 // pred_fallthru
          _
        // Predicated region
        $region81: #{pos_decoder_forward.1} parent=67 // pred_check
          %p444 = pneg %p200
        $region82: #{pos_decoder_forward.1} parent=67 // pred_check_branch
          %446 = sbr.rel (%p444) target = $region84
        $region83: #{pos_decoder_forward.1} parent=67 // pred_region
          %447 = dma.done [#allocation8], 16
        $region84: #{pos_decoder_forward.1} parent=67 // pred_fallthru
          _
        // Predicated region
        $region85: #{pos_decoder_forward.1} parent=67 // pred_check
          %p448 = pneg %p242
        $region86: #{pos_decoder_forward.1} parent=67 // pred_check_branch
          %450 = sbr.rel (%p448) target = $region88
        $region87: #{pos_decoder_forward.1} parent=67 // pred_region
          %451 = dma.done [#allocation8], 16
        $region88: #{pos_decoder_forward.1} parent=67 // pred_fallthru
          _
        // Predicated region
        $region89: #{pos_decoder_forward.1} parent=67 // pred_check
          %p452 = pneg %p284
        $region90: #{pos_decoder_forward.1} parent=67 // pred_check_branch
          %454 = sbr.rel (%p452) target = $region92
        $region91: #{pos_decoder_forward.1} parent=67 // pred_region
          %455 = dma.done [#allocation11], 16
        $region92: #{pos_decoder_forward.1} parent=67 // pred_fallthru
          _
        %p456 = scmp.lt.s32.totalorder %s27, 3
        %s457 = scalar_select %p456, %s27, 3
        %s458 = smul.addr %s457, 2
        %s459 = smul.addr %s458, 4
        %s460 = scalar_lea.vmem %s0, %s459
        %p461 = pneg %p48
        %p462 = pneg %p45
        %p463 = scmp.lt.s32.totalorder %s27, 3
        %s464 = scalar_select %p463, %s27, 3
        %s465 = smul.addr %s464, 2
        %s466 = smul.addr %s465, 8
        %s467 = scalar_lea.vmem %s1, %s466
        %p468 = pneg %p74
        %p469 = pneg %p71
        %p470 = pneg %p95
        %p471 = pneg %p92
        %p472 = pneg %p116
        %p473 = pneg %p113
        %p474 = pneg %p137
        %p475 = pneg %p134
        %p476 = pneg %p158
        %p477 = pneg %p155
        %p478 = pneg %p179
        %p479 = pneg %p176
        %p480 = pneg %p200
        %p481 = pneg %p197
        %p482 = pneg %p221
        %p483 = pneg %p218
        %p484 = pneg %p242
        %p485 = pneg %p239
        %p486 = pneg %p263
        %p487 = pneg %p260
        %p488 = pneg %p284
        %p489 = pneg %p281
        %p490 = pneg %p310
        %p491 = pneg %p307
        %p492 = scmp.lt.s32.totalorder %s27, 3
        %s493 = scalar_select %p492, %s27, 3
        %s494 = smul.addr %s493, 2
        %s495 = smul.addr %s494, 8
        %s496 = scalar_lea.vmem %s12, %s495
        %p497 = scmp.lt.s32.totalorder %s27, 3
        %s498 = scalar_select %p497, %s27, 3
        %s499 = smul.addr %s498, 2
        %s500 = smul.addr %s499, 4
        %s501 = scalar_lea.vmem %s0, %s500
        %p502 = scmp.lt.s32.totalorder %s27, 3
        %s503 = scalar_select %p502, %s27, 3
        %s504 = smul.addr %s503, 2
        %s505 = smul.addr %s504, 8
        %s506 = scalar_lea.vmem %s1, %s505
        %p507 = scmp.lt.s32.totalorder %s27, 3
        %s508 = scalar_select %p507, %s27, 3
        %s509 = smul.addr %s508, 2
        %s510 = smul.addr %s509, 8
        %s511 = scalar_lea.vmem %s12, %s510
        %v513 = vld [vmem:[%s501] sm:$0xf]
        %v514 = vld [vmem:[%s501 + $0x4] sm:$0xf]
        %v515 = vld [vmem:[%s506] sm:$0xff]
        %v516 = vld [vmem:[%s506 + $0x8] sm:$0xff]
        %v517 = vld [vmem:[%s2] sm:$0xff]
        %v518 = vld [vmem:[%s2 + $0x8] sm:$0xff]
        %v519 = vld [vmem:[%s2 + $0x10] sm:$0xff]
        %v520 = vld [vmem:[%s2 + $0x18] sm:$0xff]
        %v521 = vld [vmem:[%s2 + $0x20] sm:$0xff]
        %v522 = vld [vmem:[%s2 + $0x28] sm:$0xff]
        %v523 = vld [vmem:[%s2 + $0x30] sm:$0xff]
        %v524 = vld [vmem:[%s2 + $0x38] sm:$0xff]
        %v525 = vld [vmem:[%s2 + $0x40] sm:$0xff]
        %v526 = vld [vmem:[%s2 + $0x48] sm:$0xff]
        %v527 = vld [vmem:[%s2 + $0x50] sm:$0xff]
        %v528 = vld [vmem:[%s2 + $0x58] sm:$0xff]
        %v529 = vld [vmem:[%s2 + $0x60] sm:$0xff]
        %v530 = vld [vmem:[%s2 + $0x68] sm:$0xff]
        %v531 = vld [vmem:[%s2 + $0x70] sm:$0xff]
        %v532 = vld [vmem:[%s2 + $0x78] sm:$0xff]
        %v533 = vld [vmem:[#allocation2] sm:$0xff]
        %v535 = vlaneseq
        %v536 = vshrl.u32 %v535, 7
        %v537 = vsub.s32 0, %v536
        %v538 = vrot.slane %v533, %v537
        %v539 = vlaneseq
        %v540 = vshrl.u32 %v539, 7
        %v541 = vsub.s32 1, %v540
        %v542 = vrot.slane %v533, %v541
        %v543 = vlaneseq
        %v544 = vshrl.u32 %v543, 7
        %v545 = vsub.s32 2, %v544
        %v546 = vrot.slane %v533, %v545
        %v547 = vlaneseq
        %v548 = vshrl.u32 %v547, 7
        %v549 = vsub.s32 3, %v548
        %v550 = vrot.slane %v533, %v549
        %v551 = vlaneseq
        %v552 = vshrl.u32 %v551, 7
        %v553 = vsub.s32 4, %v552
        %v554 = vrot.slane %v533, %v553
        %v555 = vlaneseq
        %v556 = vshrl.u32 %v555, 7
        %v557 = vsub.s32 5, %v556
        %v558 = vrot.slane %v533, %v557
        %v559 = vlaneseq
        %v560 = vshrl.u32 %v559, 7
        %v561 = vsub.s32 6, %v560
        %v562 = vrot.slane %v533, %v561
        %v563 = vlaneseq
        %v564 = vshrl.u32 %v563, 7
        %v565 = vsub.s32 7, %v564
        %v566 = vrot.slane %v533, %v565
        %v577 = vunpack.c.l.b16 %v513
        %v578 = vunpack.c.l.b16 %v514
        %v579 = vpack.c.b16 %v578, %v577
        %v596 = vunpack.c.l.b16 %v517
        %v597 = vunpack.c.h.b16 %v517
        %v598 = vunpack.c.l.b16 %v518
        %v599 = vunpack.c.h.b16 %v518
        %v600 = vunpack.c.l.b16 %v519
        %v601 = vunpack.c.h.b16 %v519
        %v602 = vunpack.c.l.b16 %v520
        %v603 = vunpack.c.h.b16 %v520
        %v604 = vunpack.c.l.b16 %v521
        %v605 = vunpack.c.h.b16 %v521
        %v606 = vunpack.c.l.b16 %v522
        %v607 = vunpack.c.h.b16 %v522
        %v608 = vunpack.c.l.b16 %v523
        %v609 = vunpack.c.h.b16 %v523
        %v610 = vunpack.c.l.b16 %v524
        %v611 = vunpack.c.h.b16 %v524
        %v612 = vunpack.c.l.b16 %v525
        %v613 = vunpack.c.h.b16 %v525
        %v614 = vunpack.c.l.b16 %v526
        %v615 = vunpack.c.h.b16 %v526
        %v616 = vunpack.c.l.b16 %v527
        %v617 = vunpack.c.h.b16 %v527
        %v618 = vunpack.c.l.b16 %v528
        %v619 = vunpack.c.h.b16 %v528
        %v620 = vunpack.c.l.b16 %v529
        %v621 = vunpack.c.h.b16 %v529
        %v622 = vunpack.c.l.b16 %v530
        %v623 = vunpack.c.h.b16 %v530
        %v624 = vunpack.c.l.b16 %v531
        %v625 = vunpack.c.h.b16 %v531
        %v626 = vunpack.c.l.b16 %v532
        %v627 = vunpack.c.h.b16 %v532
        %v628 = vpack.c.b16 %v604, %v596
        %v629 = vpack.c.b16 %v605, %v597
        %v630 = vpack.c.b16 %v606, %v598
        %v631 = vpack.c.b16 %v607, %v599
        %v632 = vpack.c.b16 %v608, %v600
        %v633 = vpack.c.b16 %v609, %v601
        %v634 = vpack.c.b16 %v610, %v602
        %v635 = vpack.c.b16 %v611, %v603
        %v636 = vpack.c.b16 %v620, %v612
        %v637 = vpack.c.b16 %v621, %v613
        %v638 = vpack.c.b16 %v622, %v614
        %v639 = vpack.c.b16 %v623, %v615
        %v640 = vpack.c.b16 %v624, %v616
        %v641 = vpack.c.b16 %v625, %v617
        %v642 = vpack.c.b16 %v626, %v618
        %v643 = vpack.c.b16 %v627, %v619
        %vm660 = vcmask 261120
        %v662 = vsel %vm660, %v579, 0
        %664 = vmatprep.subr.bf16.mxu0 %v629
        %665 = vmatpush1.bf16.msra.mxu0 %v628
        %666 = vmatprep.subr.bf16.mxu0 %v637
        %667 = vmatpush1.bf16.msra.mxu0 %v636
        %668 = vmatprep.subr.bf16.mxu0 0
        %669 = vmatpush1.bf16.msra.mxu0 0
        %670 = vmatprep.subr.bf16.mxu0 0
        %671 = vmatpush1.bf16.msra.mxu0 0
        %672 = vmatprep.subr.bf16.mxu0 0
        %673 = vmatpush1.bf16.msra.mxu0 0
        %674 = vmatprep.subr.bf16.mxu0 0
        %675 = vmatpush1.bf16.msra.mxu0 0
        %676 = vmatprep.subr.bf16.mxu0 0
        %677 = vmatpush1.bf16.msra.mxu0 0
        %678 = vmatprep.subr.bf16.mxu0 0
        %679 = vmatpush1.bf16.msra.mxu0 0
        %680 = vmatprep.subr.bf16.mxu0 0
        %681 = vmatpush1.bf16.msra.mxu0 0
        %682 = vmatprep.subr.bf16.mxu0 0
        %683 = vmatpush1.bf16.msra.mxu0 0
        %684 = vmatprep.subr.bf16.mxu0 0
        %685 = vmatpush1.bf16.msra.mxu0 0
        %686 = vmatprep.subr.bf16.mxu0 0
        %687 = vmatpush1.bf16.msra.mxu0 0
        %688 = vmatprep.subr.bf16.mxu0 0
        %689 = vmatpush1.bf16.msra.mxu0 0
        %690 = vmatprep.subr.bf16.mxu0 0
        %691 = vmatpush1.bf16.msra.mxu0 0
        %692 = vmatprep.subr.bf16.mxu0 0
        %693 = vmatpush1.bf16.msra.mxu0 0
        %694 = vmatprep.subr.bf16.mxu0 0
        %695 = vmatpush1.bf16.msra.mxu0 0
        %696 = vmatprep.mubr.bf16.mxu0 0
        %697 = vmatmul.mubr.bf16.gmra.mrb[0].mxu0 %v662
        %v698 = vpop.f32.mrb[0].mxu0
        %v699 = vadd.f32 %v538, %v698
        %v700 = vpop.f32.mrb[0].mxu0
        %v701 = vadd.f32 %v542, %v700
        %v702 = vpop.f32.mrb[0].mxu0
        %v703 = vadd.f32 %v538, %v702
        %v704 = vpop.f32.mrb[0].mxu0
        %v705 = vadd.f32 %v542, %v704
        %706 = vdwg.mxu0
        %707 = vmatprep.subr.bf16.mxu0 %v631
        %708 = vmatpush1.bf16.msra.mxu0 %v630
        %709 = vmatprep.subr.bf16.mxu0 %v639
        %710 = vmatpush1.bf16.msra.mxu0 %v638
        %711 = vmatprep.subr.bf16.mxu0 0
        %712 = vmatpush1.bf16.msra.mxu0 0
        %713 = vmatprep.subr.bf16.mxu0 0
        %714 = vmatpush1.bf16.msra.mxu0 0
        %715 = vmatprep.subr.bf16.mxu0 0
        %716 = vmatpush1.bf16.msra.mxu0 0
        %717 = vmatprep.subr.bf16.mxu0 0
        %718 = vmatpush1.bf16.msra.mxu0 0
        %719 = vmatprep.subr.bf16.mxu0 0
        %720 = vmatpush1.bf16.msra.mxu0 0
        %721 = vmatprep.subr.bf16.mxu0 0
        %722 = vmatpush1.bf16.msra.mxu0 0
        %723 = vmatprep.subr.bf16.mxu0 0
        %724 = vmatpush1.bf16.msra.mxu0 0
        %725 = vmatprep.subr.bf16.mxu0 0
        %726 = vmatpush1.bf16.msra.mxu0 0
        %727 = vmatprep.subr.bf16.mxu0 0
        %728 = vmatpush1.bf16.msra.mxu0 0
        %729 = vmatprep.subr.bf16.mxu0 0
        %730 = vmatpush1.bf16.msra.mxu0 0
        %731 = vmatprep.subr.bf16.mxu0 0
        %732 = vmatpush1.bf16.msra.mxu0 0
        %733 = vmatprep.subr.bf16.mxu0 0
        %734 = vmatpush1.bf16.msra.mxu0 0
        %735 = vmatprep.subr.bf16.mxu0 0
        %736 = vmatpush1.bf16.msra.mxu0 0
        %737 = vmatprep.subr.bf16.mxu0 0
        %738 = vmatpush1.bf16.msra.mxu0 0
        %739 = vmatprep.mubr.bf16.mxu0 0
        %740 = vmatmul.mubr.bf16.gmra.mrb[0].mxu0 %v662
        %v741 = vpop.f32.mrb[0].mxu0
        %v742 = vadd.f32 %v546, %v741
        %v743 = vpop.f32.mrb[0].mxu0
        %v744 = vadd.f32 %v550, %v743
        %v745 = vpop.f32.mrb[0].mxu0
        %v746 = vadd.f32 %v546, %v745
        %v747 = vpop.f32.mrb[0].mxu0
        %v748 = vadd.f32 %v550, %v747
        %749 = vdwg.mxu0
        %750 = vmatprep.subr.bf16.mxu0 %v633
        %751 = vmatpush1.bf16.msra.mxu0 %v632
        %752 = vmatprep.subr.bf16.mxu0 %v641
        %753 = vmatpush1.bf16.msra.mxu0 %v640
        %754 = vmatprep.subr.bf16.mxu0 0
        %755 = vmatpush1.bf16.msra.mxu0 0
        %756 = vmatprep.subr.bf16.mxu0 0
        %757 = vmatpush1.bf16.msra.mxu0 0
        %758 = vmatprep.subr.bf16.mxu0 0
        %759 = vmatpush1.bf16.msra.mxu0 0
        %760 = vmatprep.subr.bf16.mxu0 0
        %761 = vmatpush1.bf16.msra.mxu0 0
        %762 = vmatprep.subr.bf16.mxu0 0
        %763 = vmatpush1.bf16.msra.mxu0 0
        %764 = vmatprep.subr.bf16.mxu0 0
        %765 = vmatpush1.bf16.msra.mxu0 0
        %766 = vmatprep.subr.bf16.mxu0 0
        %767 = vmatpush1.bf16.msra.mxu0 0
        %768 = vmatprep.subr.bf16.mxu0 0
        %769 = vmatpush1.bf16.msra.mxu0 0
        %770 = vmatprep.subr.bf16.mxu0 0
        %771 = vmatpush1.bf16.msra.mxu0 0
        %772 = vmatprep.subr.bf16.mxu0 0
        %773 = vmatpush1.bf16.msra.mxu0 0
        %774 = vmatprep.subr.bf16.mxu0 0
        %775 = vmatpush1.bf16.msra.mxu0 0
        %776 = vmatprep.subr.bf16.mxu0 0
        %777 = vmatpush1.bf16.msra.mxu0 0
        %778 = vmatprep.subr.bf16.mxu0 0
        %779 = vmatpush1.bf16.msra.mxu0 0
        %780 = vmatprep.subr.bf16.mxu0 0
        %781 = vmatpush1.bf16.msra.mxu0 0
        %782 = vmatprep.mubr.bf16.mxu0 0
        %783 = vmatmul.mubr.bf16.gmra.mrb[0].mxu0 %v662
        %v784 = vpop.f32.mrb[0].mxu0
        %v785 = vadd.f32 %v554, %v784
        %v786 = vpop.f32.mrb[0].mxu0
        %v787 = vadd.f32 %v558, %v786
        %v788 = vpop.f32.mrb[0].mxu0
        %v789 = vadd.f32 %v554, %v788
        %v790 = vpop.f32.mrb[0].mxu0
        %v791 = vadd.f32 %v558, %v790
        %792 = vdwg.mxu0
        %793 = vmatprep.subr.bf16.mxu0 %v635
        %794 = vmatpush1.bf16.msra.mxu0 %v634
        %795 = vmatprep.subr.bf16.mxu0 %v643
        %796 = vmatpush1.bf16.msra.mxu0 %v642
        %797 = vmatprep.subr.bf16.mxu0 0
        %798 = vmatpush1.bf16.msra.mxu0 0
        %799 = vmatprep.subr.bf16.mxu0 0
        %800 = vmatpush1.bf16.msra.mxu0 0
        %801 = vmatprep.subr.bf16.mxu0 0
        %802 = vmatpush1.bf16.msra.mxu0 0
        %803 = vmatprep.subr.bf16.mxu0 0
        %804 = vmatpush1.bf16.msra.mxu0 0
        %805 = vmatprep.subr.bf16.mxu0 0
        %806 = vmatpush1.bf16.msra.mxu0 0
        %807 = vmatprep.subr.bf16.mxu0 0
        %808 = vmatpush1.bf16.msra.mxu0 0
        %809 = vmatprep.subr.bf16.mxu0 0
        %810 = vmatpush1.bf16.msra.mxu0 0
        %811 = vmatprep.subr.bf16.mxu0 0
        %812 = vmatpush1.bf16.msra.mxu0 0
        %813 = vmatprep.subr.bf16.mxu0 0
        %814 = vmatpush1.bf16.msra.mxu0 0
        %815 = vmatprep.subr.bf16.mxu0 0
        %816 = vmatpush1.bf16.msra.mxu0 0
        %817 = vmatprep.subr.bf16.mxu0 0
        %818 = vmatpush1.bf16.msra.mxu0 0
        %819 = vmatprep.subr.bf16.mxu0 0
        %820 = vmatpush1.bf16.msra.mxu0 0
        %821 = vmatprep.subr.bf16.mxu0 0
        %822 = vmatpush1.bf16.msra.mxu0 0
        %823 = vmatprep.subr.bf16.mxu0 0
        %824 = vmatpush1.bf16.msra.mxu0 0
        %825 = vmatprep.mubr.bf16.mxu0 0
        %826 = vmatmul.mubr.bf16.gmra.mrb[0].mxu0 %v662
        %v827 = vpop.f32.mrb[0].mxu0
        %v828 = vadd.f32 %v562, %v827
        %v829 = vpop.f32.mrb[0].mxu0
        %v830 = vadd.f32 %v566, %v829
        %v831 = vpop.f32.mrb[0].mxu0
        %v832 = vadd.f32 %v562, %v831
        %v833 = vpop.f32.mrb[0].mxu0
        %v834 = vadd.f32 %v566, %v833
        %835 = vdwg.mxu0
        %v840 = vcombine.low %v742, %v744
        %v841 = vcombine.high %v742, %v744
        %v843 = vunpack.c.l.s4 1966171168
        %v844 = vunpack.c.0.s8 %v843
        %v845 = vlaneseq
        %v846 = vshrl.u32 %v845, 7
        %v847 = vsub.s32 %v844, %v846
        %v848 = vrot.slane %v840, %v847
        %v850 = vunpack.c.l.s4 1966171168
        %v851 = vunpack.c.0.s8 %v850
        %v852 = vlaneseq
        %v853 = vshrl.u32 %v852, 7
        %v854 = vsub.s32 %v851, %v853
        %v855 = vrot.slane %v841, %v854
        %v856 = vcombine.high %v848, %v848
        %v857 = vcombine.high %v855, %v855
        %v859 = vunpack.c.l.s4 1966171168
        %v860 = vunpack.c.0.s8 %v859
        %v861 = vlaneseq
        %v862 = vshrl.u32 %v861, 7
        %v863 = vsub.s32 %v860, %v862
        %v864 = vrot.slane %v848, %v863
        %v866 = vunpack.c.l.s4 1966171168
        %v867 = vunpack.c.0.s8 %v866
        %v868 = vlaneseq
        %v869 = vshrl.u32 %v868, 7
        %v870 = vsub.s32 %v867, %v869
        %v871 = vrot.slane %v855, %v870
        %v873 = vunpack.c.l.s4 1966171168
        %v874 = vunpack.c.0.s8 %v873
        %v875 = vlaneseq
        %v876 = vshrl.u32 %v875, 7
        %v877 = vsub.s32 %v874, %v876
        %v878 = vrot.slane %v856, %v877
        %v880 = vunpack.c.l.s4 1966171168
        %v881 = vunpack.c.0.s8 %v880
        %v882 = vlaneseq
        %v883 = vshrl.u32 %v882, 7
        %v884 = vsub.s32 %v881, %v883
        %v885 = vrot.slane %v857, %v884
        %v886 = vcombine.high %v864, %v864
        %v887 = vcombine.high %v871, %v871
        %v888 = vcombine.high %v878, %v878
        %v889 = vcombine.high %v885, %v885
        %v890 = vcombine.low %v746, %v748
        %v891 = vcombine.high %v746, %v748
        %v893 = vunpack.c.l.s4 1966171168
        %v894 = vunpack.c.0.s8 %v893
        %v895 = vlaneseq
        %v896 = vshrl.u32 %v895, 7
        %v897 = vsub.s32 %v894, %v896
        %v898 = vrot.slane %v890, %v897
        %v900 = vunpack.c.l.s4 1966171168
        %v901 = vunpack.c.0.s8 %v900
        %v902 = vlaneseq
        %v903 = vshrl.u32 %v902, 7
        %v904 = vsub.s32 %v901, %v903
        %v905 = vrot.slane %v891, %v904
        %v906 = vcombine.high %v898, %v898
        %v907 = vcombine.high %v905, %v905
        %v909 = vunpack.c.l.s4 1966171168
        %v910 = vunpack.c.0.s8 %v909
        %v911 = vlaneseq
        %v912 = vshrl.u32 %v911, 7
        %v913 = vsub.s32 %v910, %v912
        %v914 = vrot.slane %v898, %v913
        %v916 = vunpack.c.l.s4 1966171168
        %v917 = vunpack.c.0.s8 %v916
        %v918 = vlaneseq
        %v919 = vshrl.u32 %v918, 7
        %v920 = vsub.s32 %v917, %v919
        %v921 = vrot.slane %v905, %v920
        %v923 = vunpack.c.l.s4 1966171168
        %v924 = vunpack.c.0.s8 %v923
        %v925 = vlaneseq
        %v926 = vshrl.u32 %v925, 7
        %v927 = vsub.s32 %v924, %v926
        %v928 = vrot.slane %v906, %v927
        %v930 = vunpack.c.l.s4 1966171168
        %v931 = vunpack.c.0.s8 %v930
        %v932 = vlaneseq
        %v933 = vshrl.u32 %v932, 7
        %v934 = vsub.s32 %v931, %v933
        %v935 = vrot.slane %v907, %v934
        %v936 = vcombine.high %v914, %v914
        %v937 = vcombine.high %v921, %v921
        %v938 = vcombine.high %v928, %v928
        %v939 = vcombine.high %v935, %v935
        %v940 = vlaneseq
        %v941 = vshrl.u32 %v940, 7
        %v942 = vsub.s32 0, %v941
        %v943 = vrot.slane %v864, %v942
        %v944 = vlaneseq
        %v945 = vshrl.u32 %v944, 7
        %v946 = vsub.s32 1, %v945
        %v947 = vrot.slane %v864, %v946
        %v948 = vlaneseq
        %v949 = vshrl.u32 %v948, 7
        %v950 = vsub.s32 0, %v949
        %v951 = vrot.slane %v878, %v950
        %v952 = vlaneseq
        %v953 = vshrl.u32 %v952, 7
        %v954 = vsub.s32 1, %v953
        %v955 = vrot.slane %v878, %v954
        %v956 = vlaneseq
        %v957 = vshrl.u32 %v956, 7
        %v958 = vsub.s32 0, %v957
        %v959 = vrot.slane %v886, %v958
        %v960 = vlaneseq
        %v961 = vshrl.u32 %v960, 7
        %v962 = vsub.s32 1, %v961
        %v963 = vrot.slane %v886, %v962
        %v964 = vlaneseq
        %v965 = vshrl.u32 %v964, 7
        %v966 = vsub.s32 0, %v965
        %v967 = vrot.slane %v888, %v966
        %v968 = vlaneseq
        %v969 = vshrl.u32 %v968, 7
        %v970 = vsub.s32 1, %v969
        %v971 = vrot.slane %v888, %v970
        %v972 = vlaneseq
        %v973 = vshrl.u32 %v972, 7
        %v974 = vsub.s32 0, %v973
        %v975 = vrot.slane %v871, %v974
        %v976 = vlaneseq
        %v977 = vshrl.u32 %v976, 7
        %v978 = vsub.s32 1, %v977
        %v979 = vrot.slane %v871, %v978
        %v980 = vlaneseq
        %v981 = vshrl.u32 %v980, 7
        %v982 = vsub.s32 0, %v981
        %v983 = vrot.slane %v885, %v982
        %v984 = vlaneseq
        %v985 = vshrl.u32 %v984, 7
        %v986 = vsub.s32 1, %v985
        %v987 = vrot.slane %v885, %v986
        %v988 = vlaneseq
        %v989 = vshrl.u32 %v988, 7
        %v990 = vsub.s32 0, %v989
        %v991 = vrot.slane %v887, %v990
        %v992 = vlaneseq
        %v993 = vshrl.u32 %v992, 7
        %v994 = vsub.s32 1, %v993
        %v995 = vrot.slane %v887, %v994
        %v996 = vlaneseq
        %v997 = vshrl.u32 %v996, 7
        %v998 = vsub.s32 0, %v997
        %v999 = vrot.slane %v889, %v998
        %v1000 = vlaneseq
        %v1001 = vshrl.u32 %v1000, 7
        %v1002 = vsub.s32 1, %v1001
        %v1003 = vrot.slane %v889, %v1002
        %v1004 = vlaneseq
        %v1005 = vshrl.u32 %v1004, 7
        %v1006 = vsub.s32 0, %v1005
        %v1007 = vrot.slane %v914, %v1006
        %v1008 = vlaneseq
        %v1009 = vshrl.u32 %v1008, 7
        %v1010 = vsub.s32 1, %v1009
        %v1011 = vrot.slane %v914, %v1010
        %v1012 = vlaneseq
        %v1013 = vshrl.u32 %v1012, 7
        %v1014 = vsub.s32 0, %v1013
        %v1015 = vrot.slane %v928, %v1014
        %v1016 = vlaneseq
        %v1017 = vshrl.u32 %v1016, 7
        %v1018 = vsub.s32 1, %v1017
        %v1019 = vrot.slane %v928, %v1018
        %v1020 = vlaneseq
        %v1021 = vshrl.u32 %v1020, 7
        %v1022 = vsub.s32 0, %v1021
        %v1023 = vrot.slane %v936, %v1022
        %v1024 = vlaneseq
        %v1025 = vshrl.u32 %v1024, 7
        %v1026 = vsub.s32 1, %v1025
        %v1027 = vrot.slane %v936, %v1026
        %v1028 = vlaneseq
        %v1029 = vshrl.u32 %v1028, 7
        %v1030 = vsub.s32 0, %v1029
        %v1031 = vrot.slane %v938, %v1030
        %v1032 = vlaneseq
        %v1033 = vshrl.u32 %v1032, 7
        %v1034 = vsub.s32 1, %v1033
        %v1035 = vrot.slane %v938, %v1034
        %v1036 = vlaneseq
        %v1037 = vshrl.u32 %v1036, 7
        %v1038 = vsub.s32 0, %v1037
        %v1039 = vrot.slane %v921, %v1038
        %v1040 = vlaneseq
        %v1041 = vshrl.u32 %v1040, 7
        %v1042 = vsub.s32 1, %v1041
        %v1043 = vrot.slane %v921, %v1042
        %v1044 = vlaneseq
        %v1045 = vshrl.u32 %v1044, 7
        %v1046 = vsub.s32 0, %v1045
        %v1047 = vrot.slane %v935, %v1046
        %v1048 = vlaneseq
        %v1049 = vshrl.u32 %v1048, 7
        %v1050 = vsub.s32 1, %v1049
        %v1051 = vrot.slane %v935, %v1050
        %v1052 = vlaneseq
        %v1053 = vshrl.u32 %v1052, 7
        %v1054 = vsub.s32 0, %v1053
        %v1055 = vrot.slane %v937, %v1054
        %v1056 = vlaneseq
        %v1057 = vshrl.u32 %v1056, 7
        %v1058 = vsub.s32 1, %v1057
        %v1059 = vrot.slane %v937, %v1058
        %v1060 = vlaneseq
        %v1061 = vshrl.u32 %v1060, 7
        %v1062 = vsub.s32 0, %v1061
        %v1063 = vrot.slane %v939, %v1062
        %v1064 = vlaneseq
        %v1065 = vshrl.u32 %v1064, 7
        %v1066 = vsub.s32 1, %v1065
        %v1067 = vrot.slane %v939, %v1066
        %v1100 = vadd.f32 %v699, %v943
        %v1101 = vadd.f32 %v701, %v947
        %v1102 = vadd.f32 %v703, %v943
        %v1103 = vadd.f32 %v705, %v947
        %v1104 = vadd.f32 %v699, %v951
        %v1105 = vadd.f32 %v701, %v955
        %v1106 = vadd.f32 %v703, %v951
        %v1107 = vadd.f32 %v705, %v955
        %v1108 = vadd.f32 %v699, %v959
        %v1109 = vadd.f32 %v701, %v963
        %v1110 = vadd.f32 %v703, %v959
        %v1111 = vadd.f32 %v705, %v963
        %v1112 = vadd.f32 %v699, %v967
        %v1113 = vadd.f32 %v701, %v971
        %v1114 = vadd.f32 %v703, %v967
        %v1115 = vadd.f32 %v705, %v971
        %v1116 = vadd.f32 %v699, %v975
        %v1117 = vadd.f32 %v701, %v979
        %v1118 = vadd.f32 %v703, %v975
        %v1119 = vadd.f32 %v705, %v979
        %v1120 = vadd.f32 %v699, %v983
        %v1121 = vadd.f32 %v701, %v987
        %v1122 = vadd.f32 %v703, %v983
        %v1123 = vadd.f32 %v705, %v987
        %v1124 = vadd.f32 %v699, %v991
        %v1125 = vadd.f32 %v701, %v995
        %v1126 = vadd.f32 %v703, %v991
        %v1127 = vadd.f32 %v705, %v995
        %v1128 = vadd.f32 %v699, %v999
        %v1129 = vadd.f32 %v701, %v1003
        %v1130 = vadd.f32 %v703, %v999
        %v1131 = vadd.f32 %v705, %v1003
        %v1132 = vadd.f32 %v699, %v1007
        %v1133 = vadd.f32 %v701, %v1011
        %v1134 = vadd.f32 %v703, %v1007
        %v1135 = vadd.f32 %v705, %v1011
        %v1136 = vadd.f32 %v699, %v1015
        %v1137 = vadd.f32 %v701, %v1019
        %v1138 = vadd.f32 %v703, %v1015
        %v1139 = vadd.f32 %v705, %v1019
        %v1140 = vadd.f32 %v699, %v1023
        %v1141 = vadd.f32 %v701, %v1027
        %v1142 = vadd.f32 %v703, %v1023
        %v1143 = vadd.f32 %v705, %v1027
        %v1144 = vadd.f32 %v699, %v1031
        %v1145 = vadd.f32 %v701, %v1035
        %v1146 = vadd.f32 %v703, %v1031
        %v1147 = vadd.f32 %v705, %v1035
        %v1148 = vadd.f32 %v699, %v1039
        %v1149 = vadd.f32 %v701, %v1043
        %v1150 = vadd.f32 %v703, %v1039
        %v1151 = vadd.f32 %v705, %v1043
        %v1152 = vadd.f32 %v699, %v1047
        %v1153 = vadd.f32 %v701, %v1051
        %v1154 = vadd.f32 %v703, %v1047
        %v1155 = vadd.f32 %v705, %v1051
        %v1156 = vadd.f32 %v699, %v1055
        %v1157 = vadd.f32 %v701, %v1059
        %v1158 = vadd.f32 %v703, %v1055
        %v1159 = vadd.f32 %v705, %v1059
        %v1160 = vadd.f32 %v699, %v1063
        %v1161 = vadd.f32 %v701, %v1067
        %v1162 = vadd.f32 %v703, %v1063
        %v1163 = vadd.f32 %v705, %v1067
        %v1164 = vmul.f32 %v1100, 0.5
        %v1165 = vmul.f32 %v1101, 0.5
        %v1166 = vmul.f32 %v1102, 0.5
        %v1167 = vmul.f32 %v1103, 0.5
        %v1168 = vmul.f32 %v1104, 0.5
        %v1169 = vmul.f32 %v1105, 0.5
        %v1170 = vmul.f32 %v1106, 0.5
        %v1171 = vmul.f32 %v1107, 0.5
        %v1172 = vmul.f32 %v1108, 0.5
        %v1173 = vmul.f32 %v1109, 0.5
        %v1174 = vmul.f32 %v1110, 0.5
        %v1175 = vmul.f32 %v1111, 0.5
        %v1176 = vmul.f32 %v1112, 0.5
        %v1177 = vmul.f32 %v1113, 0.5
        %v1178 = vmul.f32 %v1114, 0.5
        %v1179 = vmul.f32 %v1115, 0.5
        %v1180 = vmul.f32 %v1116, 0.5
        %v1181 = vmul.f32 %v1117, 0.5
        %v1182 = vmul.f32 %v1118, 0.5
        %v1183 = vmul.f32 %v1119, 0.5
        %v1184 = vmul.f32 %v1120, 0.5
        %v1185 = vmul.f32 %v1121, 0.5
        %v1186 = vmul.f32 %v1122, 0.5
        %v1187 = vmul.f32 %v1123, 0.5
        %v1188 = vmul.f32 %v1124, 0.5
        %v1189 = vmul.f32 %v1125, 0.5
        %v1190 = vmul.f32 %v1126, 0.5
        %v1191 = vmul.f32 %v1127, 0.5
        %v1192 = vmul.f32 %v1128, 0.5
        %v1193 = vmul.f32 %v1129, 0.5
        %v1194 = vmul.f32 %v1130, 0.5
        %v1195 = vmul.f32 %v1131, 0.5
        %v1196 = vmul.f32 %v1132, 0.5
        %v1197 = vmul.f32 %v1133, 0.5
        %v1198 = vmul.f32 %v1134, 0.5
        %v1199 = vmul.f32 %v1135, 0.5
        %v1200 = vmul.f32 %v1136, 0.5
        %v1201 = vmul.f32 %v1137, 0.5
        %v1202 = vmul.f32 %v1138, 0.5
        %v1203 = vmul.f32 %v1139, 0.5
        %v1204 = vmul.f32 %v1140, 0.5
        %v1205 = vmul.f32 %v1141, 0.5
        %v1206 = vmul.f32 %v1142, 0.5
        %v1207 = vmul.f32 %v1143, 0.5
        %v1208 = vmul.f32 %v1144, 0.5
        %v1209 = vmul.f32 %v1145, 0.5
        %v1210 = vmul.f32 %v1146, 0.5
        %v1211 = vmul.f32 %v1147, 0.5
        %v1212 = vmul.f32 %v1148, 0.5
        %v1213 = vmul.f32 %v1149, 0.5
        %v1214 = vmul.f32 %v1150, 0.5
        %v1215 = vmul.f32 %v1151, 0.5
        %v1216 = vmul.f32 %v1152, 0.5
        %v1217 = vmul.f32 %v1153, 0.5
        %v1218 = vmul.f32 %v1154, 0.5
        %v1219 = vmul.f32 %v1155, 0.5
        %v1220 = vmul.f32 %v1156, 0.5
        %v1221 = vmul.f32 %v1157, 0.5
        %v1222 = vmul.f32 %v1158, 0.5
        %v1223 = vmul.f32 %v1159, 0.5
        %v1224 = vmul.f32 %v1160, 0.5
        %v1225 = vmul.f32 %v1161, 0.5
        %v1226 = vmul.f32 %v1162, 0.5
        %v1227 = vmul.f32 %v1163, 0.5
        %v1228 = vtanh.pop %v1164
        %v1229 = vtanh.pop %v1165
        %v1230 = vtanh.pop %v1166
        %v1231 = vtanh.pop %v1167
        %v1232 = vtanh.pop %v1168
        %v1233 = vtanh.pop %v1169
        %v1234 = vtanh.pop %v1170
        %v1235 = vtanh.pop %v1171
        %v1236 = vtanh.pop %v1172
        %v1237 = vtanh.pop %v1173
        %v1238 = vtanh.pop %v1174
        %v1239 = vtanh.pop %v1175
        %v1240 = vtanh.pop %v1176
        %v1241 = vtanh.pop %v1177
        %v1242 = vtanh.pop %v1178
        %v1243 = vtanh.pop %v1179
        %v1244 = vtanh.pop %v1180
        %v1245 = vtanh.pop %v1181
        %v1246 = vtanh.pop %v1182
        %v1247 = vtanh.pop %v1183
        %v1248 = vtanh.pop %v1184
        %v1249 = vtanh.pop %v1185
        %v1250 = vtanh.pop %v1186
        %v1251 = vtanh.pop %v1187
        %v1252 = vtanh.pop %v1188
        %v1253 = vtanh.pop %v1189
        %v1254 = vtanh.pop %v1190
        %v1255 = vtanh.pop %v1191
        %v1256 = vtanh.pop %v1192
        %v1257 = vtanh.pop %v1193
        %v1258 = vtanh.pop %v1194
        %v1259 = vtanh.pop %v1195
        %v1260 = vtanh.pop %v1196
        %v1261 = vtanh.pop %v1197
        %v1262 = vtanh.pop %v1198
        %v1263 = vtanh.pop %v1199
        %v1264 = vtanh.pop %v1200
        %v1265 = vtanh.pop %v1201
        %v1266 = vtanh.pop %v1202
        %v1267 = vtanh.pop %v1203
        %v1268 = vtanh.pop %v1204
        %v1269 = vtanh.pop %v1205
        %v1270 = vtanh.pop %v1206
        %v1271 = vtanh.pop %v1207
        %v1272 = vtanh.pop %v1208
        %v1273 = vtanh.pop %v1209
        %v1274 = vtanh.pop %v1210
        %v1275 = vtanh.pop %v1211
        %v1276 = vtanh.pop %v1212
        %v1277 = vtanh.pop %v1213
        %v1278 = vtanh.pop %v1214
        %v1279 = vtanh.pop %v1215
        %v1280 = vtanh.pop %v1216
        %v1281 = vtanh.pop %v1217
        %v1282 = vtanh.pop %v1218
        %v1283 = vtanh.pop %v1219
        %v1284 = vtanh.pop %v1220
        %v1285 = vtanh.pop %v1221
        %v1286 = vtanh.pop %v1222
        %v1287 = vtanh.pop %v1223
        %v1288 = vtanh.pop %v1224
        %v1289 = vtanh.pop %v1225
        %v1290 = vtanh.pop %v1226
        %v1291 = vtanh.pop %v1227
        %v1292 = vadd.f32 %v1228, 1.0
        %v1293 = vadd.f32 %v1229, 1.0
        %v1294 = vadd.f32 %v1230, 1.0
        %v1295 = vadd.f32 %v1231, 1.0
        %v1296 = vadd.f32 %v1232, 1.0
        %v1297 = vadd.f32 %v1233, 1.0
        %v1298 = vadd.f32 %v1234, 1.0
        %v1299 = vadd.f32 %v1235, 1.0
        %v1300 = vadd.f32 %v1236, 1.0
        %v1301 = vadd.f32 %v1237, 1.0
        %v1302 = vadd.f32 %v1238, 1.0
        %v1303 = vadd.f32 %v1239, 1.0
        %v1304 = vadd.f32 %v1240, 1.0
        %v1305 = vadd.f32 %v1241, 1.0
        %v1306 = vadd.f32 %v1242, 1.0
        %v1307 = vadd.f32 %v1243, 1.0
        %v1308 = vadd.f32 %v1244, 1.0
        %v1309 = vadd.f32 %v1245, 1.0
        %v1310 = vadd.f32 %v1246, 1.0
        %v1311 = vadd.f32 %v1247, 1.0
        %v1312 = vadd.f32 %v1248, 1.0
        %v1313 = vadd.f32 %v1249, 1.0
        %v1314 = vadd.f32 %v1250, 1.0
        %v1315 = vadd.f32 %v1251, 1.0
        %v1316 = vadd.f32 %v1252, 1.0
        %v1317 = vadd.f32 %v1253, 1.0
        %v1318 = vadd.f32 %v1254, 1.0
        %v1319 = vadd.f32 %v1255, 1.0
        %v1320 = vadd.f32 %v1256, 1.0
        %v1321 = vadd.f32 %v1257, 1.0
        %v1322 = vadd.f32 %v1258, 1.0
        %v1323 = vadd.f32 %v1259, 1.0
        %v1324 = vadd.f32 %v1260, 1.0
        %v1325 = vadd.f32 %v1261, 1.0
        %v1326 = vadd.f32 %v1262, 1.0
        %v1327 = vadd.f32 %v1263, 1.0
        %v1328 = vadd.f32 %v1264, 1.0
        %v1329 = vadd.f32 %v1265, 1.0
        %v1330 = vadd.f32 %v1266, 1.0
        %v1331 = vadd.f32 %v1267, 1.0
        %v1332 = vadd.f32 %v1268, 1.0
        %v1333 = vadd.f32 %v1269, 1.0
        %v1334 = vadd.f32 %v1270, 1.0
        %v1335 = vadd.f32 %v1271, 1.0
        %v1336 = vadd.f32 %v1272, 1.0
        %v1337 = vadd.f32 %v1273, 1.0
        %v1338 = vadd.f32 %v1274, 1.0
        %v1339 = vadd.f32 %v1275, 1.0
        %v1340 = vadd.f32 %v1276, 1.0
        %v1341 = vadd.f32 %v1277, 1.0
        %v1342 = vadd.f32 %v1278, 1.0
        %v1343 = vadd.f32 %v1279, 1.0
        %v1344 = vadd.f32 %v1280, 1.0
        %v1345 = vadd.f32 %v1281, 1.0
        %v1346 = vadd.f32 %v1282, 1.0
        %v1347 = vadd.f32 %v1283, 1.0
        %v1348 = vadd.f32 %v1284, 1.0
        %v1349 = vadd.f32 %v1285, 1.0
        %v1350 = vadd.f32 %v1286, 1.0
        %v1351 = vadd.f32 %v1287, 1.0
        %v1352 = vadd.f32 %v1288, 1.0
        %v1353 = vadd.f32 %v1289, 1.0
        %v1354 = vadd.f32 %v1290, 1.0
        %v1355 = vadd.f32 %v1291, 1.0
        %v1356 = vmul.f32 %v1292, 0.5
        %v1357 = vmul.f32 %v1293, 0.5
        %v1358 = vmul.f32 %v1294, 0.5
        %v1359 = vmul.f32 %v1295, 0.5
        %v1360 = vmul.f32 %v1296, 0.5
        %v1361 = vmul.f32 %v1297, 0.5
        %v1362 = vmul.f32 %v1298, 0.5
        %v1363 = vmul.f32 %v1299, 0.5
        %v1364 = vmul.f32 %v1300, 0.5
        %v1365 = vmul.f32 %v1301, 0.5
        %v1366 = vmul.f32 %v1302, 0.5
        %v1367 = vmul.f32 %v1303, 0.5
        %v1368 = vmul.f32 %v1304, 0.5
        %v1369 = vmul.f32 %v1305, 0.5
        %v1370 = vmul.f32 %v1306, 0.5
        %v1371 = vmul.f32 %v1307, 0.5
        %v1372 = vmul.f32 %v1308, 0.5
        %v1373 = vmul.f32 %v1309, 0.5
        %v1374 = vmul.f32 %v1310, 0.5
        %v1375 = vmul.f32 %v1311, 0.5
        %v1376 = vmul.f32 %v1312, 0.5
        %v1377 = vmul.f32 %v1313, 0.5
        %v1378 = vmul.f32 %v1314, 0.5
        %v1379 = vmul.f32 %v1315, 0.5
        %v1380 = vmul.f32 %v1316, 0.5
        %v1381 = vmul.f32 %v1317, 0.5
        %v1382 = vmul.f32 %v1318, 0.5
        %v1383 = vmul.f32 %v1319, 0.5
        %v1384 = vmul.f32 %v1320, 0.5
        %v1385 = vmul.f32 %v1321, 0.5
        %v1386 = vmul.f32 %v1322, 0.5
        %v1387 = vmul.f32 %v1323, 0.5
        %v1388 = vmul.f32 %v1324, 0.5
        %v1389 = vmul.f32 %v1325, 0.5
        %v1390 = vmul.f32 %v1326, 0.5
        %v1391 = vmul.f32 %v1327, 0.5
        %v1392 = vmul.f32 %v1328, 0.5
        %v1393 = vmul.f32 %v1329, 0.5
        %v1394 = vmul.f32 %v1330, 0.5
        %v1395 = vmul.f32 %v1331, 0.5
        %v1396 = vmul.f32 %v1332, 0.5
        %v1397 = vmul.f32 %v1333, 0.5
        %v1398 = vmul.f32 %v1334, 0.5
        %v1399 = vmul.f32 %v1335, 0.5
        %v1400 = vmul.f32 %v1336, 0.5
        %v1401 = vmul.f32 %v1337, 0.5
        %v1402 = vmul.f32 %v1338, 0.5
        %v1403 = vmul.f32 %v1339, 0.5
        %v1404 = vmul.f32 %v1340, 0.5
        %v1405 = vmul.f32 %v1341, 0.5
        %v1406 = vmul.f32 %v1342, 0.5
        %v1407 = vmul.f32 %v1343, 0.5
        %v1408 = vmul.f32 %v1344, 0.5
        %v1409 = vmul.f32 %v1345, 0.5
        %v1410 = vmul.f32 %v1346, 0.5
        %v1411 = vmul.f32 %v1347, 0.5
        %v1412 = vmul.f32 %v1348, 0.5
        %v1413 = vmul.f32 %v1349, 0.5
        %v1414 = vmul.f32 %v1350, 0.5
        %v1415 = vmul.f32 %v1351, 0.5
        %v1416 = vmul.f32 %v1352, 0.5
        %v1417 = vmul.f32 %v1353, 0.5
        %v1418 = vmul.f32 %v1354, 0.5
        %v1419 = vmul.f32 %v1355, 0.5
        %v1424 = vcombine.low %v785, %v787
        %v1425 = vcombine.high %v785, %v787
        %v1427 = vunpack.c.l.s4 1966171168
        %v1428 = vunpack.c.0.s8 %v1427
        %v1429 = vlaneseq
        %v1430 = vshrl.u32 %v1429, 7
        %v1431 = vsub.s32 %v1428, %v1430
        %v1432 = vrot.slane %v1424, %v1431
        %v1434 = vunpack.c.l.s4 1966171168
        %v1435 = vunpack.c.0.s8 %v1434
        %v1436 = vlaneseq
        %v1437 = vshrl.u32 %v1436, 7
        %v1438 = vsub.s32 %v1435, %v1437
        %v1439 = vrot.slane %v1425, %v1438
        %v1440 = vcombine.high %v1432, %v1432
        %v1441 = vcombine.high %v1439, %v1439
        %v1443 = vunpack.c.l.s4 1966171168
        %v1444 = vunpack.c.0.s8 %v1443
        %v1445 = vlaneseq
        %v1446 = vshrl.u32 %v1445, 7
        %v1447 = vsub.s32 %v1444, %v1446
        %v1448 = vrot.slane %v1432, %v1447
        %v1450 = vunpack.c.l.s4 1966171168
        %v1451 = vunpack.c.0.s8 %v1450
        %v1452 = vlaneseq
        %v1453 = vshrl.u32 %v1452, 7
        %v1454 = vsub.s32 %v1451, %v1453
        %v1455 = vrot.slane %v1439, %v1454
        %v1457 = vunpack.c.l.s4 1966171168
        %v1458 = vunpack.c.0.s8 %v1457
        %v1459 = vlaneseq
        %v1460 = vshrl.u32 %v1459, 7
        %v1461 = vsub.s32 %v1458, %v1460
        %v1462 = vrot.slane %v1440, %v1461
        %v1464 = vunpack.c.l.s4 1966171168
        %v1465 = vunpack.c.0.s8 %v1464
        %v1466 = vlaneseq
        %v1467 = vshrl.u32 %v1466, 7
        %v1468 = vsub.s32 %v1465, %v1467
        %v1469 = vrot.slane %v1441, %v1468
        %v1470 = vcombine.high %v1448, %v1448
        %v1471 = vcombine.high %v1455, %v1455
        %v1472 = vcombine.high %v1462, %v1462
        %v1473 = vcombine.high %v1469, %v1469
        %v1474 = vcombine.low %v789, %v791
        %v1475 = vcombine.high %v789, %v791
        %v1477 = vunpack.c.l.s4 1966171168
        %v1478 = vunpack.c.0.s8 %v1477
        %v1479 = vlaneseq
        %v1480 = vshrl.u32 %v1479, 7
        %v1481 = vsub.s32 %v1478, %v1480
        %v1482 = vrot.slane %v1474, %v1481
        %v1484 = vunpack.c.l.s4 1966171168
        %v1485 = vunpack.c.0.s8 %v1484
        %v1486 = vlaneseq
        %v1487 = vshrl.u32 %v1486, 7
        %v1488 = vsub.s32 %v1485, %v1487
        %v1489 = vrot.slane %v1475, %v1488
        %v1490 = vcombine.high %v1482, %v1482
        %v1491 = vcombine.high %v1489, %v1489
        %v1493 = vunpack.c.l.s4 1966171168
        %v1494 = vunpack.c.0.s8 %v1493
        %v1495 = vlaneseq
        %v1496 = vshrl.u32 %v1495, 7
        %v1497 = vsub.s32 %v1494, %v1496
        %v1498 = vrot.slane %v1482, %v1497
        %v1500 = vunpack.c.l.s4 1966171168
        %v1501 = vunpack.c.0.s8 %v1500
        %v1502 = vlaneseq
        %v1503 = vshrl.u32 %v1502, 7
        %v1504 = vsub.s32 %v1501, %v1503
        %v1505 = vrot.slane %v1489, %v1504
        %v1507 = vunpack.c.l.s4 1966171168
        %v1508 = vunpack.c.0.s8 %v1507
        %v1509 = vlaneseq
        %v1510 = vshrl.u32 %v1509, 7
        %v1511 = vsub.s32 %v1508, %v1510
        %v1512 = vrot.slane %v1490, %v1511
        %v1514 = vunpack.c.l.s4 1966171168
        %v1515 = vunpack.c.0.s8 %v1514
        %v1516 = vlaneseq
        %v1517 = vshrl.u32 %v1516, 7
        %v1518 = vsub.s32 %v1515, %v1517
        %v1519 = vrot.slane %v1491, %v1518
        %v1520 = vcombine.high %v1498, %v1498
        %v1521 = vcombine.high %v1505, %v1505
        %v1522 = vcombine.high %v1512, %v1512
        %v1523 = vcombine.high %v1519, %v1519
        %v1524 = vlaneseq
        %v1525 = vshrl.u32 %v1524, 7
        %v1526 = vsub.s32 0, %v1525
        %v1527 = vrot.slane %v1448, %v1526
        %v1528 = vlaneseq
        %v1529 = vshrl.u32 %v1528, 7
        %v1530 = vsub.s32 1, %v1529
        %v1531 = vrot.slane %v1448, %v1530
        %v1532 = vlaneseq
        %v1533 = vshrl.u32 %v1532, 7
        %v1534 = vsub.s32 0, %v1533
        %v1535 = vrot.slane %v1462, %v1534
        %v1536 = vlaneseq
        %v1537 = vshrl.u32 %v1536, 7
        %v1538 = vsub.s32 1, %v1537
        %v1539 = vrot.slane %v1462, %v1538
        %v1540 = vlaneseq
        %v1541 = vshrl.u32 %v1540, 7
        %v1542 = vsub.s32 0, %v1541
        %v1543 = vrot.slane %v1470, %v1542
        %v1544 = vlaneseq
        %v1545 = vshrl.u32 %v1544, 7
        %v1546 = vsub.s32 1, %v1545
        %v1547 = vrot.slane %v1470, %v1546
        %v1548 = vlaneseq
        %v1549 = vshrl.u32 %v1548, 7
        %v1550 = vsub.s32 0, %v1549
        %v1551 = vrot.slane %v1472, %v1550
        %v1552 = vlaneseq
        %v1553 = vshrl.u32 %v1552, 7
        %v1554 = vsub.s32 1, %v1553
        %v1555 = vrot.slane %v1472, %v1554
        %v1556 = vlaneseq
        %v1557 = vshrl.u32 %v1556, 7
        %v1558 = vsub.s32 0, %v1557
        %v1559 = vrot.slane %v1455, %v1558
        %v1560 = vlaneseq
        %v1561 = vshrl.u32 %v1560, 7
        %v1562 = vsub.s32 1, %v1561
        %v1563 = vrot.slane %v1455, %v1562
        %v1564 = vlaneseq
        %v1565 = vshrl.u32 %v1564, 7
        %v1566 = vsub.s32 0, %v1565
        %v1567 = vrot.slane %v1469, %v1566
        %v1568 = vlaneseq
        %v1569 = vshrl.u32 %v1568, 7
        %v1570 = vsub.s32 1, %v1569
        %v1571 = vrot.slane %v1469, %v1570
        %v1572 = vlaneseq
        %v1573 = vshrl.u32 %v1572, 7
        %v1574 = vsub.s32 0, %v1573
        %v1575 = vrot.slane %v1471, %v1574
        %v1576 = vlaneseq
        %v1577 = vshrl.u32 %v1576, 7
        %v1578 = vsub.s32 1, %v1577
        %v1579 = vrot.slane %v1471, %v1578
        %v1580 = vlaneseq
        %v1581 = vshrl.u32 %v1580, 7
        %v1582 = vsub.s32 0, %v1581
        %v1583 = vrot.slane %v1473, %v1582
        %v1584 = vlaneseq
        %v1585 = vshrl.u32 %v1584, 7
        %v1586 = vsub.s32 1, %v1585
        %v1587 = vrot.slane %v1473, %v1586
        %v1588 = vlaneseq
        %v1589 = vshrl.u32 %v1588, 7
        %v1590 = vsub.s32 0, %v1589
        %v1591 = vrot.slane %v1498, %v1590
        %v1592 = vlaneseq
        %v1593 = vshrl.u32 %v1592, 7
        %v1594 = vsub.s32 1, %v1593
        %v1595 = vrot.slane %v1498, %v1594
        %v1596 = vlaneseq
        %v1597 = vshrl.u32 %v1596, 7
        %v1598 = vsub.s32 0, %v1597
        %v1599 = vrot.slane %v1512, %v1598
        %v1600 = vlaneseq
        %v1601 = vshrl.u32 %v1600, 7
        %v1602 = vsub.s32 1, %v1601
        %v1603 = vrot.slane %v1512, %v1602
        %v1604 = vlaneseq
        %v1605 = vshrl.u32 %v1604, 7
        %v1606 = vsub.s32 0, %v1605
        %v1607 = vrot.slane %v1520, %v1606
        %v1608 = vlaneseq
        %v1609 = vshrl.u32 %v1608, 7
        %v1610 = vsub.s32 1, %v1609
        %v1611 = vrot.slane %v1520, %v1610
        %v1612 = vlaneseq
        %v1613 = vshrl.u32 %v1612, 7
        %v1614 = vsub.s32 0, %v1613
        %v1615 = vrot.slane %v1522, %v1614
        %v1616 = vlaneseq
        %v1617 = vshrl.u32 %v1616, 7
        %v1618 = vsub.s32 1, %v1617
        %v1619 = vrot.slane %v1522, %v1618
        %v1620 = vlaneseq
        %v1621 = vshrl.u32 %v1620, 7
        %v1622 = vsub.s32 0, %v1621
        %v1623 = vrot.slane %v1505, %v1622
        %v1624 = vlaneseq
        %v1625 = vshrl.u32 %v1624, 7
        %v1626 = vsub.s32 1, %v1625
        %v1627 = vrot.slane %v1505, %v1626
        %v1628 = vlaneseq
        %v1629 = vshrl.u32 %v1628, 7
        %v1630 = vsub.s32 0, %v1629
        %v1631 = vrot.slane %v1519, %v1630
        %v1632 = vlaneseq
        %v1633 = vshrl.u32 %v1632, 7
        %v1634 = vsub.s32 1, %v1633
        %v1635 = vrot.slane %v1519, %v1634
        %v1636 = vlaneseq
        %v1637 = vshrl.u32 %v1636, 7
        %v1638 = vsub.s32 0, %v1637
        %v1639 = vrot.slane %v1521, %v1638
        %v1640 = vlaneseq
        %v1641 = vshrl.u32 %v1640, 7
        %v1642 = vsub.s32 1, %v1641
        %v1643 = vrot.slane %v1521, %v1642
        %v1644 = vlaneseq
        %v1645 = vshrl.u32 %v1644, 7
        %v1646 = vsub.s32 0, %v1645
        %v1647 = vrot.slane %v1523, %v1646
        %v1648 = vlaneseq
        %v1649 = vshrl.u32 %v1648, 7
        %v1650 = vsub.s32 1, %v1649
        %v1651 = vrot.slane %v1523, %v1650
        %v1684 = vmul.f32 %v1356, %v1527
        %v1685 = vmul.f32 %v1357, %v1531
        %v1686 = vmul.f32 %v1358, %v1527
        %v1687 = vmul.f32 %v1359, %v1531
        %v1688 = vmul.f32 %v1360, %v1535
        %v1689 = vmul.f32 %v1361, %v1539
        %v1690 = vmul.f32 %v1362, %v1535
        %v1691 = vmul.f32 %v1363, %v1539
        %v1692 = vmul.f32 %v1364, %v1543
        %v1693 = vmul.f32 %v1365, %v1547
        %v1694 = vmul.f32 %v1366, %v1543
        %v1695 = vmul.f32 %v1367, %v1547
        %v1696 = vmul.f32 %v1368, %v1551
        %v1697 = vmul.f32 %v1369, %v1555
        %v1698 = vmul.f32 %v1370, %v1551
        %v1699 = vmul.f32 %v1371, %v1555
        %v1700 = vmul.f32 %v1372, %v1559
        %v1701 = vmul.f32 %v1373, %v1563
        %v1702 = vmul.f32 %v1374, %v1559
        %v1703 = vmul.f32 %v1375, %v1563
        %v1704 = vmul.f32 %v1376, %v1567
        %v1705 = vmul.f32 %v1377, %v1571
        %v1706 = vmul.f32 %v1378, %v1567
        %v1707 = vmul.f32 %v1379, %v1571
        %v1708 = vmul.f32 %v1380, %v1575
        %v1709 = vmul.f32 %v1381, %v1579
        %v1710 = vmul.f32 %v1382, %v1575
        %v1711 = vmul.f32 %v1383, %v1579
        %v1712 = vmul.f32 %v1384, %v1583
        %v1713 = vmul.f32 %v1385, %v1587
        %v1714 = vmul.f32 %v1386, %v1583
        %v1715 = vmul.f32 %v1387, %v1587
        %v1716 = vmul.f32 %v1388, %v1591
        %v1717 = vmul.f32 %v1389, %v1595
        %v1718 = vmul.f32 %v1390, %v1591
        %v1719 = vmul.f32 %v1391, %v1595
        %v1720 = vmul.f32 %v1392, %v1599
        %v1721 = vmul.f32 %v1393, %v1603
        %v1722 = vmul.f32 %v1394, %v1599
        %v1723 = vmul.f32 %v1395, %v1603
        %v1724 = vmul.f32 %v1396, %v1607
        %v1725 = vmul.f32 %v1397, %v1611
        %v1726 = vmul.f32 %v1398, %v1607
        %v1727 = vmul.f32 %v1399, %v1611
        %v1728 = vmul.f32 %v1400, %v1615
        %v1729 = vmul.f32 %v1401, %v1619
        %v1730 = vmul.f32 %v1402, %v1615
        %v1731 = vmul.f32 %v1403, %v1619
        %v1732 = vmul.f32 %v1404, %v1623
        %v1733 = vmul.f32 %v1405, %v1627
        %v1734 = vmul.f32 %v1406, %v1623
        %v1735 = vmul.f32 %v1407, %v1627
        %v1736 = vmul.f32 %v1408, %v1631
        %v1737 = vmul.f32 %v1409, %v1635
        %v1738 = vmul.f32 %v1410, %v1631
        %v1739 = vmul.f32 %v1411, %v1635
        %v1740 = vmul.f32 %v1412, %v1639
        %v1741 = vmul.f32 %v1413, %v1643
        %v1742 = vmul.f32 %v1414, %v1639
        %v1743 = vmul.f32 %v1415, %v1643
        %v1744 = vmul.f32 %v1416, %v1647
        %v1745 = vmul.f32 %v1417, %v1651
        %v1746 = vmul.f32 %v1418, %v1647
        %v1747 = vmul.f32 %v1419, %v1651
        %v1748 = vlaneseq
        %v1749 = vshrl.u32 %v1748, 7
        %v1750 = vsub.s32 0, %v1749
        %v1751 = vrot.slane %v515, %v1750
        %1753 = vbcast.lane.b32.xlu0 %v1751, 256
        %v1754 = vpop.permute.xlu0 %1753
        %s1756 = sor.u32 256, 8
        %1757 = vbcast.lane.b32.xlu0 %v1751, %s1756
        %v1758 = vpop.permute.xlu0 %1757
        %v1759 = vlaneseq
        %v1760 = vshrl.u32 %v1759, 7
        %v1761 = vsub.s32 1, %v1760
        %v1762 = vrot.slane %v515, %v1761
        %1764 = vbcast.lane.b32.xlu0 %v1762, 256
        %v1765 = vpop.permute.xlu0 %1764
        %s1767 = sor.u32 256, 8
        %1768 = vbcast.lane.b32.xlu0 %v1762, %s1767
        %v1769 = vpop.permute.xlu0 %1768
        %v1770 = vlaneseq
        %v1771 = vshrl.u32 %v1770, 7
        %v1772 = vsub.s32 2, %v1771
        %v1773 = vrot.slane %v515, %v1772
        %1775 = vbcast.lane.b32.xlu0 %v1773, 256
        %v1776 = vpop.permute.xlu0 %1775
        %s1778 = sor.u32 256, 8
        %1779 = vbcast.lane.b32.xlu0 %v1773, %s1778
        %v1780 = vpop.permute.xlu0 %1779
        %v1781 = vlaneseq
        %v1782 = vshrl.u32 %v1781, 7
        %v1783 = vsub.s32 3, %v1782
        %v1784 = vrot.slane %v515, %v1783
        %1786 = vbcast.lane.b32.xlu0 %v1784, 256
        %v1787 = vpop.permute.xlu0 %1786
        %s1789 = sor.u32 256, 8
        %1790 = vbcast.lane.b32.xlu0 %v1784, %s1789
        %v1791 = vpop.permute.xlu0 %1790
        %v1792 = vlaneseq
        %v1793 = vshrl.u32 %v1792, 7
        %v1794 = vsub.s32 4, %v1793
        %v1795 = vrot.slane %v515, %v1794
        %1797 = vbcast.lane.b32.xlu0 %v1795, 256
        %v1798 = vpop.permute.xlu0 %1797
        %s1800 = sor.u32 256, 8
        %1801 = vbcast.lane.b32.xlu0 %v1795, %s1800
        %v1802 = vpop.permute.xlu0 %1801
        %v1803 = vlaneseq
        %v1804 = vshrl.u32 %v1803, 7
        %v1805 = vsub.s32 5, %v1804
        %v1806 = vrot.slane %v515, %v1805
        %1808 = vbcast.lane.b32.xlu0 %v1806, 256
        %v1809 = vpop.permute.xlu0 %1808
        %s1811 = sor.u32 256, 8
        %1812 = vbcast.lane.b32.xlu0 %v1806, %s1811
        %v1813 = vpop.permute.xlu0 %1812
        %v1814 = vlaneseq
        %v1815 = vshrl.u32 %v1814, 7
        %v1816 = vsub.s32 6, %v1815
        %v1817 = vrot.slane %v515, %v1816
        %1819 = vbcast.lane.b32.xlu0 %v1817, 256
        %v1820 = vpop.permute.xlu0 %1819
        %s1822 = sor.u32 256, 8
        %1823 = vbcast.lane.b32.xlu0 %v1817, %s1822
        %v1824 = vpop.permute.xlu0 %1823
        %v1825 = vlaneseq
        %v1826 = vshrl.u32 %v1825, 7
        %v1827 = vsub.s32 7, %v1826
        %v1828 = vrot.slane %v515, %v1827
        %1830 = vbcast.lane.b32.xlu0 %v1828, 256
        %v1831 = vpop.permute.xlu0 %1830
        %s1833 = sor.u32 256, 8
        %1834 = vbcast.lane.b32.xlu0 %v1828, %s1833
        %v1835 = vpop.permute.xlu0 %1834
        %v1836 = vlaneseq
        %v1837 = vshrl.u32 %v1836, 7
        %v1838 = vsub.s32 0, %v1837
        %v1839 = vrot.slane %v516, %v1838
        %1841 = vbcast.lane.b32.xlu0 %v1839, 256
        %v1842 = vpop.permute.xlu0 %1841
        %s1844 = sor.u32 256, 8
        %1845 = vbcast.lane.b32.xlu0 %v1839, %s1844
        %v1846 = vpop.permute.xlu0 %1845
        %v1847 = vlaneseq
        %v1848 = vshrl.u32 %v1847, 7
        %v1849 = vsub.s32 1, %v1848
        %v1850 = vrot.slane %v516, %v1849
        %1852 = vbcast.lane.b32.xlu0 %v1850, 256
        %v1853 = vpop.permute.xlu0 %1852
        %s1855 = sor.u32 256, 8
        %1856 = vbcast.lane.b32.xlu0 %v1850, %s1855
        %v1857 = vpop.permute.xlu0 %1856
        %v1858 = vlaneseq
        %v1859 = vshrl.u32 %v1858, 7
        %v1860 = vsub.s32 2, %v1859
        %v1861 = vrot.slane %v516, %v1860
        %1863 = vbcast.lane.b32.xlu0 %v1861, 256
        %v1864 = vpop.permute.xlu0 %1863
        %s1866 = sor.u32 256, 8
        %1867 = vbcast.lane.b32.xlu0 %v1861, %s1866
        %v1868 = vpop.permute.xlu0 %1867
        %v1869 = vlaneseq
        %v1870 = vshrl.u32 %v1869, 7
        %v1871 = vsub.s32 3, %v1870
        %v1872 = vrot.slane %v516, %v1871
        %1874 = vbcast.lane.b32.xlu0 %v1872, 256
        %v1875 = vpop.permute.xlu0 %1874
        %s1877 = sor.u32 256, 8
        %1878 = vbcast.lane.b32.xlu0 %v1872, %s1877
        %v1879 = vpop.permute.xlu0 %1878
        %v1880 = vlaneseq
        %v1881 = vshrl.u32 %v1880, 7
        %v1882 = vsub.s32 4, %v1881
        %v1883 = vrot.slane %v516, %v1882
        %1885 = vbcast.lane.b32.xlu0 %v1883, 256
        %v1886 = vpop.permute.xlu0 %1885
        %s1888 = sor.u32 256, 8
        %1889 = vbcast.lane.b32.xlu0 %v1883, %s1888
        %v1890 = vpop.permute.xlu0 %1889
        %v1891 = vlaneseq
        %v1892 = vshrl.u32 %v1891, 7
        %v1893 = vsub.s32 5, %v1892
        %v1894 = vrot.slane %v516, %v1893
        %1896 = vbcast.lane.b32.xlu0 %v1894, 256
        %v1897 = vpop.permute.xlu0 %1896
        %s1899 = sor.u32 256, 8
        %1900 = vbcast.lane.b32.xlu0 %v1894, %s1899
        %v1901 = vpop.permute.xlu0 %1900
        %v1902 = vlaneseq
        %v1903 = vshrl.u32 %v1902, 7
        %v1904 = vsub.s32 6, %v1903
        %v1905 = vrot.slane %v516, %v1904
        %1907 = vbcast.lane.b32.xlu0 %v1905, 256
        %v1908 = vpop.permute.xlu0 %1907
        %s1910 = sor.u32 256, 8
        %1911 = vbcast.lane.b32.xlu0 %v1905, %s1910
        %v1912 = vpop.permute.xlu0 %1911
        %v1913 = vlaneseq
        %v1914 = vshrl.u32 %v1913, 7
        %v1915 = vsub.s32 7, %v1914
        %v1916 = vrot.slane %v516, %v1915
        %1918 = vbcast.lane.b32.xlu0 %v1916, 256
        %v1919 = vpop.permute.xlu0 %1918
        %s1921 = sor.u32 256, 8
        %1922 = vbcast.lane.b32.xlu0 %v1916, %s1921
        %v1923 = vpop.permute.xlu0 %1922
        %v1924 = vmul.f32 %v1684, %v1754
        %v1925 = vmul.f32 %v1685, %v1754
        %v1926 = vmul.f32 %v1686, %v1758
        %v1927 = vmul.f32 %v1687, %v1758
        %v1928 = vmul.f32 %v1688, %v1765
        %v1929 = vmul.f32 %v1689, %v1765
        %v1930 = vmul.f32 %v1690, %v1769
        %v1931 = vmul.f32 %v1691, %v1769
        %v1932 = vmul.f32 %v1692, %v1776
        %v1933 = vmul.f32 %v1693, %v1776
        %v1934 = vmul.f32 %v1694, %v1780
        %v1935 = vmul.f32 %v1695, %v1780
        %v1936 = vmul.f32 %v1696, %v1787
        %v1937 = vmul.f32 %v1697, %v1787
        %v1938 = vmul.f32 %v1698, %v1791
        %v1939 = vmul.f32 %v1699, %v1791
        %v1940 = vmul.f32 %v1700, %v1798
        %v1941 = vmul.f32 %v1701, %v1798
        %v1942 = vmul.f32 %v1702, %v1802
        %v1943 = vmul.f32 %v1703, %v1802
        %v1944 = vmul.f32 %v1704, %v1809
        %v1945 = vmul.f32 %v1705, %v1809
        %v1946 = vmul.f32 %v1706, %v1813
        %v1947 = vmul.f32 %v1707, %v1813
        %v1948 = vmul.f32 %v1708, %v1820
        %v1949 = vmul.f32 %v1709, %v1820
        %v1950 = vmul.f32 %v1710, %v1824
        %v1951 = vmul.f32 %v1711, %v1824
        %v1952 = vmul.f32 %v1712, %v1831
        %v1953 = vmul.f32 %v1713, %v1831
        %v1954 = vmul.f32 %v1714, %v1835
        %v1955 = vmul.f32 %v1715, %v1835
        %v1956 = vmul.f32 %v1716, %v1842
        %v1957 = vmul.f32 %v1717, %v1842
        %v1958 = vmul.f32 %v1718, %v1846
        %v1959 = vmul.f32 %v1719, %v1846
        %v1960 = vmul.f32 %v1720, %v1853
        %v1961 = vmul.f32 %v1721, %v1853
        %v1962 = vmul.f32 %v1722, %v1857
        %v1963 = vmul.f32 %v1723, %v1857
        %v1964 = vmul.f32 %v1724, %v1864
        %v1965 = vmul.f32 %v1725, %v1864
        %v1966 = vmul.f32 %v1726, %v1868
        %v1967 = vmul.f32 %v1727, %v1868
        %v1968 = vmul.f32 %v1728, %v1875
        %v1969 = vmul.f32 %v1729, %v1875
        %v1970 = vmul.f32 %v1730, %v1879
        %v1971 = vmul.f32 %v1731, %v1879
        %v1972 = vmul.f32 %v1732, %v1886
        %v1973 = vmul.f32 %v1733, %v1886
        %v1974 = vmul.f32 %v1734, %v1890
        %v1975 = vmul.f32 %v1735, %v1890
        %v1976 = vmul.f32 %v1736, %v1897
        %v1977 = vmul.f32 %v1737, %v1897
        %v1978 = vmul.f32 %v1738, %v1901
        %v1979 = vmul.f32 %v1739, %v1901
        %v1980 = vmul.f32 %v1740, %v1908
        %v1981 = vmul.f32 %v1741, %v1908
        %v1982 = vmul.f32 %v1742, %v1912
        %v1983 = vmul.f32 %v1743, %v1912
        %v1984 = vmul.f32 %v1744, %v1919
        %v1985 = vmul.f32 %v1745, %v1919
        %v1986 = vmul.f32 %v1746, %v1923
        %v1987 = vmul.f32 %v1747, %v1923
        %v1988 = vadd.f32 %v1924, 0.0
        %v1989 = vadd.f32 %v1925, 0.0
        %v1990 = vadd.f32 %v1926, 0.0
        %v1991 = vadd.f32 %v1927, 0.0
        %v1992 = vadd.f32 %v1988, %v1928
        %v1993 = vadd.f32 %v1989, %v1929
        %v1994 = vadd.f32 %v1990, %v1930
        %v1995 = vadd.f32 %v1991, %v1931
        %v1996 = vadd.f32 %v1992, %v1932
        %v1997 = vadd.f32 %v1993, %v1933
        %v1998 = vadd.f32 %v1994, %v1934
        %v1999 = vadd.f32 %v1995, %v1935
        %v2000 = vadd.f32 %v1996, %v1936
        %v2001 = vadd.f32 %v1997, %v1937
        %v2002 = vadd.f32 %v1998, %v1938
        %v2003 = vadd.f32 %v1999, %v1939
        %v2004 = vadd.f32 %v2000, %v1940
        %v2005 = vadd.f32 %v2001, %v1941
        %v2006 = vadd.f32 %v2002, %v1942
        %v2007 = vadd.f32 %v2003, %v1943
        %v2008 = vadd.f32 %v2004, %v1944
        %v2009 = vadd.f32 %v2005, %v1945
        %v2010 = vadd.f32 %v2006, %v1946
        %v2011 = vadd.f32 %v2007, %v1947
        %v2012 = vadd.f32 %v2008, %v1948
        %v2013 = vadd.f32 %v2009, %v1949
        %v2014 = vadd.f32 %v2010, %v1950
        %v2015 = vadd.f32 %v2011, %v1951
        %v2016 = vadd.f32 %v2012, %v1952
        %v2017 = vadd.f32 %v2013, %v1953
        %v2018 = vadd.f32 %v2014, %v1954
        %v2019 = vadd.f32 %v2015, %v1955
        %v2020 = vadd.f32 %v2016, %v1956
        %v2021 = vadd.f32 %v2017, %v1957
        %v2022 = vadd.f32 %v2018, %v1958
        %v2023 = vadd.f32 %v2019, %v1959
        %v2024 = vadd.f32 %v2020, %v1960
        %v2025 = vadd.f32 %v2021, %v1961
        %v2026 = vadd.f32 %v2022, %v1962
        %v2027 = vadd.f32 %v2023, %v1963
        %v2028 = vadd.f32 %v2024, %v1964
        %v2029 = vadd.f32 %v2025, %v1965
        %v2030 = vadd.f32 %v2026, %v1966
        %v2031 = vadd.f32 %v2027, %v1967
        %v2032 = vadd.f32 %v2028, %v1968
        %v2033 = vadd.f32 %v2029, %v1969
        %v2034 = vadd.f32 %v2030, %v1970
        %v2035 = vadd.f32 %v2031, %v1971
        %v2036 = vadd.f32 %v2032, %v1972
        %v2037 = vadd.f32 %v2033, %v1973
        %v2038 = vadd.f32 %v2034, %v1974
        %v2039 = vadd.f32 %v2035, %v1975
        %v2040 = vadd.f32 %v2036, %v1976
        %v2041 = vadd.f32 %v2037, %v1977
        %v2042 = vadd.f32 %v2038, %v1978
        %v2043 = vadd.f32 %v2039, %v1979
        %v2044 = vadd.f32 %v2040, %v1980
        %v2045 = vadd.f32 %v2041, %v1981
        %v2046 = vadd.f32 %v2042, %v1982
        %v2047 = vadd.f32 %v2043, %v1983
        %v2048 = vadd.f32 %v2044, %v1984
        %v2049 = vadd.f32 %v2045, %v1985
        %v2050 = vadd.f32 %v2046, %v1986
        %v2051 = vadd.f32 %v2047, %v1987
        %v2052 = vadd.f32 %v828, %v2048
        %v2053 = vadd.f32 %v830, %v2049
        %v2054 = vadd.f32 %v832, %v2050
        %v2055 = vadd.f32 %v834, %v2051
        %v2056 = vld [vmem:[%s4] sm:$0x3]
        %v2058 = vlaneseq
        %v2059 = vshrl.u32 %v2058, 7
        %v2060 = vsub.s32 0, %v2059
        %v2061 = vrot.slane %v2056, %v2060
        %v2062 = vlaneseq
        %v2063 = vshrl.u32 %v2062, 7
        %v2064 = vsub.s32 1, %v2063
        %v2065 = vrot.slane %v2056, %v2064
        %v2068 = vadd.f32 %v2052, %v2061
        %v2069 = vadd.f32 %v2053, %v2065
        %v2070 = vadd.f32 %v2054, %v2061
        %v2071 = vadd.f32 %v2055, %v2065
        %v2072 = vmax.f32 %v2068, 0.0
        %v2073 = vmax.f32 %v2069, 0.0
        %v2074 = vmax.f32 %v2070, 0.0
        %v2075 = vmax.f32 %v2071, 0.0
        %v2076 = vpack.c.bf16 %v2074, %v2072
        %v2077 = vpack.c.bf16 %v2075, %v2073
        %v2078 = vld [vmem:[#allocation4] sm:$0xff]
        %v2079 = vld [vmem:[#allocation4 + $0x8] sm:$0xff]
        %v2080 = vld [vmem:[#allocation4 + $0x10] sm:$0xff]
        %v2081 = vld [vmem:[#allocation4 + $0x18] sm:$0xff]
        %v2082 = vld [vmem:[#allocation4 + $0x20] sm:$0xff]
        %v2083 = vld [vmem:[#allocation4 + $0x28] sm:$0xff]
        %v2084 = vld [vmem:[#allocation4 + $0x30] sm:$0xff]
        %v2085 = vld [vmem:[#allocation4 + $0x38] sm:$0xff]
        %v2086 = vld [vmem:[#allocation4 + $0x40] sm:$0xff]
        %v2087 = vld [vmem:[#allocation4 + $0x48] sm:$0xff]
        %v2088 = vld [vmem:[#allocation4 + $0x50] sm:$0xff]
        %v2089 = vld [vmem:[#allocation4 + $0x58] sm:$0xff]
        %v2090 = vld [vmem:[#allocation4 + $0x60] sm:$0xff]
        %v2091 = vld [vmem:[#allocation4 + $0x68] sm:$0xff]
        %v2092 = vld [vmem:[#allocation4 + $0x70] sm:$0xff]
        %v2093 = vld [vmem:[#allocation4 + $0x78] sm:$0xff]
        %v2094 = vld [vmem:[#allocation4 + $0x80] sm:$0xff]
        %v2095 = vld [vmem:[#allocation4 + $0x88] sm:$0xff]
        %v2096 = vld [vmem:[#allocation4 + $0x90] sm:$0xff]
        %v2097 = vld [vmem:[#allocation4 + $0x98] sm:$0xff]
        %v2098 = vld [vmem:[#allocation4 + $0xa0] sm:$0xff]
        %v2099 = vld [vmem:[#allocation4 + $0xa8] sm:$0xff]
        %v2100 = vld [vmem:[#allocation4 + $0xb0] sm:$0xff]
        %v2101 = vld [vmem:[#allocation4 + $0xb8] sm:$0xff]
        %v2102 = vld [vmem:[#allocation4 + $0xc0] sm:$0xff]
        %v2103 = vld [vmem:[#allocation4 + $0xc8] sm:$0xff]
        %v2104 = vld [vmem:[#allocation4 + $0xd0] sm:$0xff]
        %v2105 = vld [vmem:[#allocation4 + $0xd8] sm:$0xff]
        %v2106 = vld [vmem:[#allocation4 + $0xe0] sm:$0xff]
        %v2107 = vld [vmem:[#allocation4 + $0xe8] sm:$0xff]
        %v2108 = vld [vmem:[#allocation4 + $0xf0] sm:$0xff]
        %v2109 = vld [vmem:[#allocation4 + $0xf8] sm:$0xff]
        %v2110 = vld [vmem:[#allocation4 + $0x100] sm:$0xff]
        %v2111 = vld [vmem:[#allocation4 + $0x108] sm:$0xff]
        %v2112 = vld [vmem:[#allocation4 + $0x110] sm:$0xff]
        %v2113 = vld [vmem:[#allocation4 + $0x118] sm:$0xff]
        %v2114 = vld [vmem:[#allocation4 + $0x120] sm:$0xff]
        %v2115 = vld [vmem:[#allocation4 + $0x128] sm:$0xff]
        %v2116 = vld [vmem:[#allocation4 + $0x130] sm:$0xff]
        %v2117 = vld [vmem:[#allocation4 + $0x138] sm:$0xff]
        %v2118 = vld [vmem:[#allocation4 + $0x140] sm:$0xff]
        %v2119 = vld [vmem:[#allocation4 + $0x148] sm:$0xff]
        %v2120 = vld [vmem:[#allocation4 + $0x150] sm:$0xff]
        %v2121 = vld [vmem:[#allocation4 + $0x158] sm:$0xff]
        %v2122 = vld [vmem:[#allocation4 + $0x160] sm:$0xff]
        %v2123 = vld [vmem:[#allocation4 + $0x168] sm:$0xff]
        %v2124 = vld [vmem:[#allocation4 + $0x170] sm:$0xff]
        %v2125 = vld [vmem:[#allocation4 + $0x178] sm:$0xff]
        %v2126 = vld [vmem:[#allocation4 + $0x180] sm:$0xff]
        %v2127 = vld [vmem:[#allocation4 + $0x188] sm:$0xff]
        %v2128 = vld [vmem:[#allocation4 + $0x190] sm:$0xff]
        %v2129 = vld [vmem:[#allocation4 + $0x198] sm:$0xff]
        %v2130 = vld [vmem:[#allocation4 + $0x1a0] sm:$0xff]
        %v2131 = vld [vmem:[#allocation4 + $0x1a8] sm:$0xff]
        %v2132 = vld [vmem:[#allocation4 + $0x1b0] sm:$0xff]
        %v2133 = vld [vmem:[#allocation4 + $0x1b8] sm:$0xff]
        %v2134 = vld [vmem:[#allocation4 + $0x1c0] sm:$0xff]
        %v2135 = vld [vmem:[#allocation4 + $0x1c8] sm:$0xff]
        %v2136 = vld [vmem:[#allocation4 + $0x1d0] sm:$0xff]
        %v2137 = vld [vmem:[#allocation4 + $0x1d8] sm:$0xff]
        %v2138 = vld [vmem:[#allocation4 + $0x1e0] sm:$0xff]
        %v2139 = vld [vmem:[#allocation4 + $0x1e8] sm:$0xff]
        %v2140 = vld [vmem:[#allocation4 + $0x1f0] sm:$0xff]
        %v2141 = vld [vmem:[#allocation4 + $0x1f8] sm:$0xff]
        %v2142 = vld [vmem:[#allocation6] sm:$0xf]
        %v2144 = vlaneseq
        %v2145 = vshrl.u32 %v2144, 7
        %v2146 = vsub.s32 0, %v2145
        %v2147 = vrot.slane %v2142, %v2146
        %v2148 = vlaneseq
        %v2149 = vshrl.u32 %v2148, 7
        %v2150 = vsub.s32 1, %v2149
        %v2151 = vrot.slane %v2142, %v2150
        %v2152 = vlaneseq
        %v2153 = vshrl.u32 %v2152, 7
        %v2154 = vsub.s32 2, %v2153
        %v2155 = vrot.slane %v2142, %v2154
        %v2156 = vlaneseq
        %v2157 = vshrl.u32 %v2156, 7
        %v2158 = vsub.s32 3, %v2157
        %v2159 = vrot.slane %v2142, %v2158
        %v2228 = vunpack.c.l.b16 %v2078
        %v2229 = vunpack.c.h.b16 %v2078
        %v2230 = vunpack.c.l.b16 %v2079
        %v2231 = vunpack.c.h.b16 %v2079
        %v2232 = vunpack.c.l.b16 %v2080
        %v2233 = vunpack.c.h.b16 %v2080
        %v2234 = vunpack.c.l.b16 %v2081
        %v2235 = vunpack.c.h.b16 %v2081
        %v2236 = vunpack.c.l.b16 %v2082
        %v2237 = vunpack.c.h.b16 %v2082
        %v2238 = vunpack.c.l.b16 %v2083
        %v2239 = vunpack.c.h.b16 %v2083
        %v2240 = vunpack.c.l.b16 %v2084
        %v2241 = vunpack.c.h.b16 %v2084
        %v2242 = vunpack.c.l.b16 %v2085
        %v2243 = vunpack.c.h.b16 %v2085
        %v2244 = vunpack.c.l.b16 %v2086
        %v2245 = vunpack.c.h.b16 %v2086
        %v2246 = vunpack.c.l.b16 %v2087
        %v2247 = vunpack.c.h.b16 %v2087
        %v2248 = vunpack.c.l.b16 %v2088
        %v2249 = vunpack.c.h.b16 %v2088
        %v2250 = vunpack.c.l.b16 %v2089
        %v2251 = vunpack.c.h.b16 %v2089
        %v2252 = vunpack.c.l.b16 %v2090
        %v2253 = vunpack.c.h.b16 %v2090
        %v2254 = vunpack.c.l.b16 %v2091
        %v2255 = vunpack.c.h.b16 %v2091
        %v2256 = vunpack.c.l.b16 %v2092
        %v2257 = vunpack.c.h.b16 %v2092
        %v2258 = vunpack.c.l.b16 %v2093
        %v2259 = vunpack.c.h.b16 %v2093
        %v2260 = vunpack.c.l.b16 %v2094
        %v2261 = vunpack.c.h.b16 %v2094
        %v2262 = vunpack.c.l.b16 %v2095
        %v2263 = vunpack.c.h.b16 %v2095
        %v2264 = vunpack.c.l.b16 %v2096
        %v2265 = vunpack.c.h.b16 %v2096
        %v2266 = vunpack.c.l.b16 %v2097
        %v2267 = vunpack.c.h.b16 %v2097
        %v2268 = vunpack.c.l.b16 %v2098
        %v2269 = vunpack.c.h.b16 %v2098
        %v2270 = vunpack.c.l.b16 %v2099
        %v2271 = vunpack.c.h.b16 %v2099
        %v2272 = vunpack.c.l.b16 %v2100
        %v2273 = vunpack.c.h.b16 %v2100
        %v2274 = vunpack.c.l.b16 %v2101
        %v2275 = vunpack.c.h.b16 %v2101
        %v2276 = vunpack.c.l.b16 %v2102
        %v2277 = vunpack.c.h.b16 %v2102
        %v2278 = vunpack.c.l.b16 %v2103
        %v2279 = vunpack.c.h.b16 %v2103
        %v2280 = vunpack.c.l.b16 %v2104
        %v2281 = vunpack.c.h.b16 %v2104
        %v2282 = vunpack.c.l.b16 %v2105
        %v2283 = vunpack.c.h.b16 %v2105
        %v2284 = vunpack.c.l.b16 %v2106
        %v2285 = vunpack.c.h.b16 %v2106
        %v2286 = vunpack.c.l.b16 %v2107
        %v2287 = vunpack.c.h.b16 %v2107
        %v2288 = vunpack.c.l.b16 %v2108
        %v2289 = vunpack.c.h.b16 %v2108
        %v2290 = vunpack.c.l.b16 %v2109
        %v2291 = vunpack.c.h.b16 %v2109
        %v2292 = vunpack.c.l.b16 %v2110
        %v2293 = vunpack.c.h.b16 %v2110
        %v2294 = vunpack.c.l.b16 %v2111
        %v2295 = vunpack.c.h.b16 %v2111
        %v2296 = vunpack.c.l.b16 %v2112
        %v2297 = vunpack.c.h.b16 %v2112
        %v2298 = vunpack.c.l.b16 %v2113
        %v2299 = vunpack.c.h.b16 %v2113
        %v2300 = vunpack.c.l.b16 %v2114
        %v2301 = vunpack.c.h.b16 %v2114
        %v2302 = vunpack.c.l.b16 %v2115
        %v2303 = vunpack.c.h.b16 %v2115
        %v2304 = vunpack.c.l.b16 %v2116
        %v2305 = vunpack.c.h.b16 %v2116
        %v2306 = vunpack.c.l.b16 %v2117
        %v2307 = vunpack.c.h.b16 %v2117
        %v2308 = vunpack.c.l.b16 %v2118
        %v2309 = vunpack.c.h.b16 %v2118
        %v2310 = vunpack.c.l.b16 %v2119
        %v2311 = vunpack.c.h.b16 %v2119
        %v2312 = vunpack.c.l.b16 %v2120
        %v2313 = vunpack.c.h.b16 %v2120
        %v2314 = vunpack.c.l.b16 %v2121
        %v2315 = vunpack.c.h.b16 %v2121
        %v2316 = vunpack.c.l.b16 %v2122
        %v2317 = vunpack.c.h.b16 %v2122
        %v2318 = vunpack.c.l.b16 %v2123
        %v2319 = vunpack.c.h.b16 %v2123
        %v2320 = vunpack.c.l.b16 %v2124
        %v2321 = vunpack.c.h.b16 %v2124
        %v2322 = vunpack.c.l.b16 %v2125
        %v2323 = vunpack.c.h.b16 %v2125
        %v2324 = vunpack.c.l.b16 %v2126
        %v2325 = vunpack.c.h.b16 %v2126
        %v2326 = vunpack.c.l.b16 %v2127
        %v2327 = vunpack.c.h.b16 %v2127
        %v2328 = vunpack.c.l.b16 %v2128
        %v2329 = vunpack.c.h.b16 %v2128
        %v2330 = vunpack.c.l.b16 %v2129
        %v2331 = vunpack.c.h.b16 %v2129
        %v2332 = vunpack.c.l.b16 %v2130
        %v2333 = vunpack.c.h.b16 %v2130
        %v2334 = vunpack.c.l.b16 %v2131
        %v2335 = vunpack.c.h.b16 %v2131
        %v2336 = vunpack.c.l.b16 %v2132
        %v2337 = vunpack.c.h.b16 %v2132
        %v2338 = vunpack.c.l.b16 %v2133
        %v2339 = vunpack.c.h.b16 %v2133
        %v2340 = vunpack.c.l.b16 %v2134
        %v2341 = vunpack.c.h.b16 %v2134
        %v2342 = vunpack.c.l.b16 %v2135
        %v2343 = vunpack.c.h.b16 %v2135
        %v2344 = vunpack.c.l.b16 %v2136
        %v2345 = vunpack.c.h.b16 %v2136
        %v2346 = vunpack.c.l.b16 %v2137
        %v2347 = vunpack.c.h.b16 %v2137
        %v2348 = vunpack.c.l.b16 %v2138
        %v2349 = vunpack.c.h.b16 %v2138
        %v2350 = vunpack.c.l.b16 %v2139
        %v2351 = vunpack.c.h.b16 %v2139
        %v2352 = vunpack.c.l.b16 %v2140
        %v2353 = vunpack.c.h.b16 %v2140
        %v2354 = vunpack.c.l.b16 %v2141
        %v2355 = vunpack.c.h.b16 %v2141
        %v2356 = vpack.c.b16 %v2232, %v2228
        %v2357 = vpack.c.b16 %v2233, %v2229
        %v2358 = vpack.c.b16 %v2234, %v2230
        %v2359 = vpack.c.b16 %v2235, %v2231
        %v2360 = vpack.c.b16 %v2240, %v2236
        %v2361 = vpack.c.b16 %v2241, %v2237
        %v2362 = vpack.c.b16 %v2242, %v2238
        %v2363 = vpack.c.b16 %v2243, %v2239
        %v2364 = vpack.c.b16 %v2248, %v2244
        %v2365 = vpack.c.b16 %v2249, %v2245
        %v2366 = vpack.c.b16 %v2250, %v2246
        %v2367 = vpack.c.b16 %v2251, %v2247
        %v2368 = vpack.c.b16 %v2256, %v2252
        %v2369 = vpack.c.b16 %v2257, %v2253
        %v2370 = vpack.c.b16 %v2258, %v2254
        %v2371 = vpack.c.b16 %v2259, %v2255
        %v2372 = vpack.c.b16 %v2264, %v2260
        %v2373 = vpack.c.b16 %v2265, %v2261
        %v2374 = vpack.c.b16 %v2266, %v2262
        %v2375 = vpack.c.b16 %v2267, %v2263
        %v2376 = vpack.c.b16 %v2272, %v2268
        %v2377 = vpack.c.b16 %v2273, %v2269
        %v2378 = vpack.c.b16 %v2274, %v2270
        %v2379 = vpack.c.b16 %v2275, %v2271
        %v2380 = vpack.c.b16 %v2280, %v2276
        %v2381 = vpack.c.b16 %v2281, %v2277
        %v2382 = vpack.c.b16 %v2282, %v2278
        %v2383 = vpack.c.b16 %v2283, %v2279
        %v2384 = vpack.c.b16 %v2288, %v2284
        %v2385 = vpack.c.b16 %v2289, %v2285
        %v2386 = vpack.c.b16 %v2290, %v2286
        %v2387 = vpack.c.b16 %v2291, %v2287
        %v2388 = vpack.c.b16 %v2296, %v2292
        %v2389 = vpack.c.b16 %v2297, %v2293
        %v2390 = vpack.c.b16 %v2298, %v2294
        %v2391 = vpack.c.b16 %v2299, %v2295
        %v2392 = vpack.c.b16 %v2304, %v2300
        %v2393 = vpack.c.b16 %v2305, %v2301
        %v2394 = vpack.c.b16 %v2306, %v2302
        %v2395 = vpack.c.b16 %v2307, %v2303
        %v2396 = vpack.c.b16 %v2312, %v2308
        %v2397 = vpack.c.b16 %v2313, %v2309
        %v2398 = vpack.c.b16 %v2314, %v2310
        %v2399 = vpack.c.b16 %v2315, %v2311
        %v2400 = vpack.c.b16 %v2320, %v2316
        %v2401 = vpack.c.b16 %v2321, %v2317
        %v2402 = vpack.c.b16 %v2322, %v2318
        %v2403 = vpack.c.b16 %v2323, %v2319
        %v2404 = vpack.c.b16 %v2328, %v2324
        %v2405 = vpack.c.b16 %v2329, %v2325
        %v2406 = vpack.c.b16 %v2330, %v2326
        %v2407 = vpack.c.b16 %v2331, %v2327
        %v2408 = vpack.c.b16 %v2336, %v2332
        %v2409 = vpack.c.b16 %v2337, %v2333
        %v2410 = vpack.c.b16 %v2338, %v2334
        %v2411 = vpack.c.b16 %v2339, %v2335
        %v2412 = vpack.c.b16 %v2344, %v2340
        %v2413 = vpack.c.b16 %v2345, %v2341
        %v2414 = vpack.c.b16 %v2346, %v2342
        %v2415 = vpack.c.b16 %v2347, %v2343
        %v2416 = vpack.c.b16 %v2352, %v2348
        %v2417 = vpack.c.b16 %v2353, %v2349
        %v2418 = vpack.c.b16 %v2354, %v2350
        %v2419 = vpack.c.b16 %v2355, %v2351
        %2484 = vmatprep.subr.bf16.mxu0 %v2357
        %2485 = vmatpush1.bf16.msra.mxu0 %v2356
        %2486 = vmatprep.subr.bf16.mxu0 %v2361
        %2487 = vmatpush1.bf16.msra.mxu0 %v2360
        %2488 = vmatprep.subr.bf16.mxu0 %v2365
        %2489 = vmatpush1.bf16.msra.mxu0 %v2364
        %2490 = vmatprep.subr.bf16.mxu0 %v2369
        %2491 = vmatpush1.bf16.msra.mxu0 %v2368
        %2492 = vmatprep.subr.bf16.mxu0 %v2373
        %2493 = vmatpush1.bf16.msra.mxu0 %v2372
        %2494 = vmatprep.subr.bf16.mxu0 %v2377
        %2495 = vmatpush1.bf16.msra.mxu0 %v2376
        %2496 = vmatprep.subr.bf16.mxu0 %v2381
        %2497 = vmatpush1.bf16.msra.mxu0 %v2380
        %2498 = vmatprep.subr.bf16.mxu0 %v2385
        %2499 = vmatpush1.bf16.msra.mxu0 %v2384
        %2500 = vmatprep.subr.bf16.mxu0 %v2389
        %2501 = vmatpush1.bf16.msra.mxu0 %v2388
        %2502 = vmatprep.subr.bf16.mxu0 %v2393
        %2503 = vmatpush1.bf16.msra.mxu0 %v2392
        %2504 = vmatprep.subr.bf16.mxu0 %v2397
        %2505 = vmatpush1.bf16.msra.mxu0 %v2396
        %2506 = vmatprep.subr.bf16.mxu0 %v2401
        %2507 = vmatpush1.bf16.msra.mxu0 %v2400
        %2508 = vmatprep.subr.bf16.mxu0 %v2405
        %2509 = vmatpush1.bf16.msra.mxu0 %v2404
        %2510 = vmatprep.subr.bf16.mxu0 %v2409
        %2511 = vmatpush1.bf16.msra.mxu0 %v2408
        %2512 = vmatprep.subr.bf16.mxu0 %v2413
        %2513 = vmatpush1.bf16.msra.mxu0 %v2412
        %2514 = vmatprep.subr.bf16.mxu0 %v2417
        %2515 = vmatpush1.bf16.msra.mxu0 %v2416
        %2516 = vmatprep.mubr.bf16.mxu0 %v2077
        %2517 = vmatmul.mubr.bf16.gmra.mrb[0].mxu0 %v2076
        %v2518 = vpop.f32.mrb[0].mxu0
        %v2519 = vadd.f32 %v2147, %v2518
        %v2520 = vpop.f32.mrb[0].mxu0
        %v2521 = vadd.f32 %v2151, %v2520
        %v2522 = vpop.f32.mrb[0].mxu0
        %v2523 = vadd.f32 %v2147, %v2522
        %v2524 = vpop.f32.mrb[0].mxu0
        %v2525 = vadd.f32 %v2151, %v2524
        %2526 = vdwg.mxu0
        %2527 = vmatprep.subr.bf16.mxu0 %v2359
        %2528 = vmatpush1.bf16.msra.mxu0 %v2358
        %2529 = vmatprep.subr.bf16.mxu0 %v2363
        %2530 = vmatpush1.bf16.msra.mxu0 %v2362
        %2531 = vmatprep.subr.bf16.mxu0 %v2367
        %2532 = vmatpush1.bf16.msra.mxu0 %v2366
        %2533 = vmatprep.subr.bf16.mxu0 %v2371
        %2534 = vmatpush1.bf16.msra.mxu0 %v2370
        %2535 = vmatprep.subr.bf16.mxu0 %v2375
        %2536 = vmatpush1.bf16.msra.mxu0 %v2374
        %2537 = vmatprep.subr.bf16.mxu0 %v2379
        %2538 = vmatpush1.bf16.msra.mxu0 %v2378
        %2539 = vmatprep.subr.bf16.mxu0 %v2383
        %2540 = vmatpush1.bf16.msra.mxu0 %v2382
        %2541 = vmatprep.subr.bf16.mxu0 %v2387
        %2542 = vmatpush1.bf16.msra.mxu0 %v2386
        %2543 = vmatprep.subr.bf16.mxu0 %v2391
        %2544 = vmatpush1.bf16.msra.mxu0 %v2390
        %2545 = vmatprep.subr.bf16.mxu0 %v2395
        %2546 = vmatpush1.bf16.msra.mxu0 %v2394
        %2547 = vmatprep.subr.bf16.mxu0 %v2399
        %2548 = vmatpush1.bf16.msra.mxu0 %v2398
        %2549 = vmatprep.subr.bf16.mxu0 %v2403
        %2550 = vmatpush1.bf16.msra.mxu0 %v2402
        %2551 = vmatprep.subr.bf16.mxu0 %v2407
        %2552 = vmatpush1.bf16.msra.mxu0 %v2406
        %2553 = vmatprep.subr.bf16.mxu0 %v2411
        %2554 = vmatpush1.bf16.msra.mxu0 %v2410
        %2555 = vmatprep.subr.bf16.mxu0 %v2415
        %2556 = vmatpush1.bf16.msra.mxu0 %v2414
        %2557 = vmatprep.subr.bf16.mxu0 %v2419
        %2558 = vmatpush1.bf16.msra.mxu0 %v2418
        %2559 = vmatprep.mubr.bf16.mxu0 %v2077
        %2560 = vmatmul.mubr.bf16.gmra.mrb[0].mxu0 %v2076
        %v2561 = vpop.f32.mrb[0].mxu0
        %v2562 = vadd.f32 %v2155, %v2561
        %v2563 = vpop.f32.mrb[0].mxu0
        %v2564 = vadd.f32 %v2159, %v2563
        %v2565 = vpop.f32.mrb[0].mxu0
        %v2566 = vadd.f32 %v2155, %v2565
        %v2567 = vpop.f32.mrb[0].mxu0
        %v2568 = vadd.f32 %v2159, %v2567
        %2569 = vdwg.mxu0
        %v2572 = vcombine.high %v2521, %v2521
        %v2574 = vunpack.c.l.s4 1966171168
        %v2575 = vunpack.c.0.s8 %v2574
        %v2576 = vlaneseq
        %v2577 = vshrl.u32 %v2576, 7
        %v2578 = vsub.s32 %v2575, %v2577
        %v2579 = vrot.slane %v2521, %v2578
        %v2581 = vunpack.c.l.s4 1966171168
        %v2582 = vunpack.c.0.s8 %v2581
        %v2583 = vlaneseq
        %v2584 = vshrl.u32 %v2583, 7
        %v2585 = vsub.s32 %v2582, %v2584
        %v2586 = vrot.slane %v2572, %v2585
        %v2587 = vcombine.high %v2579, %v2579
        %v2588 = vcombine.high %v2586, %v2586
        %v2590 = vunpack.c.l.s4 1966171168
        %v2591 = vunpack.c.0.s8 %v2590
        %v2592 = vlaneseq
        %v2593 = vshrl.u32 %v2592, 7
        %v2594 = vsub.s32 %v2591, %v2593
        %v2595 = vrot.slane %v2579, %v2594
        %v2597 = vunpack.c.l.s4 1966171168
        %v2598 = vunpack.c.0.s8 %v2597
        %v2599 = vlaneseq
        %v2600 = vshrl.u32 %v2599, 7
        %v2601 = vsub.s32 %v2598, %v2600
        %v2602 = vrot.slane %v2586, %v2601
        %v2604 = vunpack.c.l.s4 1966171168
        %v2605 = vunpack.c.0.s8 %v2604
        %v2606 = vlaneseq
        %v2607 = vshrl.u32 %v2606, 7
        %v2608 = vsub.s32 %v2605, %v2607
        %v2609 = vrot.slane %v2587, %v2608
        %v2611 = vunpack.c.l.s4 1966171168
        %v2612 = vunpack.c.0.s8 %v2611
        %v2613 = vlaneseq
        %v2614 = vshrl.u32 %v2613, 7
        %v2615 = vsub.s32 %v2612, %v2614
        %v2616 = vrot.slane %v2588, %v2615
        %v2617 = vcombine.high %v2595, %v2595
        %v2618 = vcombine.high %v2602, %v2602
        %v2619 = vcombine.high %v2609, %v2609
        %v2620 = vcombine.high %v2616, %v2616
        %v2621 = vcombine.high %v2525, %v2525
        %v2623 = vunpack.c.l.s4 1966171168
        %v2624 = vunpack.c.0.s8 %v2623
        %v2625 = vlaneseq
        %v2626 = vshrl.u32 %v2625, 7
        %v2627 = vsub.s32 %v2624, %v2626
        %v2628 = vrot.slane %v2525, %v2627
        %v2630 = vunpack.c.l.s4 1966171168
        %v2631 = vunpack.c.0.s8 %v2630
        %v2632 = vlaneseq
        %v2633 = vshrl.u32 %v2632, 7
        %v2634 = vsub.s32 %v2631, %v2633
        %v2635 = vrot.slane %v2621, %v2634
        %v2636 = vcombine.high %v2628, %v2628
        %v2637 = vcombine.high %v2635, %v2635
        %v2639 = vunpack.c.l.s4 1966171168
        %v2640 = vunpack.c.0.s8 %v2639
        %v2641 = vlaneseq
        %v2642 = vshrl.u32 %v2641, 7
        %v2643 = vsub.s32 %v2640, %v2642
        %v2644 = vrot.slane %v2628, %v2643
        %v2646 = vunpack.c.l.s4 1966171168
        %v2647 = vunpack.c.0.s8 %v2646
        %v2648 = vlaneseq
        %v2649 = vshrl.u32 %v2648, 7
        %v2650 = vsub.s32 %v2647, %v2649
        %v2651 = vrot.slane %v2635, %v2650
        %v2653 = vunpack.c.l.s4 1966171168
        %v2654 = vunpack.c.0.s8 %v2653
        %v2655 = vlaneseq
        %v2656 = vshrl.u32 %v2655, 7
        %v2657 = vsub.s32 %v2654, %v2656
        %v2658 = vrot.slane %v2636, %v2657
        %v2660 = vunpack.c.l.s4 1966171168
        %v2661 = vunpack.c.0.s8 %v2660
        %v2662 = vlaneseq
        %v2663 = vshrl.u32 %v2662, 7
        %v2664 = vsub.s32 %v2661, %v2663
        %v2665 = vrot.slane %v2637, %v2664
        %v2666 = vcombine.high %v2644, %v2644
        %v2667 = vcombine.high %v2651, %v2651
        %v2668 = vcombine.high %v2658, %v2658
        %v2669 = vcombine.high %v2665, %v2665
        %v2670 = vlaneseq
        %v2671 = vshrl.u32 %v2670, 7
        %v2672 = vsub.s32 0, %v2671
        %v2673 = vrot.slane %v2595, %v2672
        %v2674 = vlaneseq
        %v2675 = vshrl.u32 %v2674, 7
        %v2676 = vsub.s32 0, %v2675
        %v2677 = vrot.slane %v2609, %v2676
        %v2678 = vlaneseq
        %v2679 = vshrl.u32 %v2678, 7
        %v2680 = vsub.s32 0, %v2679
        %v2681 = vrot.slane %v2617, %v2680
        %v2682 = vlaneseq
        %v2683 = vshrl.u32 %v2682, 7
        %v2684 = vsub.s32 0, %v2683
        %v2685 = vrot.slane %v2619, %v2684
        %v2686 = vlaneseq
        %v2687 = vshrl.u32 %v2686, 7
        %v2688 = vsub.s32 0, %v2687
        %v2689 = vrot.slane %v2602, %v2688
        %v2690 = vlaneseq
        %v2691 = vshrl.u32 %v2690, 7
        %v2692 = vsub.s32 0, %v2691
        %v2693 = vrot.slane %v2616, %v2692
        %v2694 = vlaneseq
        %v2695 = vshrl.u32 %v2694, 7
        %v2696 = vsub.s32 0, %v2695
        %v2697 = vrot.slane %v2618, %v2696
        %v2698 = vlaneseq
        %v2699 = vshrl.u32 %v2698, 7
        %v2700 = vsub.s32 0, %v2699
        %v2701 = vrot.slane %v2620, %v2700
        %v2702 = vlaneseq
        %v2703 = vshrl.u32 %v2702, 7
        %v2704 = vsub.s32 0, %v2703
        %v2705 = vrot.slane %v2644, %v2704
        %v2706 = vlaneseq
        %v2707 = vshrl.u32 %v2706, 7
        %v2708 = vsub.s32 0, %v2707
        %v2709 = vrot.slane %v2658, %v2708
        %v2710 = vlaneseq
        %v2711 = vshrl.u32 %v2710, 7
        %v2712 = vsub.s32 0, %v2711
        %v2713 = vrot.slane %v2666, %v2712
        %v2714 = vlaneseq
        %v2715 = vshrl.u32 %v2714, 7
        %v2716 = vsub.s32 0, %v2715
        %v2717 = vrot.slane %v2668, %v2716
        %v2718 = vlaneseq
        %v2719 = vshrl.u32 %v2718, 7
        %v2720 = vsub.s32 0, %v2719
        %v2721 = vrot.slane %v2651, %v2720
        %v2722 = vlaneseq
        %v2723 = vshrl.u32 %v2722, 7
        %v2724 = vsub.s32 0, %v2723
        %v2725 = vrot.slane %v2665, %v2724
        %v2726 = vlaneseq
        %v2727 = vshrl.u32 %v2726, 7
        %v2728 = vsub.s32 0, %v2727
        %v2729 = vrot.slane %v2667, %v2728
        %v2730 = vlaneseq
        %v2731 = vshrl.u32 %v2730, 7
        %v2732 = vsub.s32 0, %v2731
        %v2733 = vrot.slane %v2669, %v2732
        %v2750 = vadd.f32 %v2519, %v2673
        %v2751 = vadd.f32 %v2523, %v2673
        %v2752 = vadd.f32 %v2519, %v2677
        %v2753 = vadd.f32 %v2523, %v2677
        %v2754 = vadd.f32 %v2519, %v2681
        %v2755 = vadd.f32 %v2523, %v2681
        %v2756 = vadd.f32 %v2519, %v2685
        %v2757 = vadd.f32 %v2523, %v2685
        %v2758 = vadd.f32 %v2519, %v2689
        %v2759 = vadd.f32 %v2523, %v2689
        %v2760 = vadd.f32 %v2519, %v2693
        %v2761 = vadd.f32 %v2523, %v2693
        %v2762 = vadd.f32 %v2519, %v2697
        %v2763 = vadd.f32 %v2523, %v2697
        %v2764 = vadd.f32 %v2519, %v2701
        %v2765 = vadd.f32 %v2523, %v2701
        %v2766 = vadd.f32 %v2519, %v2705
        %v2767 = vadd.f32 %v2523, %v2705
        %v2768 = vadd.f32 %v2519, %v2709
        %v2769 = vadd.f32 %v2523, %v2709
        %v2770 = vadd.f32 %v2519, %v2713
        %v2771 = vadd.f32 %v2523, %v2713
        %v2772 = vadd.f32 %v2519, %v2717
        %v2773 = vadd.f32 %v2523, %v2717
        %v2774 = vadd.f32 %v2519, %v2721
        %v2775 = vadd.f32 %v2523, %v2721
        %v2776 = vadd.f32 %v2519, %v2725
        %v2777 = vadd.f32 %v2523, %v2725
        %v2778 = vadd.f32 %v2519, %v2729
        %v2779 = vadd.f32 %v2523, %v2729
        %v2780 = vadd.f32 %v2519, %v2733
        %v2781 = vadd.f32 %v2523, %v2733
        %v2782 = vmul.f32 %v2750, 0.5
        %v2783 = vmul.f32 %v2751, 0.5
        %v2784 = vmul.f32 %v2752, 0.5
        %v2785 = vmul.f32 %v2753, 0.5
        %v2786 = vmul.f32 %v2754, 0.5
        %v2787 = vmul.f32 %v2755, 0.5
        %v2788 = vmul.f32 %v2756, 0.5
        %v2789 = vmul.f32 %v2757, 0.5
        %v2790 = vmul.f32 %v2758, 0.5
        %v2791 = vmul.f32 %v2759, 0.5
        %v2792 = vmul.f32 %v2760, 0.5
        %v2793 = vmul.f32 %v2761, 0.5
        %v2794 = vmul.f32 %v2762, 0.5
        %v2795 = vmul.f32 %v2763, 0.5
        %v2796 = vmul.f32 %v2764, 0.5
        %v2797 = vmul.f32 %v2765, 0.5
        %v2798 = vmul.f32 %v2766, 0.5
        %v2799 = vmul.f32 %v2767, 0.5
        %v2800 = vmul.f32 %v2768, 0.5
        %v2801 = vmul.f32 %v2769, 0.5
        %v2802 = vmul.f32 %v2770, 0.5
        %v2803 = vmul.f32 %v2771, 0.5
        %v2804 = vmul.f32 %v2772, 0.5
        %v2805 = vmul.f32 %v2773, 0.5
        %v2806 = vmul.f32 %v2774, 0.5
        %v2807 = vmul.f32 %v2775, 0.5
        %v2808 = vmul.f32 %v2776, 0.5
        %v2809 = vmul.f32 %v2777, 0.5
        %v2810 = vmul.f32 %v2778, 0.5
        %v2811 = vmul.f32 %v2779, 0.5
        %v2812 = vmul.f32 %v2780, 0.5
        %v2813 = vmul.f32 %v2781, 0.5
        %v2814 = vtanh.pop %v2782
        %v2815 = vtanh.pop %v2783
        %v2816 = vtanh.pop %v2784
        %v2817 = vtanh.pop %v2785
        %v2818 = vtanh.pop %v2786
        %v2819 = vtanh.pop %v2787
        %v2820 = vtanh.pop %v2788
        %v2821 = vtanh.pop %v2789
        %v2822 = vtanh.pop %v2790
        %v2823 = vtanh.pop %v2791
        %v2824 = vtanh.pop %v2792
        %v2825 = vtanh.pop %v2793
        %v2826 = vtanh.pop %v2794
        %v2827 = vtanh.pop %v2795
        %v2828 = vtanh.pop %v2796
        %v2829 = vtanh.pop %v2797
        %v2830 = vtanh.pop %v2798
        %v2831 = vtanh.pop %v2799
        %v2832 = vtanh.pop %v2800
        %v2833 = vtanh.pop %v2801
        %v2834 = vtanh.pop %v2802
        %v2835 = vtanh.pop %v2803
        %v2836 = vtanh.pop %v2804
        %v2837 = vtanh.pop %v2805
        %v2838 = vtanh.pop %v2806
        %v2839 = vtanh.pop %v2807
        %v2840 = vtanh.pop %v2808
        %v2841 = vtanh.pop %v2809
        %v2842 = vtanh.pop %v2810
        %v2843 = vtanh.pop %v2811
        %v2844 = vtanh.pop %v2812
        %v2845 = vtanh.pop %v2813
        %v2846 = vadd.f32 %v2814, 1.0
        %v2847 = vadd.f32 %v2815, 1.0
        %v2848 = vadd.f32 %v2816, 1.0
        %v2849 = vadd.f32 %v2817, 1.0
        %v2850 = vadd.f32 %v2818, 1.0
        %v2851 = vadd.f32 %v2819, 1.0
        %v2852 = vadd.f32 %v2820, 1.0
        %v2853 = vadd.f32 %v2821, 1.0
        %v2854 = vadd.f32 %v2822, 1.0
        %v2855 = vadd.f32 %v2823, 1.0
        %v2856 = vadd.f32 %v2824, 1.0
        %v2857 = vadd.f32 %v2825, 1.0
        %v2858 = vadd.f32 %v2826, 1.0
        %v2859 = vadd.f32 %v2827, 1.0
        %v2860 = vadd.f32 %v2828, 1.0
        %v2861 = vadd.f32 %v2829, 1.0
        %v2862 = vadd.f32 %v2830, 1.0
        %v2863 = vadd.f32 %v2831, 1.0
        %v2864 = vadd.f32 %v2832, 1.0
        %v2865 = vadd.f32 %v2833, 1.0
        %v2866 = vadd.f32 %v2834, 1.0
        %v2867 = vadd.f32 %v2835, 1.0
        %v2868 = vadd.f32 %v2836, 1.0
        %v2869 = vadd.f32 %v2837, 1.0
        %v2870 = vadd.f32 %v2838, 1.0
        %v2871 = vadd.f32 %v2839, 1.0
        %v2872 = vadd.f32 %v2840, 1.0
        %v2873 = vadd.f32 %v2841, 1.0
        %v2874 = vadd.f32 %v2842, 1.0
        %v2875 = vadd.f32 %v2843, 1.0
        %v2876 = vadd.f32 %v2844, 1.0
        %v2877 = vadd.f32 %v2845, 1.0
        %v2878 = vmul.f32 %v2846, 0.5
        %v2879 = vmul.f32 %v2847, 0.5
        %v2880 = vmul.f32 %v2848, 0.5
        %v2881 = vmul.f32 %v2849, 0.5
        %v2882 = vmul.f32 %v2850, 0.5
        %v2883 = vmul.f32 %v2851, 0.5
        %v2884 = vmul.f32 %v2852, 0.5
        %v2885 = vmul.f32 %v2853, 0.5
        %v2886 = vmul.f32 %v2854, 0.5
        %v2887 = vmul.f32 %v2855, 0.5
        %v2888 = vmul.f32 %v2856, 0.5
        %v2889 = vmul.f32 %v2857, 0.5
        %v2890 = vmul.f32 %v2858, 0.5
        %v2891 = vmul.f32 %v2859, 0.5
        %v2892 = vmul.f32 %v2860, 0.5
        %v2893 = vmul.f32 %v2861, 0.5
        %v2894 = vmul.f32 %v2862, 0.5
        %v2895 = vmul.f32 %v2863, 0.5
        %v2896 = vmul.f32 %v2864, 0.5
        %v2897 = vmul.f32 %v2865, 0.5
        %v2898 = vmul.f32 %v2866, 0.5
        %v2899 = vmul.f32 %v2867, 0.5
        %v2900 = vmul.f32 %v2868, 0.5
        %v2901 = vmul.f32 %v2869, 0.5
        %v2902 = vmul.f32 %v2870, 0.5
        %v2903 = vmul.f32 %v2871, 0.5
        %v2904 = vmul.f32 %v2872, 0.5
        %v2905 = vmul.f32 %v2873, 0.5
        %v2906 = vmul.f32 %v2874, 0.5
        %v2907 = vmul.f32 %v2875, 0.5
        %v2908 = vmul.f32 %v2876, 0.5
        %v2909 = vmul.f32 %v2877, 0.5
        %v2912 = vcombine.high %v2562, %v2562
        %v2914 = vunpack.c.l.s4 1966171168
        %v2915 = vunpack.c.0.s8 %v2914
        %v2916 = vlaneseq
        %v2917 = vshrl.u32 %v2916, 7
        %v2918 = vsub.s32 %v2915, %v2917
        %v2919 = vrot.slane %v2562, %v2918
        %v2921 = vunpack.c.l.s4 1966171168
        %v2922 = vunpack.c.0.s8 %v2921
        %v2923 = vlaneseq
        %v2924 = vshrl.u32 %v2923, 7
        %v2925 = vsub.s32 %v2922, %v2924
        %v2926 = vrot.slane %v2912, %v2925
        %v2927 = vcombine.high %v2919, %v2919
        %v2928 = vcombine.high %v2926, %v2926
        %v2930 = vunpack.c.l.s4 1966171168
        %v2931 = vunpack.c.0.s8 %v2930
        %v2932 = vlaneseq
        %v2933 = vshrl.u32 %v2932, 7
        %v2934 = vsub.s32 %v2931, %v2933
        %v2935 = vrot.slane %v2919, %v2934
        %v2937 = vunpack.c.l.s4 1966171168
        %v2938 = vunpack.c.0.s8 %v2937
        %v2939 = vlaneseq
        %v2940 = vshrl.u32 %v2939, 7
        %v2941 = vsub.s32 %v2938, %v2940
        %v2942 = vrot.slane %v2926, %v2941
        %v2944 = vunpack.c.l.s4 1966171168
        %v2945 = vunpack.c.0.s8 %v2944
        %v2946 = vlaneseq
        %v2947 = vshrl.u32 %v2946, 7
        %v2948 = vsub.s32 %v2945, %v2947
        %v2949 = vrot.slane %v2927, %v2948
        %v2951 = vunpack.c.l.s4 1966171168
        %v2952 = vunpack.c.0.s8 %v2951
        %v2953 = vlaneseq
        %v2954 = vshrl.u32 %v2953, 7
        %v2955 = vsub.s32 %v2952, %v2954
        %v2956 = vrot.slane %v2928, %v2955
        %v2957 = vcombine.high %v2935, %v2935
        %v2958 = vcombine.high %v2942, %v2942
        %v2959 = vcombine.high %v2949, %v2949
        %v2960 = vcombine.high %v2956, %v2956
        %v2961 = vcombine.high %v2566, %v2566
        %v2963 = vunpack.c.l.s4 1966171168
        %v2964 = vunpack.c.0.s8 %v2963
        %v2965 = vlaneseq
        %v2966 = vshrl.u32 %v2965, 7
        %v2967 = vsub.s32 %v2964, %v2966
        %v2968 = vrot.slane %v2566, %v2967
        %v2970 = vunpack.c.l.s4 1966171168
        %v2971 = vunpack.c.0.s8 %v2970
        %v2972 = vlaneseq
        %v2973 = vshrl.u32 %v2972, 7
        %v2974 = vsub.s32 %v2971, %v2973
        %v2975 = vrot.slane %v2961, %v2974
        %v2976 = vcombine.high %v2968, %v2968
        %v2977 = vcombine.high %v2975, %v2975
        %v2979 = vunpack.c.l.s4 1966171168
        %v2980 = vunpack.c.0.s8 %v2979
        %v2981 = vlaneseq
        %v2982 = vshrl.u32 %v2981, 7
        %v2983 = vsub.s32 %v2980, %v2982
        %v2984 = vrot.slane %v2968, %v2983
        %v2986 = vunpack.c.l.s4 1966171168
        %v2987 = vunpack.c.0.s8 %v2986
        %v2988 = vlaneseq
        %v2989 = vshrl.u32 %v2988, 7
        %v2990 = vsub.s32 %v2987, %v2989
        %v2991 = vrot.slane %v2975, %v2990
        %v2993 = vunpack.c.l.s4 1966171168
        %v2994 = vunpack.c.0.s8 %v2993
        %v2995 = vlaneseq
        %v2996 = vshrl.u32 %v2995, 7
        %v2997 = vsub.s32 %v2994, %v2996
        %v2998 = vrot.slane %v2976, %v2997
        %v3000 = vunpack.c.l.s4 1966171168
        %v3001 = vunpack.c.0.s8 %v3000
        %v3002 = vlaneseq
        %v3003 = vshrl.u32 %v3002, 7
        %v3004 = vsub.s32 %v3001, %v3003
        %v3005 = vrot.slane %v2977, %v3004
        %v3006 = vcombine.high %v2984, %v2984
        %v3007 = vcombine.high %v2991, %v2991
        %v3008 = vcombine.high %v2998, %v2998
        %v3009 = vcombine.high %v3005, %v3005
        %v3010 = vlaneseq
        %v3011 = vshrl.u32 %v3010, 7
        %v3012 = vsub.s32 0, %v3011
        %v3013 = vrot.slane %v2935, %v3012
        %v3014 = vlaneseq
        %v3015 = vshrl.u32 %v3014, 7
        %v3016 = vsub.s32 0, %v3015
        %v3017 = vrot.slane %v2949, %v3016
        %v3018 = vlaneseq
        %v3019 = vshrl.u32 %v3018, 7
        %v3020 = vsub.s32 0, %v3019
        %v3021 = vrot.slane %v2957, %v3020
        %v3022 = vlaneseq
        %v3023 = vshrl.u32 %v3022, 7
        %v3024 = vsub.s32 0, %v3023
        %v3025 = vrot.slane %v2959, %v3024
        %v3026 = vlaneseq
        %v3027 = vshrl.u32 %v3026, 7
        %v3028 = vsub.s32 0, %v3027
        %v3029 = vrot.slane %v2942, %v3028
        %v3030 = vlaneseq
        %v3031 = vshrl.u32 %v3030, 7
        %v3032 = vsub.s32 0, %v3031
        %v3033 = vrot.slane %v2956, %v3032
        %v3034 = vlaneseq
        %v3035 = vshrl.u32 %v3034, 7
        %v3036 = vsub.s32 0, %v3035
        %v3037 = vrot.slane %v2958, %v3036
        %v3038 = vlaneseq
        %v3039 = vshrl.u32 %v3038, 7
        %v3040 = vsub.s32 0, %v3039
        %v3041 = vrot.slane %v2960, %v3040
        %v3042 = vlaneseq
        %v3043 = vshrl.u32 %v3042, 7
        %v3044 = vsub.s32 0, %v3043
        %v3045 = vrot.slane %v2984, %v3044
        %v3046 = vlaneseq
        %v3047 = vshrl.u32 %v3046, 7
        %v3048 = vsub.s32 0, %v3047
        %v3049 = vrot.slane %v2998, %v3048
        %v3050 = vlaneseq
        %v3051 = vshrl.u32 %v3050, 7
        %v3052 = vsub.s32 0, %v3051
        %v3053 = vrot.slane %v3006, %v3052
        %v3054 = vlaneseq
        %v3055 = vshrl.u32 %v3054, 7
        %v3056 = vsub.s32 0, %v3055
        %v3057 = vrot.slane %v3008, %v3056
        %v3058 = vlaneseq
        %v3059 = vshrl.u32 %v3058, 7
        %v3060 = vsub.s32 0, %v3059
        %v3061 = vrot.slane %v2991, %v3060
        %v3062 = vlaneseq
        %v3063 = vshrl.u32 %v3062, 7
        %v3064 = vsub.s32 0, %v3063
        %v3065 = vrot.slane %v3005, %v3064
        %v3066 = vlaneseq
        %v3067 = vshrl.u32 %v3066, 7
        %v3068 = vsub.s32 0, %v3067
        %v3069 = vrot.slane %v3007, %v3068
        %v3070 = vlaneseq
        %v3071 = vshrl.u32 %v3070, 7
        %v3072 = vsub.s32 0, %v3071
        %v3073 = vrot.slane %v3009, %v3072
        %v3090 = vmul.f32 %v2878, %v3013
        %v3091 = vmul.f32 %v2879, %v3013
        %v3092 = vmul.f32 %v2880, %v3017
        %v3093 = vmul.f32 %v2881, %v3017
        %v3094 = vmul.f32 %v2882, %v3021
        %v3095 = vmul.f32 %v2883, %v3021
        %v3096 = vmul.f32 %v2884, %v3025
        %v3097 = vmul.f32 %v2885, %v3025
        %v3098 = vmul.f32 %v2886, %v3029
        %v3099 = vmul.f32 %v2887, %v3029
        %v3100 = vmul.f32 %v2888, %v3033
        %v3101 = vmul.f32 %v2889, %v3033
        %v3102 = vmul.f32 %v2890, %v3037
        %v3103 = vmul.f32 %v2891, %v3037
        %v3104 = vmul.f32 %v2892, %v3041
        %v3105 = vmul.f32 %v2893, %v3041
        %v3106 = vmul.f32 %v2894, %v3045
        %v3107 = vmul.f32 %v2895, %v3045
        %v3108 = vmul.f32 %v2896, %v3049
        %v3109 = vmul.f32 %v2897, %v3049
        %v3110 = vmul.f32 %v2898, %v3053
        %v3111 = vmul.f32 %v2899, %v3053
        %v3112 = vmul.f32 %v2900, %v3057
        %v3113 = vmul.f32 %v2901, %v3057
        %v3114 = vmul.f32 %v2902, %v3061
        %v3115 = vmul.f32 %v2903, %v3061
        %v3116 = vmul.f32 %v2904, %v3065
        %v3117 = vmul.f32 %v2905, %v3065
        %v3118 = vmul.f32 %v2906, %v3069
        %v3119 = vmul.f32 %v2907, %v3069
        %v3120 = vmul.f32 %v2908, %v3073
        %v3121 = vmul.f32 %v2909, %v3073
        %v3122 = vmul.f32 %v3090, %v1754
        %v3123 = vmul.f32 %v3091, %v1758
        %v3124 = vmul.f32 %v3092, %v1765
        %v3125 = vmul.f32 %v3093, %v1769
        %v3126 = vmul.f32 %v3094, %v1776
        %v3127 = vmul.f32 %v3095, %v1780
        %v3128 = vmul.f32 %v3096, %v1787
        %v3129 = vmul.f32 %v3097, %v1791
        %v3130 = vmul.f32 %v3098, %v1798
        %v3131 = vmul.f32 %v3099, %v1802
        %v3132 = vmul.f32 %v3100, %v1809
        %v3133 = vmul.f32 %v3101, %v1813
        %v3134 = vmul.f32 %v3102, %v1820
        %v3135 = vmul.f32 %v3103, %v1824
        %v3136 = vmul.f32 %v3104, %v1831
        %v3137 = vmul.f32 %v3105, %v1835
        %v3138 = vmul.f32 %v3106, %v1842
        %v3139 = vmul.f32 %v3107, %v1846
        %v3140 = vmul.f32 %v3108, %v1853
        %v3141 = vmul.f32 %v3109, %v1857
        %v3142 = vmul.f32 %v3110, %v1864
        %v3143 = vmul.f32 %v3111, %v1868
        %v3144 = vmul.f32 %v3112, %v1875
        %v3145 = vmul.f32 %v3113, %v1879
        %v3146 = vmul.f32 %v3114, %v1886
        %v3147 = vmul.f32 %v3115, %v1890
        %v3148 = vmul.f32 %v3116, %v1897
        %v3149 = vmul.f32 %v3117, %v1901
        %v3150 = vmul.f32 %v3118, %v1908
        %v3151 = vmul.f32 %v3119, %v1912
        %v3152 = vmul.f32 %v3120, %v1919
        %v3153 = vmul.f32 %v3121, %v1923
        %v3154 = vadd.f32 %v3122, 0.0
        %v3155 = vadd.f32 %v3123, 0.0
        %v3156 = vadd.f32 %v3154, %v3124
        %v3157 = vadd.f32 %v3155, %v3125
        %v3158 = vadd.f32 %v3156, %v3126
        %v3159 = vadd.f32 %v3157, %v3127
        %v3160 = vadd.f32 %v3158, %v3128
        %v3161 = vadd.f32 %v3159, %v3129
        %v3162 = vadd.f32 %v3160, %v3130
        %v3163 = vadd.f32 %v3161, %v3131
        %v3164 = vadd.f32 %v3162, %v3132
        %v3165 = vadd.f32 %v3163, %v3133
        %v3166 = vadd.f32 %v3164, %v3134
        %v3167 = vadd.f32 %v3165, %v3135
        %v3168 = vadd.f32 %v3166, %v3136
        %v3169 = vadd.f32 %v3167, %v3137
        %v3170 = vadd.f32 %v3168, %v3138
        %v3171 = vadd.f32 %v3169, %v3139
        %v3172 = vadd.f32 %v3170, %v3140
        %v3173 = vadd.f32 %v3171, %v3141
        %v3174 = vadd.f32 %v3172, %v3142
        %v3175 = vadd.f32 %v3173, %v3143
        %v3176 = vadd.f32 %v3174, %v3144
        %v3177 = vadd.f32 %v3175, %v3145
        %v3178 = vadd.f32 %v3176, %v3146
        %v3179 = vadd.f32 %v3177, %v3147
        %v3180 = vadd.f32 %v3178, %v3148
        %v3181 = vadd.f32 %v3179, %v3149
        %v3182 = vadd.f32 %v3180, %v3150
        %v3183 = vadd.f32 %v3181, %v3151
        %v3184 = vadd.f32 %v3182, %v3152
        %v3185 = vadd.f32 %v3183, %v3153
        %v3186 = vadd.f32 %v2564, %v3184
        %v3187 = vadd.f32 %v2568, %v3185
        %v3188 = vld [vmem:[#allocation7] sm:$0x1]
        %v3190 = vlaneseq
        %v3191 = vshrl.u32 %v3190, 7
        %v3192 = vsub.s32 0, %v3191
        %v3193 = vrot.slane %v3188, %v3192
        %v3195 = vadd.f32 %v3186, %v3193
        %v3196 = vadd.f32 %v3187, %v3193
        %v3197 = vmax.f32 %v3195, 0.0
        %v3198 = vmax.f32 %v3196, 0.0
        %v3199 = vpack.c.bf16 %v3198, %v3197
        %v3200 = vld [vmem:[%s8] sm:$0xf]
        %v3201 = vld [vmem:[%s8 + $0x4] sm:$0xf]
        %v3202 = vld [vmem:[%s8 + $0x8] sm:$0xf]
        %v3203 = vld [vmem:[%s8 + $0xc] sm:$0xf]
        %v3204 = vld [vmem:[%s8 + $0x10] sm:$0xf]
        %v3205 = vld [vmem:[%s8 + $0x14] sm:$0xf]
        %v3206 = vld [vmem:[%s8 + $0x18] sm:$0xf]
        %v3207 = vld [vmem:[%s8 + $0x1c] sm:$0xf]
        %v3208 = vld [vmem:[%s8 + $0x20] sm:$0xf]
        %v3209 = vld [vmem:[%s8 + $0x24] sm:$0xf]
        %v3210 = vld [vmem:[%s8 + $0x28] sm:$0xf]
        %v3211 = vld [vmem:[%s8 + $0x2c] sm:$0xf]
        %v3212 = vld [vmem:[%s8 + $0x30] sm:$0xf]
        %v3213 = vld [vmem:[%s8 + $0x34] sm:$0xf]
        %v3214 = vld [vmem:[%s8 + $0x38] sm:$0xf]
        %v3215 = vld [vmem:[%s8 + $0x3c] sm:$0xf]
        %v3216 = vld [vmem:[#allocation9] sm:$0x1]
        %v3218 = vlaneseq
        %v3219 = vshrl.u32 %v3218, 7
        %v3220 = vsub.s32 0, %v3219
        %v3221 = vrot.slane %v3216, %v3220
        %v3239 = vunpack.c.l.b16 %v3200
        %v3240 = vunpack.c.l.b16 %v3201
        %v3241 = vunpack.c.l.b16 %v3202
        %v3242 = vunpack.c.l.b16 %v3203
        %v3243 = vunpack.c.l.b16 %v3204
        %v3244 = vunpack.c.l.b16 %v3205
        %v3245 = vunpack.c.l.b16 %v3206
        %v3246 = vunpack.c.l.b16 %v3207
        %v3247 = vunpack.c.l.b16 %v3208
        %v3248 = vunpack.c.l.b16 %v3209
        %v3249 = vunpack.c.l.b16 %v3210
        %v3250 = vunpack.c.l.b16 %v3211
        %v3251 = vunpack.c.l.b16 %v3212
        %v3252 = vunpack.c.l.b16 %v3213
        %v3253 = vunpack.c.l.b16 %v3214
        %v3254 = vunpack.c.l.b16 %v3215
        %v3255 = vpack.c.b16 %v3240, %v3239
        %v3256 = vpack.c.b16 %v3242, %v3241
        %v3257 = vpack.c.b16 %v3244, %v3243
        %v3258 = vpack.c.b16 %v3246, %v3245
        %v3259 = vpack.c.b16 %v3248, %v3247
        %v3260 = vpack.c.b16 %v3250, %v3249
        %v3261 = vpack.c.b16 %v3252, %v3251
        %v3262 = vpack.c.b16 %v3254, %v3253
        %3271 = vmatprep.subr.bf16.mxu0 0
        %3272 = vmatpush1.bf16.msra.mxu0 %v3255
        %3273 = vmatprep.subr.bf16.mxu0 0
        %3274 = vmatpush1.bf16.msra.mxu0 %v3256
        %3275 = vmatprep.subr.bf16.mxu0 0
        %3276 = vmatpush1.bf16.msra.mxu0 %v3257
        %3277 = vmatprep.subr.bf16.mxu0 0
        %3278 = vmatpush1.bf16.msra.mxu0 %v3258
        %3279 = vmatprep.subr.bf16.mxu0 0
        %3280 = vmatpush1.bf16.msra.mxu0 %v3259
        %3281 = vmatprep.subr.bf16.mxu0 0
        %3282 = vmatpush1.bf16.msra.mxu0 %v3260
        %3283 = vmatprep.subr.bf16.mxu0 0
        %3284 = vmatpush1.bf16.msra.mxu0 %v3261
        %3285 = vmatprep.subr.bf16.mxu0 0
        %3286 = vmatpush1.bf16.msra.mxu0 %v3262
        %3287 = vmatprep.subr.bf16.mxu0 0
        %3288 = vmatpush1.bf16.msra.mxu0 0
        %3289 = vmatprep.subr.bf16.mxu0 0
        %3290 = vmatpush1.bf16.msra.mxu0 0
        %3291 = vmatprep.subr.bf16.mxu0 0
        %3292 = vmatpush1.bf16.msra.mxu0 0
        %3293 = vmatprep.subr.bf16.mxu0 0
        %3294 = vmatpush1.bf16.msra.mxu0 0
        %3295 = vmatprep.subr.bf16.mxu0 0
        %3296 = vmatpush1.bf16.msra.mxu0 0
        %3297 = vmatprep.subr.bf16.mxu0 0
        %3298 = vmatpush1.bf16.msra.mxu0 0
        %3299 = vmatprep.subr.bf16.mxu0 0
        %3300 = vmatpush1.bf16.msra.mxu0 0
        %3301 = vmatprep.subr.bf16.mxu0 0
        %3302 = vmatpush1.bf16.msra.mxu0 0
        %3303 = vmatprep.mubr.bf16.mxu0 0
        %3304 = vmatmul.mubr.bf16.gmra.mrb[0].mxu0 %v3199
        %v3305 = vpop.f32.mrb[0].mxu0
        %v3306 = vadd.f32 %v3221, %v3305
        %v3307 = vpop.f32.mrb[0].mxu0
        %v3308 = vpop.f32.mrb[0].mxu0
        %v3309 = vadd.f32 %v3221, %v3308
        %v3310 = vpop.f32.mrb[0].mxu0
        %3311 = vdwg.mxu0
        %v3312 = vmax.f32 %v3306, 0.0
        %v3313 = vmax.f32 %v3309, 0.0
        %v3314 = vpack.c.bf16 %v3313, %v3312
        %v3315 = vld [vmem:[%s10] sm:$0xf]
        %v3316 = vld [vmem:[%s10 + $0x4] sm:$0xf]
        %v3317 = vld [vmem:[%s10 + $0x8] sm:$0xf]
        %v3318 = vld [vmem:[%s10 + $0xc] sm:$0xf]
        %v3319 = vld [vmem:[%s10 + $0x10] sm:$0xf]
        %v3320 = vld [vmem:[%s10 + $0x14] sm:$0xf]
        %v3321 = vld [vmem:[%s10 + $0x18] sm:$0xf]
        %v3322 = vld [vmem:[%s10 + $0x1c] sm:$0xf]
        %v3323 = vld [vmem:[%s10 + $0x20] sm:$0xf]
        %v3324 = vld [vmem:[%s10 + $0x24] sm:$0xf]
        %v3325 = vld [vmem:[%s10 + $0x28] sm:$0xf]
        %v3326 = vld [vmem:[%s10 + $0x2c] sm:$0xf]
        %v3327 = vld [vmem:[%s10 + $0x30] sm:$0xf]
        %v3328 = vld [vmem:[%s10 + $0x34] sm:$0xf]
        %v3329 = vld [vmem:[%s10 + $0x38] sm:$0xf]
        %v3330 = vld [vmem:[%s10 + $0x3c] sm:$0xf]
        %v3331 = vld [vmem:[#allocation10] sm:$0x1]
        %v3333 = vlaneseq
        %v3334 = vshrl.u32 %v3333, 7
        %v3335 = vsub.s32 0, %v3334
        %v3336 = vrot.slane %v3331, %v3335
        %v3354 = vunpack.c.l.b16 %v3315
        %v3355 = vunpack.c.l.b16 %v3316
        %v3356 = vunpack.c.l.b16 %v3317
        %v3357 = vunpack.c.l.b16 %v3318
        %v3358 = vunpack.c.l.b16 %v3319
        %v3359 = vunpack.c.l.b16 %v3320
        %v3360 = vunpack.c.l.b16 %v3321
        %v3361 = vunpack.c.l.b16 %v3322
        %v3362 = vunpack.c.l.b16 %v3323
        %v3363 = vunpack.c.l.b16 %v3324
        %v3364 = vunpack.c.l.b16 %v3325
        %v3365 = vunpack.c.l.b16 %v3326
        %v3366 = vunpack.c.l.b16 %v3327
        %v3367 = vunpack.c.l.b16 %v3328
        %v3368 = vunpack.c.l.b16 %v3329
        %v3369 = vunpack.c.l.b16 %v3330
        %v3370 = vpack.c.b16 %v3355, %v3354
        %v3371 = vpack.c.b16 %v3357, %v3356
        %v3372 = vpack.c.b16 %v3359, %v3358
        %v3373 = vpack.c.b16 %v3361, %v3360
        %v3374 = vpack.c.b16 %v3363, %v3362
        %v3375 = vpack.c.b16 %v3365, %v3364
        %v3376 = vpack.c.b16 %v3367, %v3366
        %v3377 = vpack.c.b16 %v3369, %v3368
        %3386 = vmatprep.subr.bf16.mxu0 0
        %3387 = vmatpush1.bf16.msra.mxu0 %v3370
        %3388 = vmatprep.subr.bf16.mxu0 0
        %3389 = vmatpush1.bf16.msra.mxu0 %v3371
        %3390 = vmatprep.subr.bf16.mxu0 0
        %3391 = vmatpush1.bf16.msra.mxu0 %v3372
        %3392 = vmatprep.subr.bf16.mxu0 0
        %3393 = vmatpush1.bf16.msra.mxu0 %v3373
        %3394 = vmatprep.subr.bf16.mxu0 0
        %3395 = vmatpush1.bf16.msra.mxu0 %v3374
        %3396 = vmatprep.subr.bf16.mxu0 0
        %3397 = vmatpush1.bf16.msra.mxu0 %v3375
        %3398 = vmatprep.subr.bf16.mxu0 0
        %3399 = vmatpush1.bf16.msra.mxu0 %v3376
        %3400 = vmatprep.subr.bf16.mxu0 0
        %3401 = vmatpush1.bf16.msra.mxu0 %v3377
        %3402 = vmatprep.subr.bf16.mxu0 0
        %3403 = vmatpush1.bf16.msra.mxu0 0
        %3404 = vmatprep.subr.bf16.mxu0 0
        %3405 = vmatpush1.bf16.msra.mxu0 0
        %3406 = vmatprep.subr.bf16.mxu0 0
        %3407 = vmatpush1.bf16.msra.mxu0 0
        %3408 = vmatprep.subr.bf16.mxu0 0
        %3409 = vmatpush1.bf16.msra.mxu0 0
        %3410 = vmatprep.subr.bf16.mxu0 0
        %3411 = vmatpush1.bf16.msra.mxu0 0
        %3412 = vmatprep.subr.bf16.mxu0 0
        %3413 = vmatpush1.bf16.msra.mxu0 0
        %3414 = vmatprep.subr.bf16.mxu0 0
        %3415 = vmatpush1.bf16.msra.mxu0 0
        %3416 = vmatprep.subr.bf16.mxu0 0
        %3417 = vmatpush1.bf16.msra.mxu0 0
        %3418 = vmatprep.mubr.bf16.mxu0 0
        %3419 = vmatmul.mubr.bf16.gmra.mrb[0].mxu0 %v3314
        %v3420 = vpop.f32.mrb[0].mxu0
        %v3421 = vadd.f32 %v3336, %v3420
        %v3422 = vpop.f32.mrb[0].mxu0
        %v3423 = vpop.f32.mrb[0].mxu0
        %v3424 = vadd.f32 %v3336, %v3423
        %v3425 = vpop.f32.mrb[0].mxu0
        %3426 = vdwg.mxu0
        %v3427 = vmax.f32 %v3421, 0.0
        %v3428 = vmax.f32 %v3424, 0.0
        %3429 = vst [vmem:[%s511] sm:$0xff] %v3427
        %3430 = vst [vmem:[%s511 + $0x8] sm:$0xff] %v3428
        %p3431 = scmp.lt.s32.totalorder %s27, 3
        %s3432 = scalar_select %p3431, %s27, 3
        %s3433 = smul.addr %s3432, 2
        %s3434 = smul.addr %s3433, 8
        %s3435 = scalar_lea.vmem %s12, %s3434
        // Predicated region
        $region93: #{pos_decoder_forward.1} parent=67 // pred_check
          %p3436 = pneg %p307
        $region94: #{pos_decoder_forward.1} parent=67 // pred_check_branch
          %3438 = sbr.rel (%p3436) target = $region96
        $region95: #{pos_decoder_forward.1} parent=67 // pred_region
          _
        $region96: #{pos_decoder_forward.1} parent=67 // pred_fallthru
          _
      $region68: #{pos_decoder_forward.1} parent=5 // pred_fallthru
        _
      %p3439 = scmp.le.s32.totalorder 2, %s22
      // Predicated region
      $region97: #{pos_decoder_forward.1} parent=5 // pred_check
        %p3440 = pneg %p3439
      $region98: #{pos_decoder_forward.1} parent=5 // pred_check_branch
        %3442 = sbr.rel (%p3440) target = $region100
      $region99: #{pos_decoder_forward.1} parent=5 // pred_region
        %s3443 = ssub.s32 %s22, 2
        // Predicated region
        $region101: #{pos_decoder_forward.1} parent=99 // pred_check
          %p3444 = pneg %p313
        $region102: #{pos_decoder_forward.1} parent=99 // pred_check_branch
          %3446 = sbr.rel (%p3444) target = $region104
        $region103: #{pos_decoder_forward.1} parent=99 // pred_region
          %p3447 = scmp.lt.s32.totalorder %s28, 3
          %s3448 = scalar_select %p3447, %s28, 3
          %s3449 = smul.addr %s3448, 2
          %s3450 = smul.addr %s3449, 8
          %s3451 = scalar_lea.vmem %s12, %s3450
        $region104: #{pos_decoder_forward.1} parent=99 // pred_fallthru
          _
      $region100: #{pos_decoder_forward.1} parent=5 // pred_fallthru
        _
    $region6: #{pos_decoder_forward.1} parent=1 // loop_footer
      %s26 = sadd.s32 1, %s22
    $region7: #{pos_decoder_forward.1} parent=1 // loop_footer_branch
      %21 = sbr.rel target = $region3
    $region8: #{pos_decoder_forward.1} parent=1 // loop_exit
      _
    %3452 = vsyncpa [#allocation3], 1
    %s3453 = scalar_lea.sflag [#allocation3], 1
    %3454 = vsyncpa %s3453, 1
    %3455 = vsyncpa [#allocation5], 1
    %3456 = vsyncpa [#allocation8], 1
    %3457 = vsyncpa [#allocation11], 1

</llo_original>
